<compile_context>
chip_gen: v5e
topology: v5e:2x2
jax: 0.10.0
libtpu: 0.0.40
codegen_flags: <defaults>
</compile_context>

<pallas_src>
import functools

import numpy as np
import jax
import jax.numpy as jnp
from jax import lax
from jax.experimental import pallas as pl
from jax.experimental.pallas import tpu as pltpu

PAD = 0            # Constants.PAD
_TM = 512          # row tile for memory-bound fused kernels
_TQ = 256          # attention query-row tile
_TK = 512          # attention key-row tile
_TH = 1024         # FFN d_inner chunk
_TN = 2048         # vocab-projection lane tile
_TMV = 512         # vocab-projection row tile


def _row_tile(M, target=_TM):
    # Full-array block when small (always legal); otherwise an 8-multiple tile.
    return M if M <= target else target


def _cparams(semantics, blocks, scratch_bytes=0):
    """Explicit VMEM budget: sum of double-buffered blocks + scratch + headroom."""
    bb = sum(int(np.prod(s)) * int(e) for s, e in blocks)
    limit = int(np.clip(2 * bb + scratch_bytes + (4 << 20), 16 << 20, 48 << 20))
    return pltpu.CompilerParams(dimension_semantics=semantics,
                                vmem_limit_bytes=limit)


# ---------------------------------------------------------------------------
# Pallas kernels
# ---------------------------------------------------------------------------

def _linear_kernel(x_ref, w_ref, b_ref, o_ref):
    acc = jnp.dot(x_ref[...].astype(jnp.bfloat16), w_ref[...],
                  preferred_element_type=jnp.float32)
    o_ref[...] = (acc + b_ref[...]).astype(o_ref.dtype)


def pallas_linear(x, w, b):
    """x:(M,Din) bf16, w:(Din,Dout) bf16, b:(1,Dout) f32 -> (M,Dout) bf16."""
    M, Din = x.shape
    Dout = w.shape[1]
    tm = _row_tile(M)
    cp = _cparams(("parallel",),
                  [((tm, Din), 2), ((Din, Dout), 2), ((1, Dout), 4),
                   ((tm, Dout), 2)])
    return pl.pallas_call(
        _linear_kernel,
        out_shape=jax.ShapeDtypeStruct((M, Dout), jnp.bfloat16),
        grid=(pl.cdiv(M, tm),),
        in_specs=[
            pl.BlockSpec((tm, Din), lambda i: (i, 0)),
            pl.BlockSpec((Din, Dout), lambda i: (0, 0)),
            pl.BlockSpec((1, Dout), lambda i: (0, 0)),
        ],
        out_specs=pl.BlockSpec((tm, Dout), lambda i: (i, 0)),
        compiler_params=cp,
    )(x, w, b)


def _flash_attn_kernel(kpad_ref, q_ref, kv_ref, o_ref, m_sc, l_sc, acc_sc,
                       *, n_head, d_k, d_v, causal, tq, tk, lk):
    qi = pl.program_id(1)
    ki = pl.program_id(2)
    nk = pl.num_programs(2)

    @pl.when(ki == 0)
    def _():
        m_sc[...] = jnp.full(m_sc.shape, -jnp.inf, m_sc.dtype)
        l_sc[...] = jnp.zeros(l_sc.shape, l_sc.dtype)
        acc_sc[...] = jnp.zeros(acc_sc.shape, acc_sc.dtype)

    hdk = n_head * d_k
    q = q_ref[0]                    # (tq, H*dk)  bf16
    kv = kv_ref[0]                  # (tk, H*(dk+dv)) bf16
    kmat = kv[:, :hdk]
    vmat = kv[:, hdk:]

    # Mask built in-kernel from the (1, tk) key-pad vector + causal iota.
    kidx = ki * tk + lax.broadcasted_iota(jnp.int32, (tq, tk), 1)
    masked = (kpad_ref[0] > 0) | (kidx >= lk)
    if causal:
        qidx = qi * tq + lax.broadcasted_iota(jnp.int32, (tq, tk), 0)
        masked = masked | (kidx > qidx)

    if lk % tk != 0:
        # Boundary k-tile: zero padded V rows so garbage can never propagate.
        vrow_ok = (ki * tk + lax.broadcasted_iota(jnp.int32, (tk, 1), 0)) < lk
    else:
        vrow_ok = None

    for h in range(n_head):                       # static unroll over heads
        qh = q[:, h * d_k:(h + 1) * d_k]
        kh = kmat[:, h * d_k:(h + 1) * d_k]
        vh = vmat[:, h * d_v:(h + 1) * d_v]
        if vrow_ok is not None:
            vh = jnp.where(vrow_ok, vh, jnp.zeros_like(vh))
        # 1/sqrt(d_k) temperature is folded into the Q projection weights.
        s = lax.dot_general(qh, kh, (((1,), (1,)), ((), ())),
                            preferred_element_type=jnp.float32)   # (tq, tk)
        s = jnp.where(masked, -1e9, s)            # finite fill: no NaNs
        m_prev = m_sc[h]                          # (tq, 1)
        m_new = jnp.maximum(m_prev, jnp.max(s, axis=-1, keepdims=True))
        alpha = jnp.exp(m_prev - m_new)
        p = jnp.exp(s - m_new)
        l_sc[h] = alpha * l_sc[h] + jnp.sum(p, axis=-1, keepdims=True)
        acc_sc[h] = alpha * acc_sc[h] + jnp.dot(
            p.astype(jnp.bfloat16), vh, preferred_element_type=jnp.float32)
        m_sc[h] = m_new

    @pl.when(ki == nk - 1)
    def _():
        for h in range(n_head):
            inv = pl.reciprocal(l_sc[h], approx=True)
            o_ref[0, :, h * d_v:(h + 1) * d_v] = (acc_sc[h] * inv).astype(o_ref.dtype)


def pallas_attention(q, kv, kpad, n_head, d_k, d_v, causal):
    """q:(B,Lq,H*dk) bf16, kv:(B,Lk,H*(dk+dv)) bf16, kpad:(B,1,Lk) int32."""
    B, Lq, Dq = q.shape
    Lk, Dkv = kv.shape[1], kv.shape[2]
    hdv = n_head * d_v
    tq = Lq if Lq <= _TQ else _TQ
    tk = Lk if Lk <= _TK else _TK
    kern = functools.partial(_flash_attn_kernel, n_head=n_head, d_k=d_k,
                             d_v=d_v, causal=causal, tq=tq, tk=tk, lk=Lk)
    scratch_bytes = 4 * n_head * tq * (2 + d_v)
    cp = _cparams(("parallel", "parallel", "arbitrary"),
                  [((1, 1, tk), 4), ((1, tq, Dq), 2), ((1, tk, Dkv), 2),
                   ((1, tq, hdv), 2)], scratch_bytes)
    return pl.pallas_call(
        kern,
        out_shape=jax.ShapeDtypeStruct((B, Lq, hdv), jnp.bfloat16),
        grid=(B, pl.cdiv(Lq, tq), pl.cdiv(Lk, tk)),
        in_specs=[
            pl.BlockSpec((1, 1, tk), lambda b, qi, ki: (b, 0, ki)),
            pl.BlockSpec((1, tq, Dq), lambda b, qi, ki: (b, qi, 0)),
            pl.BlockSpec((1, tk, Dkv), lambda b, qi, ki: (b, ki, 0)),
        ],
        out_specs=pl.BlockSpec((1, tq, hdv), lambda b, qi, ki: (b, qi, 0)),
        scratch_shapes=[
            pltpu.VMEM((n_head, tq, 1), jnp.float32),
            pltpu.VMEM((n_head, tq, 1), jnp.float32),
            pltpu.VMEM((n_head, tq, d_v), jnp.float32),
        ],
        compiler_params=cp,
    )(kpad, q, kv)


def _proj_add_ln_kernel(ctx_ref, r_ref, npm_ref, w_ref, lnp_ref, o_ref, *, eps):
    y = jnp.dot(ctx_ref[...], w_ref[...], preferred_element_type=jnp.float32)
    lnp = lnp_ref[...]                          # (3, D): [bias; gamma; beta]
    y = y + lnp[0:1] + r_ref[...].astype(jnp.float32)
    mean = jnp.mean(y, axis=-1, keepdims=True)
    var = jnp.mean(jnp.square(y - mean), axis=-1, keepdims=True)
    ln = (y - mean) * lax.rsqrt(var + eps) * lnp[1:2] + lnp[2:3]
    o_ref[...] = (ln * npm_ref[...]).astype(o_ref.dtype)


def pallas_proj_add_ln(ctx, residual, npm, w, lnp, eps=1e-5):
    """attn fc + residual add + LayerNorm + non-pad mask, fused (bf16 I/O)."""
    M, Dc = ctx.shape
    D = w.shape[1]
    tm = _row_tile(M)
    kern = functools.partial(_proj_add_ln_kernel, eps=eps)
    cp = _cparams(("parallel",),
                  [((tm, Dc), 2), ((tm, D), 2), ((tm, 1), 4), ((Dc, D), 2),
                   ((3, D), 4), ((tm, D), 2)])
    return pl.pallas_call(
        kern,
        out_shape=jax.ShapeDtypeStruct((M, D), jnp.bfloat16),
        grid=(pl.cdiv(M, tm),),
        in_specs=[
            pl.BlockSpec((tm, Dc), lambda i: (i, 0)),
            pl.BlockSpec((tm, D), lambda i: (i, 0)),
            pl.BlockSpec((tm, 1), lambda i: (i, 0)),
            pl.BlockSpec((Dc, D), lambda i: (0, 0)),
            pl.BlockSpec((3, D), lambda i: (0, 0)),
        ],
        out_specs=pl.BlockSpec((tm, D), lambda i: (i, 0)),
        compiler_params=cp,
    )(ctx, residual, npm, w, lnp)


def _ffn_add_ln_kernel(x_ref, npm_ref, w1_ref, b1_ref, w2_ref, lnp_ref, o_ref,
                       acc_ref, *, eps, th, d_inner):
    j = pl.program_id(1)

    @pl.when(j == 0)
    def _():
        acc_ref[...] = jnp.zeros(acc_ref.shape, acc_ref.dtype)

    x = x_ref[...]                                            # (tm, D) bf16
    h = jnp.dot(x, w1_ref[...],
                preferred_element_type=jnp.float32) + b1_ref[...]
    h = jnp.maximum(h, 0.0)
    w2 = w2_ref[...]
    if d_inner % th != 0:
        # Boundary d_inner chunk: zero padded hidden cols and padded W2 rows.
        hvalid_row = (j * th + lax.broadcasted_iota(jnp.int32, (1, th), 1)) < d_inner
        hvalid_col = (j * th + lax.broadcasted_iota(jnp.int32, (th, 1), 0)) < d_inner
        h = jnp.where(hvalid_row, h, 0.0)
        w2 = jnp.where(hvalid_col, w2, jnp.zeros_like(w2))
    acc_ref[...] += jnp.dot(h.astype(jnp.bfloat16), w2,
                            preferred_element_type=jnp.float32)

    @pl.when(j == pl.num_programs(1) - 1)
    def _():
        lnp = lnp_ref[...]                     # (3, D): [b2; gamma; beta]
        y = acc_ref[...] + lnp[0:1] + x.astype(jnp.float32)
        mean = jnp.mean(y, axis=-1, keepdims=True)
        var = jnp.mean(jnp.square(y - mean), axis=-1, keepdims=True)
        ln = (y - mean) * lax.rsqrt(var + eps) * lnp[1:2] + lnp[2:3]
        o_ref[...] = (ln * npm_ref[...]).astype(o_ref.dtype)


def pallas_ffn_add_ln(x, npm, w1, b1, w2, lnp, eps=1e-5):
    """W1 -> relu -> W2 + residual + LayerNorm + non-pad mask, d_inner chunked."""
    M, D = x.shape
    H = w1.shape[1]
    tm = _row_tile(M)
    th = H if H <= _TH else _TH
    kern = functools.partial(_ffn_add_ln_kernel, eps=eps, th=th, d_inner=H)
    cp = _cparams(("parallel", "arbitrary"),
                  [((tm, D), 2), ((tm, 1), 4), ((D, th), 2), ((1, th), 4),
                   ((th, D), 2), ((3, D), 4), ((tm, D), 2)],
                  scratch_bytes=4 * tm * D)
    return pl.pallas_call(
        kern,
        out_shape=jax.ShapeDtypeStruct((M, D), jnp.bfloat16),
        grid=(pl.cdiv(M, tm), pl.cdiv(H, th)),
        in_specs=[
            pl.BlockSpec((tm, D), lambda i, j: (i, 0)),
            pl.BlockSpec((tm, 1), lambda i, j: (i, 0)),
            pl.BlockSpec((D, th), lambda i, j: (0, j)),
            pl.BlockSpec((1, th), lambda i, j: (0, j)),
            pl.BlockSpec((th, D), lambda i, j: (j, 0)),
            pl.BlockSpec((3, D), lambda i, j: (0, 0)),
        ],
        out_specs=pl.BlockSpec((tm, D), lambda i, j: (i, 0)),
        scratch_shapes=[pltpu.VMEM((tm, D), jnp.float32)],
        compiler_params=cp,
    )(x, npm, w1, b1, w2, lnp)


def _vocab_proj_kernel(x_ref, w_ref, o_ref, *, scale):
    o_ref[...] = scale * jnp.dot(x_ref[...], w_ref[...],
                                 preferred_element_type=jnp.float32)


def pallas_vocab_proj(x, w_t, scale):
    """Tied bias-free vocab projection; the big (D,N) weight streams once."""
    M, D = x.shape
    N = w_t.shape[1]
    tm = M if M <= _TMV else _TMV
    tn = N if N <= _TN else _TN
    kern = functools.partial(_vocab_proj_kernel, scale=scale)
    cp = _cparams(("parallel", "parallel"),
                  [((tm, D), 2), ((D, tn), 2), ((tm, tn), 4)])
    return pl.pallas_call(
        kern,
        out_shape=jax.ShapeDtypeStruct((M, N), jnp.float32),
        grid=(pl.cdiv(N, tn), pl.cdiv(M, tm)),      # N slow, M inner
        in_specs=[
            pl.BlockSpec((tm, D), lambda j, i: (i, 0)),
            pl.BlockSpec((D, tn), lambda j, i: (0, j)),
        ],
        out_specs=pl.BlockSpec((tm, tn), lambda j, i: (i, j)),
        compiler_params=cp,
    )(x, w_t)


# ---------------------------------------------------------------------------
# Model glue (masks, embeddings, layer composition)
# ---------------------------------------------------------------------------

def get_sinusoid_encoding_table(n_position, d_hid, padding_idx=None):
    pos = np.arange(n_position)[:, None].astype(np.float64)
    hid = np.arange(d_hid)[None, :]
    angle = pos / np.power(10000, 2 * (hid // 2) / d_hid)
    table = np.zeros((n_position, d_hid), dtype=np.float64)
    table[:, 0::2] = np.sin(angle[:, 0::2])
    table[:, 1::2] = np.cos(angle[:, 1::2])
    if padding_idx is not None:
        table[padding_idx] = 0.0
    return jnp.asarray(table, jnp.float32)


def get_non_pad_mask(seq):
    return (seq != PAD).astype(jnp.float32)[..., None]          # (B, L, 1)


def get_key_pad_vec(seq_k):
    # (B, 1, Lk) int32; the dense (B, Lq, Lk) mask is rebuilt in-kernel.
    return (seq_k == PAD).astype(jnp.int32)[:, None, :]


def multi_head_attention(q_in, kv_in, kpad, non_pad_mask, p, n_head, d_k, d_v,
                         causal):
    B, Lq, d_model = q_in.shape
    Lk = kv_in.shape[1]
    hdk, hdv = n_head * d_k, n_head * d_v
    residual2d = q_in.reshape(-1, d_model)
    npm2d = non_pad_mask.reshape(-1, 1)

    q = pallas_linear(residual2d, p["wq"], p["bq"]).reshape(B, Lq, hdk)
    kv = pallas_linear(kv_in.reshape(-1, d_model),
                       p["wkv"], p["bkv"]).reshape(B, Lk, hdk + hdv)
    ctx = pallas_attention(q, kv, kpad, n_head, d_k, d_v, causal)
    out = pallas_proj_add_ln(ctx.reshape(-1, hdv), residual2d, npm2d,
                             p["wfc"], p["fc_lnp"])
    return out.reshape(B, Lq, d_model)


def positionwise_ffn(x, non_pad_mask, p):
    B, L, D = x.shape
    out = pallas_ffn_add_ln(x.reshape(-1, D), non_pad_mask.reshape(-1, 1),
                            p["w1"], p["b1"], p["w2"], p["lnp"])
    return out.reshape(B, L, D)


def encoder(params, src_seq, src_pos, cfg):
    kpad_src = get_key_pad_vec(src_seq)
    non_pad_mask = get_non_pad_mask(src_seq)
    x = (params["word_emb"][src_seq]
         + params["pos_table"][src_pos]).astype(jnp.bfloat16)
    for lp in params["enc_layers"]:
        x = multi_head_attention(x, x, kpad_src, non_pad_mask, lp["slf"],
                                 cfg["n_head"], cfg["d_k"], cfg["d_v"],
                                 causal=False)
        x = positionwise_ffn(x, non_pad_mask, lp["ffn"])
    return x


def decoder(params, tgt_seq, tgt_pos, src_seq, enc_output, cfg):
    non_pad_mask = get_non_pad_mask(tgt_seq)
    kpad_tgt = get_key_pad_vec(tgt_seq)       # key-pad; causal handled in-kernel
    kpad_src = get_key_pad_vec(src_seq)
    x = (params["word_emb"][tgt_seq]
         + params["pos_table"][tgt_pos]).astype(jnp.bfloat16)
    for lp in params["dec_layers"]:
        x = multi_head_attention(x, x, kpad_tgt, non_pad_mask, lp["slf"],
                                 cfg["n_head"], cfg["d_k"], cfg["d_v"],
                                 causal=True)
        x = multi_head_attention(x, enc_output, kpad_src, non_pad_mask, lp["enc"],
                                 cfg["n_head"], cfg["d_k"], cfg["d_v"],
                                 causal=False)
        x = positionwise_ffn(x, non_pad_mask, lp["ffn"])
    return x


def transformer_forward(params, src_seq, src_pos, tgt_seq, tgt_pos, cfg):
    tgt_seq, tgt_pos = tgt_seq[:, :-1], tgt_pos[:, :-1]
    enc_output = encoder(params, src_seq, src_pos, cfg)
    dec_output = decoder(params, tgt_seq, tgt_pos, src_seq, enc_output, cfg)
    d_model = cfg["d_model"]
    seq_logit = pallas_vocab_proj(dec_output.reshape(-1, d_model),
                                  params["word_prj"],
                                  scale=float(d_model) ** -0.5)
    return seq_logit  # (B * (Lt-1), n_tgt_vocab)


# ---------------------------------------------------------------------------
# Deterministic parameter init
# ---------------------------------------------------------------------------

def _ln_pack(d_model, bias=None):
    bias = jnp.zeros((d_model,), jnp.float32) if bias is None else bias
    return jnp.stack([bias,
                      jnp.ones((d_model,), jnp.float32),
                      jnp.zeros((d_model,), jnp.float32)], axis=0)   # (3, D)


def _init_mha(key, d_model, n_head, d_k, d_v):
    ks = jax.random.split(key, 4)
    inv_t = 1.0 / float(np.sqrt(d_k))
    # Fold the 1/sqrt(d_k) attention temperature into the Q projection.
    wq = (0.02 * jax.random.normal(ks[0], (d_model, n_head * d_k), jnp.float32)) * inv_t
    wk = 0.02 * jax.random.normal(ks[1], (d_model, n_head * d_k), jnp.float32)
    wv = 0.02 * jax.random.normal(ks[2], (d_model, n_head * d_v), jnp.float32)
    wfc = 0.02 * jax.random.normal(ks[3], (n_head * d_v, d_model), jnp.float32)
    return dict(
        wq=wq.astype(jnp.bfloat16),
        bq=jnp.zeros((1, n_head * d_k), jnp.float32),
        wkv=jnp.concatenate([wk, wv], axis=1).astype(jnp.bfloat16),
        bkv=jnp.zeros((1, n_head * (d_k + d_v)), jnp.float32),
        wfc=wfc.astype(jnp.bfloat16),
        fc_lnp=_ln_pack(d_model),                     # [fc bias; gamma; beta]
    )


def _init_ffn(key, d_model, d_inner):
    k1, k2 = jax.random.split(key)
    return dict(
        w1=(0.02 * jax.random.normal(k1, (d_model, d_inner), jnp.float32)
            ).astype(jnp.bfloat16),
        b1=jnp.zeros((1, d_inner), jnp.float32),
        w2=(0.02 * jax.random.normal(k2, (d_inner, d_model), jnp.float32)
            ).astype(jnp.bfloat16),
        lnp=_ln_pack(d_model),                        # [w2 bias; gamma; beta]
    )


def init_params(key, cfg):
    n_vocab = cfg["n_vocab"]
    d_model = cfg["d_model"]
    keys = jax.random.split(key, 1 + 5 * cfg["n_layers"])
    ki = iter(keys)

    # Shared embedding table (src == tgt == tied projection), PAD row zeroed.
    emb = 0.02 * jax.random.normal(next(ki), (n_vocab, d_model), jnp.float32)
    emb = emb.at[PAD].set(0.0)
    pos_table = get_sinusoid_encoding_table(cfg["len_max_seq"] + 1, d_model,
                                            padding_idx=0)

    enc_layers = []
    for _ in range(cfg["n_layers"]):
        enc_layers.append(dict(
            slf=_init_mha(next(ki), d_model, cfg["n_head"], cfg["d_k"], cfg["d_v"]),
            ffn=_init_ffn(next(ki), d_model, cfg["d_inner"]),
        ))
    dec_layers = []
    for _ in range(cfg["n_layers"]):
        dec_layers.append(dict(
            slf=_init_mha(next(ki), d_model, cfg["n_head"], cfg["d_k"], cfg["d_v"]),
            enc=_init_mha(next(ki), d_model, cfg["n_head"], cfg["d_k"], cfg["d_v"]),
            ffn=_init_ffn(next(ki), d_model, cfg["d_inner"]),
        ))

    return dict(word_emb=emb,                               # f32, for lookups
                word_prj=emb.T.astype(jnp.bfloat16),        # (d_model, n_vocab)
                pos_table=pos_table,
                enc_layers=enc_layers, dec_layers=dec_layers)


# ---------------------------------------------------------------------------
# Main
# ---------------------------------------------------------------------------

if __name__ == "__main__":
    cfg = dict(
        n_vocab=32,       # n_src_vocab == n_tgt_vocab (shared embedding)
        len_max_seq=8,
        d_model=32,       # == d_word_vec
        d_inner=64,
        n_layers=2,
        n_head=2,
        d_k=16,
        d_v=16,
    )
    B, L = 2, cfg["len_max_seq"]

    key = jax.random.PRNGKey(0)
    kp, ks, kt = jax.random.split(key, 3)
    params = init_params(kp, cfg)

    # Tokens in [1, n_vocab) so no PAD positions; positions are 1..L.
    src_seq = jax.random.randint(ks, (B, L), 1, cfg["n_vocab"], dtype=jnp.int32)
    tgt_seq = jax.random.randint(kt, (B, L), 1, cfg["n_vocab"], dtype=jnp.int32)
    src_pos = jnp.broadcast_to(jnp.arange(1, L + 1, dtype=jnp.int32)[None], (B, L))
    tgt_pos = jnp.broadcast_to(jnp.arange(1, L + 1, dtype=jnp.int32)[None], (B, L))

    fwd = jax.jit(functools.partial(transformer_forward, cfg=cfg))
    logits = fwd(params, src_seq, src_pos, tgt_seq, tgt_pos)
    logits = jax.block_until_ready(logits)

    assert logits.shape == (B * (L - 1), cfg["n_vocab"]), logits.shape
    assert bool(jnp.all(jnp.isfinite(logits)))
    print("KERNEL_OK")
</pallas_src>

<mosaic_0001>
module attributes {stable_mosaic.version = 11 : i64} {
  func.func @_linear_kernel(%arg0: i32, %arg1: memref<16x32xbf16, #tpu.memory_space<vmem>>, %arg2: memref<32x64xbf16, #tpu.memory_space<vmem>>, %arg3: memref<1x64xf32, #tpu.memory_space<vmem>>, %arg4: memref<16x64xbf16, #tpu.memory_space<vmem>>) attributes {dimension_semantics = [#tpu.dimension_semantics<parallel>], iteration_bounds = array<i64: 1>, scalar_prefetch = 0 : i64, scratch_operands = 0 : i64, tpu.core_type = #tpu.core_type<tc>, window_params = [{transform_indices = @transform_0, window_bounds = array<i64: 16, 32>}, {pipeline_mode = #tpu.pipeline_mode<synchronous>, transform_indices = @transform_1, window_bounds = array<i64: 32, 64>}, {pipeline_mode = #tpu.pipeline_mode<synchronous>, transform_indices = @transform_2, window_bounds = array<i64: 1, 64>}, {transform_indices = @transform_3, window_bounds = array<i64: 16, 64>}]} {
    %c0 = arith.constant 0 : index
    %c0_0 = arith.constant 0 : index
    %0 = vector.load %arg1[%c0, %c0_0] : memref<16x32xbf16, #tpu.memory_space<vmem>>, vector<16x32xbf16>
    %c0_1 = arith.constant 0 : index
    %c0_2 = arith.constant 0 : index
    %1 = vector.load %arg2[%c0_1, %c0_2] : memref<32x64xbf16, #tpu.memory_space<vmem>>, vector<32x64xbf16>
    %cst = arith.constant dense<0.000000e+00> : vector<16x64xf32>
    %2 = tpu.matmul %0, %1, %cst {dimension_numbers = #tpu.dot_dimension_numbers<[1], [0], [0], [1], [0, 0, 1, 1], [], []>} : vector<16x32xbf16>, vector<32x64xbf16>, vector<16x64xf32> -> vector<16x64xf32>
    %c0_3 = arith.constant 0 : index
    %c0_4 = arith.constant 0 : index
    %3 = vector.load %arg3[%c0_3, %c0_4] : memref<1x64xf32, #tpu.memory_space<vmem>>, vector<1x64xf32>
    %4 = vector.broadcast %3 : vector<1x64xf32> to vector<16x64xf32>
    %5 = arith.addf %2, %4 : vector<16x64xf32>
    %6 = arith.truncf %5 : vector<16x64xf32> to vector<16x64xbf16>
    %c0_5 = arith.constant 0 : index
    %c0_6 = arith.constant 0 : index
    %7 = vector.load %arg4[%c0_5, %c0_6] : memref<16x64xbf16, #tpu.memory_space<vmem>>, vector<16x64xbf16>
    tpu.vector_store %arg4[%c0_5, %c0_6], %6 {strides = array<i32>} : memref<16x64xbf16, #tpu.memory_space<vmem>>, vector<16x64xbf16>,
    return
  }
  func.func @transform_0(%arg0: i32) -> (i32, i32) {
    %c0_i32 = arith.constant 0 : i32
    %c0_i32_0 = arith.constant 0 : i32
    return %arg0, %c0_i32 : i32, i32
  }
  func.func @transform_1(%arg0: i32) -> (i32, i32) {
    %c0_i32 = arith.constant 0 : i32
    %c0_i32_0 = arith.constant 0 : i32
    %c0_i32_1 = arith.constant 0 : i32
    return %c0_i32, %c0_i32_0 : i32, i32
  }
  func.func @transform_2(%arg0: i32) -> (i32, i32) {
    %c0_i32 = arith.constant 0 : i32
    %c0_i32_0 = arith.constant 0 : i32
    %c0_i32_1 = arith.constant 0 : i32
    return %c0_i32, %c0_i32_0 : i32, i32
  }
  func.func @transform_3(%arg0: i32) -> (i32, i32) {
    %c0_i32 = arith.constant 0 : i32
    %c0_i32_0 = arith.constant 0 : i32
    return %arg0, %c0_i32 : i32, i32
  }
}

module attributes {stable_mosaic.version = 11 : i64} {
  func.func @_linear_kernel(%arg0: i32, %arg1: memref<16x32xbf16, #tpu.memory_space<vmem>>, %arg2: memref<32x32xbf16, #tpu.memory_space<vmem>>, %arg3: memref<1x32xf32, #tpu.memory_space<vmem>>, %arg4: memref<16x32xbf16, #tpu.memory_space<vmem>>) attributes {dimension_semantics = [#tpu.dimension_semantics<parallel>], iteration_bounds = array<i64: 1>, scalar_prefetch = 0 : i64, scratch_operands = 0 : i64, tpu.core_type = #tpu.core_type<tc>, window_params = [{transform_indices = @transform_0, window_bounds = array<i64: 16, 32>}, {pipeline_mode = #tpu.pipeline_mode<synchronous>, transform_indices = @transform_1, window_bounds = array<i64: 32, 32>}, {pipeline_mode = #tpu.pipeline_mode<synchronous>, transform_indices = @transform_2, window_bounds = array<i64: 1, 32>}, {transform_indices = @transform_3, window_bounds = array<i64: 16, 32>}]} {
    %c0 = arith.constant 0 : index
    %c0_0 = arith.constant 0 : index
    %0 = vector.load %arg1[%c0, %c0_0] : memref<16x32xbf16, #tpu.memory_space<vmem>>, vector<16x32xbf16>
    %c0_1 = arith.constant 0 : index
    %c0_2 = arith.constant 0 : index
    %1 = vector.load %arg2[%c0_1, %c0_2] : memref<32x32xbf16, #tpu.memory_space<vmem>>, vector<32x32xbf16>
    %cst = arith.constant dense<0.000000e+00> : vector<16x32xf32>
    %2 = tpu.matmul %0, %1, %cst {dimension_numbers = #tpu.dot_dimension_numbers<[1], [0], [0], [1], [0, 0, 1, 1], [], []>} : vector<16x32xbf16>, vector<32x32xbf16>, vector<16x32xf32> -> vector<16x32xf32>
    %c0_3 = arith.constant 0 : index
    %c0_4 = arith.constant 0 : index
    %3 = vector.load %arg3[%c0_3, %c0_4] : memref<1x32xf32, #tpu.memory_space<vmem>>, vector<1x32xf32>
    %4 = vector.broadcast %3 : vector<1x32xf32> to vector<16x32xf32>
    %5 = arith.addf %2, %4 : vector<16x32xf32>
    %6 = arith.truncf %5 : vector<16x32xf32> to vector<16x32xbf16>
    %c0_5 = arith.constant 0 : index
    %c0_6 = arith.constant 0 : index
    %7 = vector.load %arg4[%c0_5, %c0_6] : memref<16x32xbf16, #tpu.memory_space<vmem>>, vector<16x32xbf16>
    tpu.vector_store %arg4[%c0_5, %c0_6], %6 {strides = array<i32>} : memref<16x32xbf16, #tpu.memory_space<vmem>>, vector<16x32xbf16>,
    return
  }
  func.func @transform_0(%arg0: i32) -> (i32, i32) {
    %c0_i32 = arith.constant 0 : i32
    %c0_i32_0 = arith.constant 0 : i32
    return %arg0, %c0_i32 : i32, i32
  }
  func.func @transform_1(%arg0: i32) -> (i32, i32) {
    %c0_i32 = arith.constant 0 : i32
    %c0_i32_0 = arith.constant 0 : i32
    %c0_i32_1 = arith.constant 0 : i32
    return %c0_i32, %c0_i32_0 : i32, i32
  }
  func.func @transform_2(%arg0: i32) -> (i32, i32) {
    %c0_i32 = arith.constant 0 : i32
    %c0_i32_0 = arith.constant 0 : i32
    %c0_i32_1 = arith.constant 0 : i32
    return %c0_i32, %c0_i32_0 : i32, i32
  }
  func.func @transform_3(%arg0: i32) -> (i32, i32) {
    %c0_i32 = arith.constant 0 : i32
    %c0_i32_0 = arith.constant 0 : i32
    return %arg0, %c0_i32 : i32, i32
  }
}

module attributes {stable_mosaic.version = 11 : i64} {
  func.func @_flash_attn_kernel(%arg0: i32, %arg1: i32, %arg2: i32, %arg3: memref<1x1x8xi32, #tpu.memory_space<vmem>>, %arg4: memref<1x8x32xbf16, #tpu.memory_space<vmem>>, %arg5: memref<1x8x64xbf16, #tpu.memory_space<vmem>>, %arg6: memref<1x8x32xbf16, #tpu.memory_space<vmem>>, %arg7: memref<2x8x1xf32, #tpu.memory_space<vmem>>, %arg8: memref<2x8x1xf32, #tpu.memory_space<vmem>>, %arg9: memref<2x8x16xf32, #tpu.memory_space<vmem>>) attributes {dimension_semantics = [#tpu.dimension_semantics<parallel>, #tpu.dimension_semantics<parallel>, #tpu.dimension_semantics<arbitrary>], iteration_bounds = array<i64: 2, 1, 1>, scalar_prefetch = 0 : i64, scratch_operands = 3 : i64, tpu.core_type = #tpu.core_type<tc>, window_params = [{transform_indices = @transform_0, window_bounds = array<i64: 1, 1, 8>}, {transform_indices = @transform_1, window_bounds = array<i64: 1, 8, 32>}, {transform_indices = @transform_2, window_bounds = array<i64: 1, 8, 64>}, {transform_indices = @transform_3, window_bounds = array<i64: 1, 8, 32>}]} {
    %c0_i32 = arith.constant 0 : i32
    %0 = arith.cmpi eq, %arg2, %c0_i32 : i32
    %1 = arith.extui %0 : i1 to i32
    %c0_i32_0 = arith.constant 0 : i32
    %2 = arith.cmpi ne, %1, %c0_i32_0 : i32
    scf.if %2 {
      %cst_57 = arith.constant 0xFF800000 : f32
      %100 = vector.broadcast %cst_57 : f32 to vector<2x8x1xf32>
      %c0_58 = arith.constant 0 : index
      %c0_59 = arith.constant 0 : index
      %c0_60 = arith.constant 0 : index
      %101 = vector.load %arg7[%c0_58, %c0_59, %c0_60] : memref<2x8x1xf32, #tpu.memory_space<vmem>>, vector<2x8x1xf32>
      tpu.vector_store %arg7[%c0_58, %c0_59, %c0_60], %100 {strides = array<i32>} : memref<2x8x1xf32, #tpu.memory_space<vmem>>, vector<2x8x1xf32>,
      %cst_61 = arith.constant 0.000000e+00 : f32
      %102 = vector.broadcast %cst_61 : f32 to vector<2x8x1xf32>
      %c0_62 = arith.constant 0 : index
      %c0_63 = arith.constant 0 : index
      %c0_64 = arith.constant 0 : index
      %103 = vector.load %arg8[%c0_62, %c0_63, %c0_64] : memref<2x8x1xf32, #tpu.memory_space<vmem>>, vector<2x8x1xf32>
      tpu.vector_store %arg8[%c0_62, %c0_63, %c0_64], %102 {strides = array<i32>} : memref<2x8x1xf32, #tpu.memory_space<vmem>>, vector<2x8x1xf32>,
      %cst_65 = arith.constant 0.000000e+00 : f32
      %104 = vector.broadcast %cst_65 : f32 to vector<2x8x16xf32>
      %c0_66 = arith.constant 0 : index
      %c0_67 = arith.constant 0 : index
      %c0_68 = arith.constant 0 : index
      %105 = vector.load %arg9[%c0_66, %c0_67, %c0_68] : memref<2x8x16xf32, #tpu.memory_space<vmem>>, vector<2x8x16xf32>
      tpu.vector_store %arg9[%c0_66, %c0_67, %c0_68], %104 {strides = array<i32>} : memref<2x8x16xf32, #tpu.memory_space<vmem>>, vector<2x8x16xf32>,
    } else {
    }
    %c0 = arith.constant 0 : index
    %c0_1 = arith.constant 0 : index
    %c0_2 = arith.constant 0 : index
    %3 = vector.load %arg4[%c0, %c0_1, %c0_2] : memref<1x8x32xbf16, #tpu.memory_space<vmem>>, vector<1x8x32xbf16>
    %4 = vector.shape_cast %3 : vector<1x8x32xbf16> to vector<8x32xbf16>
    %c0_3 = arith.constant 0 : index
    %c0_4 = arith.constant 0 : index
    %c0_5 = arith.constant 0 : index
    %5 = vector.load %arg5[%c0_3, %c0_4, %c0_5] : memref<1x8x64xbf16, #tpu.memory_space<vmem>>, vector<1x8x64xbf16>
    %6 = vector.shape_cast %5 : vector<1x8x64xbf16> to vector<8x64xbf16>
    %7 = vector.extract_strided_slice %6 {offsets = [0, 0], sizes = [8, 32], strides = [1, 1]} : vector<8x64xbf16> to vector<8x32xbf16>
    %8 = vector.extract_strided_slice %6 {offsets = [0, 32], sizes = [8, 32], strides = [1, 1]} : vector<8x64xbf16> to vector<8x32xbf16>
    %c8_i32 = arith.constant 8 : i32
    %9 = arith.muli %arg2, %c8_i32 : i32
    %10 = tpu.iota {dimensions = array<i32: 1>} : vector<8x8xi32>
    %11 = vector.broadcast %9 : i32 to vector<8x8xi32>
    %12 = arith.addi %11, %10 : vector<8x8xi32>
    %c0_6 = arith.constant 0 : index
    %c0_7 = arith.constant 0 : index
    %c0_8 = arith.constant 0 : index
    %13 = vector.load %arg3[%c0_6, %c0_7, %c0_8] : memref<1x1x8xi32, #tpu.memory_space<vmem>>, vector<1x1x8xi32>
    %14 = vector.shape_cast %13 : vector<1x1x8xi32> to vector<1x8xi32>
    %c0_i32_9 = arith.constant 0 : i32
    %15 = vector.broadcast %c0_i32_9 : i32 to vector<1x8xi32>
    %16 = arith.cmpi sgt, %14, %15 : vector<1x8xi32>
    %c8_i32_10 = arith.constant 8 : i32
    %17 = vector.broadcast %c8_i32_10 : i32 to vector<8x8xi32>
    %18 = arith.cmpi sge, %12, %17 : vector<8x8xi32>
    %19 = vector.broadcast %16 : vector<1x8xi1> to vector<8x8xi1>
    %20 = arith.ori %19, %18 : vector<8x8xi1>
    %21 = vector.extract_strided_slice %4 {offsets = [0, 0], sizes = [8, 16], strides = [1, 1]} : vector<8x32xbf16> to vector<8x16xbf16>
    %22 = vector.extract_strided_slice %7 {offsets = [0, 0], sizes = [8, 16], strides = [1, 1]} : vector<8x32xbf16> to vector<8x16xbf16>
    %23 = vector.extract_strided_slice %8 {offsets = [0, 0], sizes = [8, 16], strides = [1, 1]} : vector<8x32xbf16> to vector<8x16xbf16>
    %cst = arith.constant dense<0.000000e+00> : vector<8x8xf32>
    %24 = tpu.matmul %21, %22, %cst {dimension_numbers = #tpu.dot_dimension_numbers<[1], [1], [0], [0], [0, 0, 1, 0], [], []>} : vector<8x16xbf16>, vector<8x16xbf16>, vector<8x8xf32> -> vector<8x8xf32>
    %cst_11 = arith.constant -1.000000e+09 : f32
    %25 = vector.broadcast %cst_11 : f32 to vector<8x8xf32>
    %26 = arith.select %20, %25, %24 : vector<8x8xi1>, vector<8x8xf32>
    %c0_12 = arith.constant 0 : index
    %c0_13 = arith.constant 0 : index
    %c0_14 = arith.constant 0 : index
    %27 = vector.load %arg7[%c0_12, %c0_13, %c0_14] : memref<2x8x1xf32, #tpu.memory_space<vmem>>, vector<1x8x1xf32>
    %28 = vector.shape_cast %27 : vector<1x8x1xf32> to vector<8x1xf32>
    %cst_15 = arith.constant dense<0xFF800000> : vector<8xf32>
    %29 = vector.multi_reduction <maximumf>, %26, %cst_15 [1] : vector<8x8xf32> to vector<8xf32>
    %30 = vector.shape_cast %29 : vector<8xf32> to vector<8x1xf32>
    %31 = arith.maximumf %28, %30 : vector<8x1xf32>
    %32 = arith.subf %28, %31 : vector<8x1xf32>
    %33 = math.exp %32 : vector<8x1xf32>
    %34 = vector.broadcast %31 : vector<8x1xf32> to vector<8x8xf32>
    %35 = arith.subf %26, %34 : vector<8x8xf32>
    %36 = math.exp %35 : vector<8x8xf32>
    %c0_16 = arith.constant 0 : index
    %c0_17 = arith.constant 0 : index
    %c0_18 = arith.constant 0 : index
    %37 = vector.load %arg8[%c0_16, %c0_17, %c0_18] : memref<2x8x1xf32, #tpu.memory_space<vmem>>, vector<1x8x1xf32>
    %38 = vector.shape_cast %37 : vector<1x8x1xf32> to vector<8x1xf32>
    %39 = arith.mulf %33, %38 : vector<8x1xf32>
    %cst_19 = arith.constant dense<0.000000e+00> : vector<8xf32>
    %40 = vector.multi_reduction <add>, %36, %cst_19 [1] : vector<8x8xf32> to vector<8xf32>
    %41 = vector.shape_cast %40 : vector<8xf32> to vector<8x1xf32>
    %42 = arith.addf %39, %41 : vector<8x1xf32>
    %c0_20 = arith.constant 0 : index
    %c0_21 = arith.constant 0 : index
    %c0_22 = arith.constant 0 : index
    %43 = vector.load %arg8[%c0_20, %c0_21, %c0_22] : memref<2x8x1xf32, #tpu.memory_space<vmem>>, vector<1x8x1xf32>
    %44 = vector.shape_cast %43 : vector<1x8x1xf32> to vector<8x1xf32>
    %45 = vector.shape_cast %42 : vector<8x1xf32> to vector<1x8x1xf32>
    tpu.vector_store %arg8[%c0_20, %c0_21, %c0_22], %45 {strides = array<i32>} : memref<2x8x1xf32, #tpu.memory_space<vmem>>, vector<1x8x1xf32>,
    %c0_23 = arith.constant 0 : index
    %c0_24 = arith.constant 0 : index
    %c0_25 = arith.constant 0 : index
    %46 = vector.load %arg9[%c0_23, %c0_24, %c0_25] : memref<2x8x16xf32, #tpu.memory_space<vmem>>, vector<1x8x16xf32>
    %47 = vector.shape_cast %46 : vector<1x8x16xf32> to vector<8x16xf32>
    %48 = vector.broadcast %33 : vector<8x1xf32> to vector<8x16xf32>
    %49 = arith.mulf %48, %47 : vector<8x16xf32>
    %50 = arith.truncf %36 : vector<8x8xf32> to vector<8x8xbf16>
    %cst_26 = arith.constant dense<0.000000e+00> : vector<8x16xf32>
    %51 = tpu.matmul %50, %23, %cst_26 {dimension_numbers = #tpu.dot_dimension_numbers<[1], [0], [0], [1], [0, 0, 1, 1], [], []>} : vector<8x8xbf16>, vector<8x16xbf16>, vector<8x16xf32> -> vector<8x16xf32>
    %52 = arith.addf %49, %51 : vector<8x16xf32>
    %c0_27 = arith.constant 0 : index
    %c0_28 = arith.constant 0 : index
    %c0_29 = arith.constant 0 : index
    %53 = vector.load %arg9[%c0_27, %c0_28, %c0_29] : memref<2x8x16xf32, #tpu.memory_space<vmem>>, vector<1x8x16xf32>
    %54 = vector.shape_cast %53 : vector<1x8x16xf32> to vector<8x16xf32>
    %55 = vector.shape_cast %52 : vector<8x16xf32> to vector<1x8x16xf32>
    tpu.vector_store %arg9[%c0_27, %c0_28, %c0_29], %55 {strides = array<i32>} : memref<2x8x16xf32, #tpu.memory_space<vmem>>, vector<1x8x16xf32>,
    %c0_30 = arith.constant 0 : index
    %c0_31 = arith.constant 0 : index
    %c0_32 = arith.constant 0 : index
    %56 = vector.load %arg7[%c0_30, %c0_31, %c0_32] : memref<2x8x1xf32, #tpu.memory_space<vmem>>, vector<1x8x1xf32>
    %57 = vector.shape_cast %56 : vector<1x8x1xf32> to vector<8x1xf32>
    %58 = vector.shape_cast %31 : vector<8x1xf32> to vector<1x8x1xf32>
    tpu.vector_store %arg7[%c0_30, %c0_31, %c0_32], %58 {strides = array<i32>} : memref<2x8x1xf32, #tpu.memory_space<vmem>>, vector<1x8x1xf32>,
    %59 = vector.extract_strided_slice %4 {offsets = [0, 16], sizes = [8, 16], strides = [1, 1]} : vector<8x32xbf16> to vector<8x16xbf16>
    %60 = vector.extract_strided_slice %7 {offsets = [0, 16], sizes = [8, 16], strides = [1, 1]} : vector<8x32xbf16> to vector<8x16xbf16>
    %61 = vector.extract_strided_slice %8 {offsets = [0, 16], sizes = [8, 16], strides = [1, 1]} : vector<8x32xbf16> to vector<8x16xbf16>
    %cst_33 = arith.constant dense<0.000000e+00> : vector<8x8xf32>
    %62 = tpu.matmul %59, %60, %cst_33 {dimension_numbers = #tpu.dot_dimension_numbers<[1], [1], [0], [0], [0, 0, 1, 0], [], []>} : vector<8x16xbf16>, vector<8x16xbf16>, vector<8x8xf32> -> vector<8x8xf32>
    %cst_34 = arith.constant -1.000000e+09 : f32
    %63 = vector.broadcast %cst_34 : f32 to vector<8x8xf32>
    %64 = arith.select %20, %63, %62 : vector<8x8xi1>, vector<8x8xf32>
    %c1 = arith.constant 1 : index
    %c0_35 = arith.constant 0 : index
    %c0_36 = arith.constant 0 : index
    %65 = vector.load %arg7[%c1, %c0_35, %c0_36] : memref<2x8x1xf32, #tpu.memory_space<vmem>>, vector<1x8x1xf32>
    %66 = vector.shape_cast %65 : vector<1x8x1xf32> to vector<8x1xf32>
    %cst_37 = arith.constant dense<0xFF800000> : vector<8xf32>
    %67 = vector.multi_reduction <maximumf>, %64, %cst_37 [1] : vector<8x8xf32> to vector<8xf32>
    %68 = vector.shape_cast %67 : vector<8xf32> to vector<8x1xf32>
    %69 = arith.maximumf %66, %68 : vector<8x1xf32>
    %70 = arith.subf %66, %69 : vector<8x1xf32>
    %71 = math.exp %70 : vector<8x1xf32>
    %72 = vector.broadcast %69 : vector<8x1xf32> to vector<8x8xf32>
    %73 = arith.subf %64, %72 : vector<8x8xf32>
    %74 = math.exp %73 : vector<8x8xf32>
    %c1_38 = arith.constant 1 : index
    %c0_39 = arith.constant 0 : index
    %c0_40 = arith.constant 0 : index
    %75 = vector.load %arg8[%c1_38, %c0_39, %c0_40] : memref<2x8x1xf32, #tpu.memory_space<vmem>>, vector<1x8x1xf32>
    %76 = vector.shape_cast %75 : vector<1x8x1xf32> to vector<8x1xf32>
    %77 = arith.mulf %71, %76 : vector<8x1xf32>
    %cst_41 = arith.constant dense<0.000000e+00> : vector<8xf32>
    %78 = vector.multi_reduction <add>, %74, %cst_41 [1] : vector<8x8xf32> to vector<8xf32>
    %79 = vector.shape_cast %78 : vector<8xf32> to vector<8x1xf32>
    %80 = arith.addf %77, %79 : vector<8x1xf32>
    %c1_42 = arith.constant 1 : index
    %c0_43 = arith.constant 0 : index
    %c0_44 = arith.constant 0 : index
    %81 = vector.load %arg8[%c1_42, %c0_43, %c0_44] : memref<2x8x1xf32, #tpu.memory_space<vmem>>, vector<1x8x1xf32>
    %82 = vector.shape_cast %81 : vector<1x8x1xf32> to vector<8x1xf32>
    %83 = vector.shape_cast %80 : vector<8x1xf32> to vector<1x8x1xf32>
    tpu.vector_store %arg8[%c1_42, %c0_43, %c0_44], %83 {strides = array<i32>} : memref<2x8x1xf32, #tpu.memory_space<vmem>>, vector<1x8x1xf32>,
    %c1_45 = arith.constant 1 : index
    %c0_46 = arith.constant 0 : index
    %c0_47 = arith.constant 0 : index
    %84 = vector.load %arg9[%c1_45, %c0_46, %c0_47] : memref<2x8x16xf32, #tpu.memory_space<vmem>>, vector<1x8x16xf32>
    %85 = vector.shape_cast %84 : vector<1x8x16xf32> to vector<8x16xf32>
    %86 = vector.broadcast %71 : vector<8x1xf32> to vector<8x16xf32>
    %87 = arith.mulf %86, %85 : vector<8x16xf32>
    %88 = arith.truncf %74 : vector<8x8xf32> to vector<8x8xbf16>
    %cst_48 = arith.constant dense<0.000000e+00> : vector<8x16xf32>
    %89 = tpu.matmul %88, %61, %cst_48 {dimension_numbers = #tpu.dot_dimension_numbers<[1], [0], [0], [1], [0, 0, 1, 1], [], []>} : vector<8x8xbf16>, vector<8x16xbf16>, vector<8x16xf32> -> vector<8x16xf32>
    %90 = arith.addf %87, %89 : vector<8x16xf32>
    %c1_49 = arith.constant 1 : index
    %c0_50 = arith.constant 0 : index
    %c0_51 = arith.constant 0 : index
    %91 = vector.load %arg9[%c1_49, %c0_50, %c0_51] : memref<2x8x16xf32, #tpu.memory_space<vmem>>, vector<1x8x16xf32>
    %92 = vector.shape_cast %91 : vector<1x8x16xf32> to vector<8x16xf32>
    %93 = vector.shape_cast %90 : vector<8x16xf32> to vector<1x8x16xf32>
    tpu.vector_store %arg9[%c1_49, %c0_50, %c0_51], %93 {strides = array<i32>} : memref<2x8x16xf32, #tpu.memory_space<vmem>>, vector<1x8x16xf32>,
    %c1_52 = arith.constant 1 : index
    %c0_53 = arith.constant 0 : index
    %c0_54 = arith.constant 0 : index
    %94 = vector.load %arg7[%c1_52, %c0_53, %c0_54] : memref<2x8x1xf32, #tpu.memory_space<vmem>>, vector<1x8x1xf32>
    %95 = vector.shape_cast %94 : vector<1x8x1xf32> to vector<8x1xf32>
    %96 = vector.shape_cast %69 : vector<8x1xf32> to vector<1x8x1xf32>
    tpu.vector_store %arg7[%c1_52, %c0_53, %c0_54], %96 {strides = array<i32>} : memref<2x8x1xf32, #tpu.memory_space<vmem>>, vector<1x8x1xf32>,
    %c0_i32_55 = arith.constant 0 : i32
    %97 = arith.cmpi eq, %arg2, %c0_i32_55 : i32
    %98 = arith.extui %97 : i1 to i32
    %c0_i32_56 = arith.constant 0 : i32
    %99 = arith.cmpi ne, %98, %c0_i32_56 : i32
    scf.if %99 {
      %c0_57 = arith.constant 0 : index
      %c0_58 = arith.constant 0 : index
      %c0_59 = arith.constant 0 : index
      %100 = vector.load %arg8[%c0_57, %c0_58, %c0_59] : memref<2x8x1xf32, #tpu.memory_space<vmem>>, vector<1x8x1xf32>
      %101 = vector.shape_cast %100 : vector<1x8x1xf32> to vector<8x1xf32>
      %102 = tpu.reciprocal %101 {approx = true} : vector<8x1xf32> -> vector<8x1xf32>
      %c0_60 = arith.constant 0 : index
      %c0_61 = arith.constant 0 : index
      %c0_62 = arith.constant 0 : index
      %103 = vector.load %arg9[%c0_60, %c0_61, %c0_62] : memref<2x8x16xf32, #tpu.memory_space<vmem>>, vector<1x8x16xf32>
      %104 = vector.shape_cast %103 : vector<1x8x16xf32> to vector<8x16xf32>
      %105 = vector.broadcast %102 : vector<8x1xf32> to vector<8x16xf32>
      %106 = arith.mulf %104, %105 : vector<8x16xf32>
      %107 = arith.truncf %106 : vector<8x16xf32> to vector<8x16xbf16>
      %c0_63 = arith.constant 0 : index
      %c0_64 = arith.constant 0 : index
      %c0_65 = arith.constant 0 : index
      %108 = vector.load %arg6[%c0_63, %c0_64, %c0_65] : memref<1x8x32xbf16, #tpu.memory_space<vmem>>, vector<1x8x16xbf16>
      %109 = vector.shape_cast %108 : vector<1x8x16xbf16> to vector<8x16xbf16>
      %110 = vector.shape_cast %107 : vector<8x16xbf16> to vector<1x8x16xbf16>
      tpu.vector_store %arg6[%c0_63, %c0_64, %c0_65], %110 {strides = array<i32>} : memref<1x8x32xbf16, #tpu.memory_space<vmem>>, vector<1x8x16xbf16>,
      %c1_66 = arith.constant 1 : index
      %c0_67 = arith.constant 0 : index
      %c0_68 = arith.constant 0 : index
      %111 = vector.load %arg8[%c1_66, %c0_67, %c0_68] : memref<2x8x1xf32, #tpu.memory_space<vmem>>, vector<1x8x1xf32>
      %112 = vector.shape_cast %111 : vector<1x8x1xf32> to vector<8x1xf32>
      %113 = tpu.reciprocal %112 {approx = true} : vector<8x1xf32> -> vector<8x1xf32>
      %c1_69 = arith.constant 1 : index
      %c0_70 = arith.constant 0 : index
      %c0_71 = arith.constant 0 : index
      %114 = vector.load %arg9[%c1_69, %c0_70, %c0_71] : memref<2x8x16xf32, #tpu.memory_space<vmem>>, vector<1x8x16xf32>
      %115 = vector.shape_cast %114 : vector<1x8x16xf32> to vector<8x16xf32>
      %116 = vector.broadcast %113 : vector<8x1xf32> to vector<8x16xf32>
      %117 = arith.mulf %115, %116 : vector<8x16xf32>
      %118 = arith.truncf %117 : vector<8x16xf32> to vector<8x16xbf16>
      %c0_72 = arith.constant 0 : index
      %c0_73 = arith.constant 0 : index
      %c16 = arith.constant 16 : index
      %119 = vector.load %arg6[%c0_72, %c0_73, %c16] : memref<1x8x32xbf16, #tpu.memory_space<vmem>>, vector<1x8x16xbf16>
      %120 = vector.shape_cast %119 : vector<1x8x16xbf16> to vector<8x16xbf16>
      %121 = vector.shape_cast %118 : vector<8x16xbf16> to vector<1x8x16xbf16>
      tpu.vector_store %arg6[%c0_72, %c0_73, %c16], %121 {strides = array<i32>} : memref<1x8x32xbf16, #tpu.memory_space<vmem>>, vector<1x8x16xbf16>,
    } else {
    }
    return
  }
  func.func @transform_0(%arg0: i32, %arg1: i32, %arg2: i32) -> (i32, i32, i32) {
    %c0_i32 = arith.constant 0 : i32
    %c0_i32_0 = arith.constant 0 : i32
    return %arg0, %c0_i32, %arg2 : i32, i32, i32
  }
  func.func @transform_1(%arg0: i32, %arg1: i32, %arg2: i32) -> (i32, i32, i32) {
    %c0_i32 = arith.constant 0 : i32
    %c0_i32_0 = arith.constant 0 : i32
    return %arg0, %arg1, %c0_i32 : i32, i32, i32
  }
  func.func @transform_2(%arg0: i32, %arg1: i32, %arg2: i32) -> (i32, i32, i32) {
    %c0_i32 = arith.constant 0 : i32
    %c0_i32_0 = arith.constant 0 : i32
    return %arg0, %arg2, %c0_i32 : i32, i32, i32
  }
  func.func @transform_3(%arg0: i32, %arg1: i32, %arg2: i32) -> (i32, i32, i32) {
    %c0_i32 = arith.constant 0 : i32
    %c0_i32_0 = arith.constant 0 : i32
    return %arg0, %arg1, %c0_i32 : i32, i32, i32
  }
}

module attributes {stable_mosaic.version = 11 : i64} {
  func.func @_proj_add_ln_kernel(%arg0: i32, %arg1: memref<16x32xbf16, #tpu.memory_space<vmem>>, %arg2: memref<16x32xbf16, #tpu.memory_space<vmem>>, %arg3: memref<16x1xf32, #tpu.memory_space<vmem>>, %arg4: memref<32x32xbf16, #tpu.memory_space<vmem>>, %arg5: memref<3x32xf32, #tpu.memory_space<vmem>>, %arg6: memref<16x32xbf16, #tpu.memory_space<vmem>>) attributes {dimension_semantics = [#tpu.dimension_semantics<parallel>], iteration_bounds = array<i64: 1>, scalar_prefetch = 0 : i64, scratch_operands = 0 : i64, tpu.core_type = #tpu.core_type<tc>, window_params = [{transform_indices = @transform_0, window_bounds = array<i64: 16, 32>}, {transform_indices = @transform_1, window_bounds = array<i64: 16, 32>}, {transform_indices = @transform_2, window_bounds = array<i64: 16, 1>}, {pipeline_mode = #tpu.pipeline_mode<synchronous>, transform_indices = @transform_3, window_bounds = array<i64: 32, 32>}, {pipeline_mode = #tpu.pipeline_mode<synchronous>, transform_indices = @transform_4, window_bounds = array<i64: 3, 32>}, {transform_indices = @transform_5, window_bounds = array<i64: 16, 32>}]} {
    %c0 = arith.constant 0 : index
    %c0_0 = arith.constant 0 : index
    %0 = vector.load %arg1[%c0, %c0_0] : memref<16x32xbf16, #tpu.memory_space<vmem>>, vector<16x32xbf16>
    %c0_1 = arith.constant 0 : index
    %c0_2 = arith.constant 0 : index
    %1 = vector.load %arg4[%c0_1, %c0_2] : memref<32x32xbf16, #tpu.memory_space<vmem>>, vector<32x32xbf16>
    %cst = arith.constant dense<0.000000e+00> : vector<16x32xf32>
    %2 = tpu.matmul %0, %1, %cst {dimension_numbers = #tpu.dot_dimension_numbers<[1], [0], [0], [1], [0, 0, 1, 1], [], []>} : vector<16x32xbf16>, vector<32x32xbf16>, vector<16x32xf32> -> vector<16x32xf32>
    %c0_3 = arith.constant 0 : index
    %c0_4 = arith.constant 0 : index
    %3 = vector.load %arg5[%c0_3, %c0_4] : memref<3x32xf32, #tpu.memory_space<vmem>>, vector<3x32xf32>
    %4 = vector.extract_strided_slice %3 {offsets = [0, 0], sizes = [1, 32], strides = [1, 1]} : vector<3x32xf32> to vector<1x32xf32>
    %5 = vector.broadcast %4 : vector<1x32xf32> to vector<16x32xf32>
    %6 = arith.addf %2, %5 : vector<16x32xf32>
    %c0_5 = arith.constant 0 : index
    %c0_6 = arith.constant 0 : index
    %7 = vector.load %arg2[%c0_5, %c0_6] : memref<16x32xbf16, #tpu.memory_space<vmem>>, vector<16x32xbf16>
    %8 = arith.extf %7 : vector<16x32xbf16> to vector<16x32xf32>
    %9 = arith.addf %6, %8 : vector<16x32xf32>
    %cst_7 = arith.constant dense<0.000000e+00> : vector<16xf32>
    %10 = vector.multi_reduction <add>, %9, %cst_7 [1] : vector<16x32xf32> to vector<16xf32>
    %11 = vector.shape_cast %10 : vector<16xf32> to vector<16x1xf32>
    %cst_8 = arith.constant 3.200000e+01 : f32
    %12 = vector.broadcast %cst_8 : f32 to vector<16x1xf32>
    %13 = arith.divf %11, %12 : vector<16x1xf32>
    %14 = vector.broadcast %13 : vector<16x1xf32> to vector<16x32xf32>
    %15 = arith.subf %9, %14 : vector<16x32xf32>
    %16 = arith.mulf %15, %15 : vector<16x32xf32>
    %cst_9 = arith.constant dense<0.000000e+00> : vector<16xf32>
    %17 = vector.multi_reduction <add>, %16, %cst_9 [1] : vector<16x32xf32> to vector<16xf32>
    %18 = vector.shape_cast %17 : vector<16xf32> to vector<16x1xf32>
    %cst_10 = arith.constant 3.200000e+01 : f32
    %19 = vector.broadcast %cst_10 : f32 to vector<16x1xf32>
    %20 = arith.divf %18, %19 : vector<16x1xf32>
    %21 = vector.broadcast %13 : vector<16x1xf32> to vector<16x32xf32>
    %22 = arith.subf %9, %21 : vector<16x32xf32>
    %cst_11 = arith.constant 9.99999974E-6 : f32
    %23 = vector.broadcast %cst_11 : f32 to vector<16x1xf32>
    %24 = arith.addf %20, %23 : vector<16x1xf32>
    %25 = math.rsqrt %24 : vector<16x1xf32>
    %26 = vector.broadcast %25 : vector<16x1xf32> to vector<16x32xf32>
    %27 = arith.mulf %22, %26 : vector<16x32xf32>
    %28 = vector.extract_strided_slice %3 {offsets = [1, 0], sizes = [1, 32], strides = [1, 1]} : vector<3x32xf32> to vector<1x32xf32>
    %29 = vector.broadcast %28 : vector<1x32xf32> to vector<16x32xf32>
    %30 = arith.mulf %27, %29 : vector<16x32xf32>
    %31 = vector.extract_strided_slice %3 {offsets = [2, 0], sizes = [1, 32], strides = [1, 1]} : vector<3x32xf32> to vector<1x32xf32>
    %32 = vector.broadcast %31 : vector<1x32xf32> to vector<16x32xf32>
    %33 = arith.addf %30, %32 : vector<16x32xf32>
    %c0_12 = arith.constant 0 : index
    %c0_13 = arith.constant 0 : index
    %34 = vector.load %arg3[%c0_12, %c0_13] : memref<16x1xf32, #tpu.memory_space<vmem>>, vector<16x1xf32>
    %35 = vector.broadcast %34 : vector<16x1xf32> to vector<16x32xf32>
    %36 = arith.mulf %33, %35 : vector<16x32xf32>
    %37 = arith.truncf %36 : vector<16x32xf32> to vector<16x32xbf16>
    %c0_14 = arith.constant 0 : index
    %c0_15 = arith.constant 0 : index
    %38 = vector.load %arg6[%c0_14, %c0_15] : memref<16x32xbf16, #tpu.memory_space<vmem>>, vector<16x32xbf16>
    tpu.vector_store %arg6[%c0_14, %c0_15], %37 {strides = array<i32>} : memref<16x32xbf16, #tpu.memory_space<vmem>>, vector<16x32xbf16>,
    return
  }
  func.func @transform_0(%arg0: i32) -> (i32, i32) {
    %c0_i32 = arith.constant 0 : i32
    %c0_i32_0 = arith.constant 0 : i32
    return %arg0, %c0_i32 : i32, i32
  }
  func.func @transform_1(%arg0: i32) -> (i32, i32) {
    %c0_i32 = arith.constant 0 : i32
    %c0_i32_0 = arith.constant 0 : i32
    return %arg0, %c0_i32 : i32, i32
  }
  func.func @transform_2(%arg0: i32) -> (i32, i32) {
    %c0_i32 = arith.constant 0 : i32
    %c0_i32_0 = arith.constant 0 : i32
    return %arg0, %c0_i32 : i32, i32
  }
  func.func @transform_3(%arg0: i32) -> (i32, i32) {
    %c0_i32 = arith.constant 0 : i32
    %c0_i32_0 = arith.constant 0 : i32
    %c0_i32_1 = arith.constant 0 : i32
    return %c0_i32, %c0_i32_0 : i32, i32
  }
  func.func @transform_4(%arg0: i32) -> (i32, i32) {
    %c0_i32 = arith.constant 0 : i32
    %c0_i32_0 = arith.constant 0 : i32
    %c0_i32_1 = arith.constant 0 : i32
    return %c0_i32, %c0_i32_0 : i32, i32
  }
  func.func @transform_5(%arg0: i32) -> (i32, i32) {
    %c0_i32 = arith.constant 0 : i32
    %c0_i32_0 = arith.constant 0 : i32
    return %arg0, %c0_i32 : i32, i32
  }
}

module attributes {stable_mosaic.version = 11 : i64} {
  func.func @_ffn_add_ln_kernel(%arg0: i32, %arg1: i32, %arg2: memref<16x32xbf16, #tpu.memory_space<vmem>>, %arg3: memref<16x1xf32, #tpu.memory_space<vmem>>, %arg4: memref<32x64xbf16, #tpu.memory_space<vmem>>, %arg5: memref<1x64xf32, #tpu.memory_space<vmem>>, %arg6: memref<64x32xbf16, #tpu.memory_space<vmem>>, %arg7: memref<3x32xf32, #tpu.memory_space<vmem>>, %arg8: memref<16x32xbf16, #tpu.memory_space<vmem>>, %arg9: memref<16x32xf32, #tpu.memory_space<vmem>>) attributes {dimension_semantics = [#tpu.dimension_semantics<parallel>, #tpu.dimension_semantics<arbitrary>], iteration_bounds = array<i64: 1, 1>, scalar_prefetch = 0 : i64, scratch_operands = 1 : i64, tpu.core_type = #tpu.core_type<tc>, window_params = [{transform_indices = @transform_0, window_bounds = array<i64: 16, 32>}, {transform_indices = @transform_1, window_bounds = array<i64: 16, 1>}, {transform_indices = @transform_2, window_bounds = array<i64: 32, 64>}, {transform_indices = @transform_3, window_bounds = array<i64: 1, 64>}, {transform_indices = @transform_4, window_bounds = array<i64: 64, 32>}, {pipeline_mode = #tpu.pipeline_mode<synchronous>, transform_indices = @transform_5, window_bounds = array<i64: 3, 32>}, {transform_indices = @transform_6, window_bounds = array<i64: 16, 32>}]} {
    %c0_i32 = arith.constant 0 : i32
    %0 = arith.cmpi eq, %arg1, %c0_i32 : i32
    %1 = arith.extui %0 : i1 to i32
    %c0_i32_0 = arith.constant 0 : i32
    %2 = arith.cmpi ne, %1, %c0_i32_0 : i32
    scf.if %2 {
      %cst_16 = arith.constant 0.000000e+00 : f32
      %20 = vector.broadcast %cst_16 : f32 to vector<16x32xf32>
      %c0_17 = arith.constant 0 : index
      %c0_18 = arith.constant 0 : index
      %21 = vector.load %arg9[%c0_17, %c0_18] : memref<16x32xf32, #tpu.memory_space<vmem>>, vector<16x32xf32>
      tpu.vector_store %arg9[%c0_17, %c0_18], %20 {strides = array<i32>} : memref<16x32xf32, #tpu.memory_space<vmem>>, vector<16x32xf32>,
    } else {
    }
    %c0 = arith.constant 0 : index
    %c0_1 = arith.constant 0 : index
    %3 = vector.load %arg2[%c0, %c0_1] : memref<16x32xbf16, #tpu.memory_space<vmem>>, vector<16x32xbf16>
    %c0_2 = arith.constant 0 : index
    %c0_3 = arith.constant 0 : index
    %4 = vector.load %arg4[%c0_2, %c0_3] : memref<32x64xbf16, #tpu.memory_space<vmem>>, vector<32x64xbf16>
    %cst = arith.constant dense<0.000000e+00> : vector<16x64xf32>
    %5 = tpu.matmul %3, %4, %cst {dimension_numbers = #tpu.dot_dimension_numbers<[1], [0], [0], [1], [0, 0, 1, 1], [], []>} : vector<16x32xbf16>, vector<32x64xbf16>, vector<16x64xf32> -> vector<16x64xf32>
    %c0_4 = arith.constant 0 : index
    %c0_5 = arith.constant 0 : index
    %6 = vector.load %arg5[%c0_4, %c0_5] : memref<1x64xf32, #tpu.memory_space<vmem>>, vector<1x64xf32>
    %7 = vector.broadcast %6 : vector<1x64xf32> to vector<16x64xf32>
    %8 = arith.addf %5, %7 : vector<16x64xf32>
    %cst_6 = arith.constant 0.000000e+00 : f32
    %9 = vector.broadcast %cst_6 : f32 to vector<16x64xf32>
    %10 = arith.maximumf %8, %9 : vector<16x64xf32>
    %c0_7 = arith.constant 0 : index
    %c0_8 = arith.constant 0 : index
    %11 = vector.load %arg6[%c0_7, %c0_8] : memref<64x32xbf16, #tpu.memory_space<vmem>>, vector<64x32xbf16>
    %c0_9 = arith.constant 0 : index
    %c0_10 = arith.constant 0 : index
    %12 = vector.load %arg9[%c0_9, %c0_10] : memref<16x32xf32, #tpu.memory_space<vmem>>, vector<16x32xf32>
    %13 = arith.truncf %10 : vector<16x64xf32> to vector<16x64xbf16>
    %cst_11 = arith.constant dense<0.000000e+00> : vector<16x32xf32>
    %14 = tpu.matmul %13, %11, %cst_11 {dimension_numbers = #tpu.dot_dimension_numbers<[1], [0], [0], [1], [0, 0, 1, 1], [], []>} : vector<16x64xbf16>, vector<64x32xbf16>, vector<16x32xf32> -> vector<16x32xf32>
    %15 = arith.addf %12, %14 : vector<16x32xf32>
    %c0_12 = arith.constant 0 : index
    %c0_13 = arith.constant 0 : index
    %16 = vector.load %arg9[%c0_12, %c0_13] : memref<16x32xf32, #tpu.memory_space<vmem>>, vector<16x32xf32>
    tpu.vector_store %arg9[%c0_12, %c0_13], %15 {strides = array<i32>} : memref<16x32xf32, #tpu.memory_space<vmem>>, vector<16x32xf32>,
    %c0_i32_14 = arith.constant 0 : i32
    %17 = arith.cmpi eq, %arg1, %c0_i32_14 : i32
    %18 = arith.extui %17 : i1 to i32
    %c0_i32_15 = arith.constant 0 : i32
    %19 = arith.cmpi ne, %18, %c0_i32_15 : i32
    scf.if %19 {
      %c0_16 = arith.constant 0 : index
      %c0_17 = arith.constant 0 : index
      %20 = vector.load %arg7[%c0_16, %c0_17] : memref<3x32xf32, #tpu.memory_space<vmem>>, vector<3x32xf32>
      %c0_18 = arith.constant 0 : index
      %c0_19 = arith.constant 0 : index
      %21 = vector.load %arg9[%c0_18, %c0_19] : memref<16x32xf32, #tpu.memory_space<vmem>>, vector<16x32xf32>
      %22 = vector.extract_strided_slice %20 {offsets = [0, 0], sizes = [1, 32], strides = [1, 1]} : vector<3x32xf32> to vector<1x32xf32>
      %23 = vector.broadcast %22 : vector<1x32xf32> to vector<16x32xf32>
      %24 = arith.addf %21, %23 : vector<16x32xf32>
      %25 = arith.extf %3 : vector<16x32xbf16> to vector<16x32xf32>
      %26 = arith.addf %24, %25 : vector<16x32xf32>
      %cst_20 = arith.constant dense<0.000000e+00> : vector<16xf32>
      %27 = vector.multi_reduction <add>, %26, %cst_20 [1] : vector<16x32xf32> to vector<16xf32>
      %28 = vector.shape_cast %27 : vector<16xf32> to vector<16x1xf32>
      %cst_21 = arith.constant 3.200000e+01 : f32
      %29 = vector.broadcast %cst_21 : f32 to vector<16x1xf32>
      %30 = arith.divf %28, %29 : vector<16x1xf32>
      %31 = vector.broadcast %30 : vector<16x1xf32> to vector<16x32xf32>
      %32 = arith.subf %26, %31 : vector<16x32xf32>
      %33 = arith.mulf %32, %32 : vector<16x32xf32>
      %cst_22 = arith.constant dense<0.000000e+00> : vector<16xf32>
      %34 = vector.multi_reduction <add>, %33, %cst_22 [1] : vector<16x32xf32> to vector<16xf32>
      %35 = vector.shape_cast %34 : vector<16xf32> to vector<16x1xf32>
      %cst_23 = arith.constant 3.200000e+01 : f32
      %36 = vector.broadcast %cst_23 : f32 to vector<16x1xf32>
      %37 = arith.divf %35, %36 : vector<16x1xf32>
      %38 = vector.broadcast %30 : vector<16x1xf32> to vector<16x32xf32>
      %39 = arith.subf %26, %38 : vector<16x32xf32>
      %cst_24 = arith.constant 9.99999974E-6 : f32
      %40 = vector.broadcast %cst_24 : f32 to vector<16x1xf32>
      %41 = arith.addf %37, %40 : vector<16x1xf32>
      %42 = math.rsqrt %41 : vector<16x1xf32>
      %43 = vector.broadcast %42 : vector<16x1xf32> to vector<16x32xf32>
      %44 = arith.mulf %39, %43 : vector<16x32xf32>
      %45 = vector.extract_strided_slice %20 {offsets = [1, 0], sizes = [1, 32], strides = [1, 1]} : vector<3x32xf32> to vector<1x32xf32>
      %46 = vector.broadcast %45 : vector<1x32xf32> to vector<16x32xf32>
      %47 = arith.mulf %44, %46 : vector<16x32xf32>
      %48 = vector.extract_strided_slice %20 {offsets = [2, 0], sizes = [1, 32], strides = [1, 1]} : vector<3x32xf32> to vector<1x32xf32>
      %49 = vector.broadcast %48 : vector<1x32xf32> to vector<16x32xf32>
      %50 = arith.addf %47, %49 : vector<16x32xf32>
      %c0_25 = arith.constant 0 : index
      %c0_26 = arith.constant 0 : index
      %51 = vector.load %arg3[%c0_25, %c0_26] : memref<16x1xf32, #tpu.memory_space<vmem>>, vector<16x1xf32>
      %52 = vector.broadcast %51 : vector<16x1xf32> to vector<16x32xf32>
      %53 = arith.mulf %50, %52 : vector<16x32xf32>
      %54 = arith.truncf %53 : vector<16x32xf32> to vector<16x32xbf16>
      %c0_27 = arith.constant 0 : index
      %c0_28 = arith.constant 0 : index
      %55 = vector.load %arg8[%c0_27, %c0_28] : memref<16x32xbf16, #tpu.memory_space<vmem>>, vector<16x32xbf16>
      tpu.vector_store %arg8[%c0_27, %c0_28], %54 {strides = array<i32>} : memref<16x32xbf16, #tpu.memory_space<vmem>>, vector<16x32xbf16>,
    } else {
    }
    return
  }
  func.func @transform_0(%arg0: i32, %arg1: i32) -> (i32, i32) {
    %c0_i32 = arith.constant 0 : i32
    %c0_i32_0 = arith.constant 0 : i32
    return %arg0, %c0_i32 : i32, i32
  }
  func.func @transform_1(%arg0: i32, %arg1: i32) -> (i32, i32) {
    %c0_i32 = arith.constant 0 : i32
    %c0_i32_0 = arith.constant 0 : i32
    return %arg0, %c0_i32 : i32, i32
  }
  func.func @transform_2(%arg0: i32, %arg1: i32) -> (i32, i32) {
    %c0_i32 = arith.constant 0 : i32
    %c0_i32_0 = arith.constant 0 : i32
    return %c0_i32, %arg1 : i32, i32
  }
  func.func @transform_3(%arg0: i32, %arg1: i32) -> (i32, i32) {
    %c0_i32 = arith.constant 0 : i32
    %c0_i32_0 = arith.constant 0 : i32
    return %c0_i32, %arg1 : i32, i32
  }
  func.func @transform_4(%arg0: i32, %arg1: i32) -> (i32, i32) {
    %c0_i32 = arith.constant 0 : i32
    %c0_i32_0 = arith.constant 0 : i32
    return %arg1, %c0_i32 : i32, i32
  }
  func.func @transform_5(%arg0: i32, %arg1: i32) -> (i32, i32) {
    %c0_i32 = arith.constant 0 : i32
    %c0_i32_0 = arith.constant 0 : i32
    %c0_i32_1 = arith.constant 0 : i32
    return %c0_i32, %c0_i32_0 : i32, i32
  }
  func.func @transform_6(%arg0: i32, %arg1: i32) -> (i32, i32) {
    %c0_i32 = arith.constant 0 : i32
    %c0_i32_0 = arith.constant 0 : i32
    return %arg0, %c0_i32 : i32, i32
  }
}

module attributes {stable_mosaic.version = 11 : i64} {
  func.func @_linear_kernel(%arg0: i32, %arg1: memref<14x32xbf16, #tpu.memory_space<vmem>>, %arg2: memref<32x32xbf16, #tpu.memory_space<vmem>>, %arg3: memref<1x32xf32, #tpu.memory_space<vmem>>, %arg4: memref<14x32xbf16, #tpu.memory_space<vmem>>) attributes {dimension_semantics = [#tpu.dimension_semantics<parallel>], iteration_bounds = array<i64: 1>, scalar_prefetch = 0 : i64, scratch_operands = 0 : i64, tpu.core_type = #tpu.core_type<tc>, window_params = [{transform_indices = @transform_0, window_bounds = array<i64: 14, 32>}, {pipeline_mode = #tpu.pipeline_mode<synchronous>, transform_indices = @transform_1, window_bounds = array<i64: 32, 32>}, {pipeline_mode = #tpu.pipeline_mode<synchronous>, transform_indices = @transform_2, window_bounds = array<i64: 1, 32>}, {transform_indices = @transform_3, window_bounds = array<i64: 14, 32>}]} {
    %c0 = arith.constant 0 : index
    %c0_0 = arith.constant 0 : index
    %0 = vector.load %arg1[%c0, %c0_0] : memref<14x32xbf16, #tpu.memory_space<vmem>>, vector<14x32xbf16>
    %c0_1 = arith.constant 0 : index
    %c0_2 = arith.constant 0 : index
    %1 = vector.load %arg2[%c0_1, %c0_2] : memref<32x32xbf16, #tpu.memory_space<vmem>>, vector<32x32xbf16>
    %cst = arith.constant dense<0.000000e+00> : vector<14x32xf32>
    %2 = tpu.matmul %0, %1, %cst {dimension_numbers = #tpu.dot_dimension_numbers<[1], [0], [0], [1], [0, 0, 1, 1], [], []>} : vector<14x32xbf16>, vector<32x32xbf16>, vector<14x32xf32> -> vector<14x32xf32>
    %c0_3 = arith.constant 0 : index
    %c0_4 = arith.constant 0 : index
    %3 = vector.load %arg3[%c0_3, %c0_4] : memref<1x32xf32, #tpu.memory_space<vmem>>, vector<1x32xf32>
    %4 = vector.broadcast %3 : vector<1x32xf32> to vector<14x32xf32>
    %5 = arith.addf %2, %4 : vector<14x32xf32>
    %6 = arith.truncf %5 : vector<14x32xf32> to vector<14x32xbf16>
    %c0_5 = arith.constant 0 : index
    %c0_6 = arith.constant 0 : index
    %7 = vector.load %arg4[%c0_5, %c0_6] : memref<14x32xbf16, #tpu.memory_space<vmem>>, vector<14x32xbf16>
    tpu.vector_store %arg4[%c0_5, %c0_6], %6 {strides = array<i32>} : memref<14x32xbf16, #tpu.memory_space<vmem>>, vector<14x32xbf16>,
    return
  }
  func.func @transform_0(%arg0: i32) -> (i32, i32) {
    %c0_i32 = arith.constant 0 : i32
    %c0_i32_0 = arith.constant 0 : i32
    return %arg0, %c0_i32 : i32, i32
  }
  func.func @transform_1(%arg0: i32) -> (i32, i32) {
    %c0_i32 = arith.constant 0 : i32
    %c0_i32_0 = arith.constant 0 : i32
    %c0_i32_1 = arith.constant 0 : i32
    return %c0_i32, %c0_i32_0 : i32, i32
  }
  func.func @transform_2(%arg0: i32) -> (i32, i32) {
    %c0_i32 = arith.constant 0 : i32
    %c0_i32_0 = arith.constant 0 : i32
    %c0_i32_1 = arith.constant 0 : i32
    return %c0_i32, %c0_i32_0 : i32, i32
  }
  func.func @transform_3(%arg0: i32) -> (i32, i32) {
    %c0_i32 = arith.constant 0 : i32
    %c0_i32_0 = arith.constant 0 : i32
    return %arg0, %c0_i32 : i32, i32
  }
}

module attributes {stable_mosaic.version = 11 : i64} {
  func.func @_linear_kernel(%arg0: i32, %arg1: memref<14x32xbf16, #tpu.memory_space<vmem>>, %arg2: memref<32x64xbf16, #tpu.memory_space<vmem>>, %arg3: memref<1x64xf32, #tpu.memory_space<vmem>>, %arg4: memref<14x64xbf16, #tpu.memory_space<vmem>>) attributes {dimension_semantics = [#tpu.dimension_semantics<parallel>], iteration_bounds = array<i64: 1>, scalar_prefetch = 0 : i64, scratch_operands = 0 : i64, tpu.core_type = #tpu.core_type<tc>, window_params = [{transform_indices = @transform_0, window_bounds = array<i64: 14, 32>}, {pipeline_mode = #tpu.pipeline_mode<synchronous>, transform_indices = @transform_1, window_bounds = array<i64: 32, 64>}, {pipeline_mode = #tpu.pipeline_mode<synchronous>, transform_indices = @transform_2, window_bounds = array<i64: 1, 64>}, {transform_indices = @transform_3, window_bounds = array<i64: 14, 64>}]} {
    %c0 = arith.constant 0 : index
    %c0_0 = arith.constant 0 : index
    %0 = vector.load %arg1[%c0, %c0_0] : memref<14x32xbf16, #tpu.memory_space<vmem>>, vector<14x32xbf16>
    %c0_1 = arith.constant 0 : index
    %c0_2 = arith.constant 0 : index
    %1 = vector.load %arg2[%c0_1, %c0_2] : memref<32x64xbf16, #tpu.memory_space<vmem>>, vector<32x64xbf16>
    %cst = arith.constant dense<0.000000e+00> : vector<14x64xf32>
    %2 = tpu.matmul %0, %1, %cst {dimension_numbers = #tpu.dot_dimension_numbers<[1], [0], [0], [1], [0, 0, 1, 1], [], []>} : vector<14x32xbf16>, vector<32x64xbf16>, vector<14x64xf32> -> vector<14x64xf32>
    %c0_3 = arith.constant 0 : index
    %c0_4 = arith.constant 0 : index
    %3 = vector.load %arg3[%c0_3, %c0_4] : memref<1x64xf32, #tpu.memory_space<vmem>>, vector<1x64xf32>
    %4 = vector.broadcast %3 : vector<1x64xf32> to vector<14x64xf32>
    %5 = arith.addf %2, %4 : vector<14x64xf32>
    %6 = arith.truncf %5 : vector<14x64xf32> to vector<14x64xbf16>
    %c0_5 = arith.constant 0 : index
    %c0_6 = arith.constant 0 : index
    %7 = vector.load %arg4[%c0_5, %c0_6] : memref<14x64xbf16, #tpu.memory_space<vmem>>, vector<14x64xbf16>
    tpu.vector_store %arg4[%c0_5, %c0_6], %6 {strides = array<i32>} : memref<14x64xbf16, #tpu.memory_space<vmem>>, vector<14x64xbf16>,
    return
  }
  func.func @transform_0(%arg0: i32) -> (i32, i32) {
    %c0_i32 = arith.constant 0 : i32
    %c0_i32_0 = arith.constant 0 : i32
    return %arg0, %c0_i32 : i32, i32
  }
  func.func @transform_1(%arg0: i32) -> (i32, i32) {
    %c0_i32 = arith.constant 0 : i32
    %c0_i32_0 = arith.constant 0 : i32
    %c0_i32_1 = arith.constant 0 : i32
    return %c0_i32, %c0_i32_0 : i32, i32
  }
  func.func @transform_2(%arg0: i32) -> (i32, i32) {
    %c0_i32 = arith.constant 0 : i32
    %c0_i32_0 = arith.constant 0 : i32
    %c0_i32_1 = arith.constant 0 : i32
    return %c0_i32, %c0_i32_0 : i32, i32
  }
  func.func @transform_3(%arg0: i32) -> (i32, i32) {
    %c0_i32 = arith.constant 0 : i32
    %c0_i32_0 = arith.constant 0 : i32
    return %arg0, %c0_i32 : i32, i32
  }
}

module attributes {stable_mosaic.version = 11 : i64} {
  func.func @_flash_attn_kernel(%arg0: i32, %arg1: i32, %arg2: i32, %arg3: memref<1x1x7xi32, #tpu.memory_space<vmem>>, %arg4: memref<1x7x32xbf16, #tpu.memory_space<vmem>>, %arg5: memref<1x7x64xbf16, #tpu.memory_space<vmem>>, %arg6: memref<1x7x32xbf16, #tpu.memory_space<vmem>>, %arg7: memref<2x7x1xf32, #tpu.memory_space<vmem>>, %arg8: memref<2x7x1xf32, #tpu.memory_space<vmem>>, %arg9: memref<2x7x16xf32, #tpu.memory_space<vmem>>) attributes {dimension_semantics = [#tpu.dimension_semantics<parallel>, #tpu.dimension_semantics<parallel>, #tpu.dimension_semantics<arbitrary>], iteration_bounds = array<i64: 2, 1, 1>, scalar_prefetch = 0 : i64, scratch_operands = 3 : i64, tpu.core_type = #tpu.core_type<tc>, window_params = [{transform_indices = @transform_0, window_bounds = array<i64: 1, 1, 7>}, {transform_indices = @transform_1, window_bounds = array<i64: 1, 7, 32>}, {transform_indices = @transform_2, window_bounds = array<i64: 1, 7, 64>}, {transform_indices = @transform_3, window_bounds = array<i64: 1, 7, 32>}]} {
    %c0_i32 = arith.constant 0 : i32
    %0 = arith.cmpi eq, %arg2, %c0_i32 : i32
    %1 = arith.extui %0 : i1 to i32
    %c0_i32_0 = arith.constant 0 : i32
    %2 = arith.cmpi ne, %1, %c0_i32_0 : i32
    scf.if %2 {
      %cst_58 = arith.constant 0xFF800000 : f32
      %106 = vector.broadcast %cst_58 : f32 to vector<2x7x1xf32>
      %c0_59 = arith.constant 0 : index
      %c0_60 = arith.constant 0 : index
      %c0_61 = arith.constant 0 : index
      %107 = vector.load %arg7[%c0_59, %c0_60, %c0_61] : memref<2x7x1xf32, #tpu.memory_space<vmem>>, vector<2x7x1xf32>
      tpu.vector_store %arg7[%c0_59, %c0_60, %c0_61], %106 {strides = array<i32>} : memref<2x7x1xf32, #tpu.memory_space<vmem>>, vector<2x7x1xf32>,
      %cst_62 = arith.constant 0.000000e+00 : f32
      %108 = vector.broadcast %cst_62 : f32 to vector<2x7x1xf32>
      %c0_63 = arith.constant 0 : index
      %c0_64 = arith.constant 0 : index
      %c0_65 = arith.constant 0 : index
      %109 = vector.load %arg8[%c0_63, %c0_64, %c0_65] : memref<2x7x1xf32, #tpu.memory_space<vmem>>, vector<2x7x1xf32>
      tpu.vector_store %arg8[%c0_63, %c0_64, %c0_65], %108 {strides = array<i32>} : memref<2x7x1xf32, #tpu.memory_space<vmem>>, vector<2x7x1xf32>,
      %cst_66 = arith.constant 0.000000e+00 : f32
      %110 = vector.broadcast %cst_66 : f32 to vector<2x7x16xf32>
      %c0_67 = arith.constant 0 : index
      %c0_68 = arith.constant 0 : index
      %c0_69 = arith.constant 0 : index
      %111 = vector.load %arg9[%c0_67, %c0_68, %c0_69] : memref<2x7x16xf32, #tpu.memory_space<vmem>>, vector<2x7x16xf32>
      tpu.vector_store %arg9[%c0_67, %c0_68, %c0_69], %110 {strides = array<i32>} : memref<2x7x16xf32, #tpu.memory_space<vmem>>, vector<2x7x16xf32>,
    } else {
    }
    %c0 = arith.constant 0 : index
    %c0_1 = arith.constant 0 : index
    %c0_2 = arith.constant 0 : index
    %3 = vector.load %arg4[%c0, %c0_1, %c0_2] : memref<1x7x32xbf16, #tpu.memory_space<vmem>>, vector<1x7x32xbf16>
    %4 = vector.shape_cast %3 : vector<1x7x32xbf16> to vector<7x32xbf16>
    %c0_3 = arith.constant 0 : index
    %c0_4 = arith.constant 0 : index
    %c0_5 = arith.constant 0 : index
    %5 = vector.load %arg5[%c0_3, %c0_4, %c0_5] : memref<1x7x64xbf16, #tpu.memory_space<vmem>>, vector<1x7x64xbf16>
    %6 = vector.shape_cast %5 : vector<1x7x64xbf16> to vector<7x64xbf16>
    %7 = vector.extract_strided_slice %6 {offsets = [0, 0], sizes = [7, 32], strides = [1, 1]} : vector<7x64xbf16> to vector<7x32xbf16>
    %8 = vector.extract_strided_slice %6 {offsets = [0, 32], sizes = [7, 32], strides = [1, 1]} : vector<7x64xbf16> to vector<7x32xbf16>
    %c7_i32 = arith.constant 7 : i32
    %9 = arith.muli %arg2, %c7_i32 : i32
    %10 = tpu.iota {dimensions = array<i32: 1>} : vector<7x7xi32>
    %11 = vector.broadcast %9 : i32 to vector<7x7xi32>
    %12 = arith.addi %11, %10 : vector<7x7xi32>
    %c0_6 = arith.constant 0 : index
    %c0_7 = arith.constant 0 : index
    %c0_8 = arith.constant 0 : index
    %13 = vector.load %arg3[%c0_6, %c0_7, %c0_8] : memref<1x1x7xi32, #tpu.memory_space<vmem>>, vector<1x1x7xi32>
    %14 = vector.shape_cast %13 : vector<1x1x7xi32> to vector<1x7xi32>
    %c0_i32_9 = arith.constant 0 : i32
    %15 = vector.broadcast %c0_i32_9 : i32 to vector<1x7xi32>
    %16 = arith.cmpi sgt, %14, %15 : vector<1x7xi32>
    %c7_i32_10 = arith.constant 7 : i32
    %17 = vector.broadcast %c7_i32_10 : i32 to vector<7x7xi32>
    %18 = arith.cmpi sge, %12, %17 : vector<7x7xi32>
    %19 = vector.broadcast %16 : vector<1x7xi1> to vector<7x7xi1>
    %20 = arith.ori %19, %18 : vector<7x7xi1>
    %c7_i32_11 = arith.constant 7 : i32
    %21 = arith.muli %arg1, %c7_i32_11 : i32
    %22 = tpu.iota {dimensions = array<i32: 0>} : vector<7x7xi32>
    %23 = vector.broadcast %21 : i32 to vector<7x7xi32>
    %24 = arith.addi %23, %22 : vector<7x7xi32>
    %25 = arith.cmpi sgt, %12, %24 : vector<7x7xi32>
    %26 = arith.ori %20, %25 : vector<7x7xi1>
    %27 = vector.extract_strided_slice %4 {offsets = [0, 0], sizes = [7, 16], strides = [1, 1]} : vector<7x32xbf16> to vector<7x16xbf16>
    %28 = vector.extract_strided_slice %7 {offsets = [0, 0], sizes = [7, 16], strides = [1, 1]} : vector<7x32xbf16> to vector<7x16xbf16>
    %29 = vector.extract_strided_slice %8 {offsets = [0, 0], sizes = [7, 16], strides = [1, 1]} : vector<7x32xbf16> to vector<7x16xbf16>
    %cst = arith.constant dense<0.000000e+00> : vector<7x7xf32>
    %30 = tpu.matmul %27, %28, %cst {dimension_numbers = #tpu.dot_dimension_numbers<[1], [1], [0], [0], [0, 0, 1, 0], [], []>} : vector<7x16xbf16>, vector<7x16xbf16>, vector<7x7xf32> -> vector<7x7xf32>
    %cst_12 = arith.constant -1.000000e+09 : f32
    %31 = vector.broadcast %cst_12 : f32 to vector<7x7xf32>
    %32 = arith.select %26, %31, %30 : vector<7x7xi1>, vector<7x7xf32>
    %c0_13 = arith.constant 0 : index
    %c0_14 = arith.constant 0 : index
    %c0_15 = arith.constant 0 : index
    %33 = vector.load %arg7[%c0_13, %c0_14, %c0_15] : memref<2x7x1xf32, #tpu.memory_space<vmem>>, vector<1x7x1xf32>
    %34 = vector.shape_cast %33 : vector<1x7x1xf32> to vector<7x1xf32>
    %cst_16 = arith.constant dense<0xFF800000> : vector<7xf32>
    %35 = vector.multi_reduction <maximumf>, %32, %cst_16 [1] : vector<7x7xf32> to vector<7xf32>
    %36 = vector.shape_cast %35 : vector<7xf32> to vector<7x1xf32>
    %37 = arith.maximumf %34, %36 : vector<7x1xf32>
    %38 = arith.subf %34, %37 : vector<7x1xf32>
    %39 = math.exp %38 : vector<7x1xf32>
    %40 = vector.broadcast %37 : vector<7x1xf32> to vector<7x7xf32>
    %41 = arith.subf %32, %40 : vector<7x7xf32>
    %42 = math.exp %41 : vector<7x7xf32>
    %c0_17 = arith.constant 0 : index
    %c0_18 = arith.constant 0 : index
    %c0_19 = arith.constant 0 : index
    %43 = vector.load %arg8[%c0_17, %c0_18, %c0_19] : memref<2x7x1xf32, #tpu.memory_space<vmem>>, vector<1x7x1xf32>
    %44 = vector.shape_cast %43 : vector<1x7x1xf32> to vector<7x1xf32>
    %45 = arith.mulf %39, %44 : vector<7x1xf32>
    %cst_20 = arith.constant dense<0.000000e+00> : vector<7xf32>
    %46 = vector.multi_reduction <add>, %42, %cst_20 [1] : vector<7x7xf32> to vector<7xf32>
    %47 = vector.shape_cast %46 : vector<7xf32> to vector<7x1xf32>
    %48 = arith.addf %45, %47 : vector<7x1xf32>
    %c0_21 = arith.constant 0 : index
    %c0_22 = arith.constant 0 : index
    %c0_23 = arith.constant 0 : index
    %49 = vector.load %arg8[%c0_21, %c0_22, %c0_23] : memref<2x7x1xf32, #tpu.memory_space<vmem>>, vector<1x7x1xf32>
    %50 = vector.shape_cast %49 : vector<1x7x1xf32> to vector<7x1xf32>
    %51 = vector.shape_cast %48 : vector<7x1xf32> to vector<1x7x1xf32>
    tpu.vector_store %arg8[%c0_21, %c0_22, %c0_23], %51 {strides = array<i32>} : memref<2x7x1xf32, #tpu.memory_space<vmem>>, vector<1x7x1xf32>,
    %c0_24 = arith.constant 0 : index
    %c0_25 = arith.constant 0 : index
    %c0_26 = arith.constant 0 : index
    %52 = vector.load %arg9[%c0_24, %c0_25, %c0_26] : memref<2x7x16xf32, #tpu.memory_space<vmem>>, vector<1x7x16xf32>
    %53 = vector.shape_cast %52 : vector<1x7x16xf32> to vector<7x16xf32>
    %54 = vector.broadcast %39 : vector<7x1xf32> to vector<7x16xf32>
    %55 = arith.mulf %54, %53 : vector<7x16xf32>
    %56 = arith.truncf %42 : vector<7x7xf32> to vector<7x7xbf16>
    %cst_27 = arith.constant dense<0.000000e+00> : vector<7x16xf32>
    %57 = tpu.matmul %56, %29, %cst_27 {dimension_numbers = #tpu.dot_dimension_numbers<[1], [0], [0], [1], [0, 0, 1, 1], [], []>} : vector<7x7xbf16>, vector<7x16xbf16>, vector<7x16xf32> -> vector<7x16xf32>
    %58 = arith.addf %55, %57 : vector<7x16xf32>
    %c0_28 = arith.constant 0 : index
    %c0_29 = arith.constant 0 : index
    %c0_30 = arith.constant 0 : index
    %59 = vector.load %arg9[%c0_28, %c0_29, %c0_30] : memref<2x7x16xf32, #tpu.memory_space<vmem>>, vector<1x7x16xf32>
    %60 = vector.shape_cast %59 : vector<1x7x16xf32> to vector<7x16xf32>
    %61 = vector.shape_cast %58 : vector<7x16xf32> to vector<1x7x16xf32>
    tpu.vector_store %arg9[%c0_28, %c0_29, %c0_30], %61 {strides = array<i32>} : memref<2x7x16xf32, #tpu.memory_space<vmem>>, vector<1x7x16xf32>,
    %c0_31 = arith.constant 0 : index
    %c0_32 = arith.constant 0 : index
    %c0_33 = arith.constant 0 : index
    %62 = vector.load %arg7[%c0_31, %c0_32, %c0_33] : memref<2x7x1xf32, #tpu.memory_space<vmem>>, vector<1x7x1xf32>
    %63 = vector.shape_cast %62 : vector<1x7x1xf32> to vector<7x1xf32>
    %64 = vector.shape_cast %37 : vector<7x1xf32> to vector<1x7x1xf32>
    tpu.vector_store %arg7[%c0_31, %c0_32, %c0_33], %64 {strides = array<i32>} : memref<2x7x1xf32, #tpu.memory_space<vmem>>, vector<1x7x1xf32>,
    %65 = vector.extract_strided_slice %4 {offsets = [0, 16], sizes = [7, 16], strides = [1, 1]} : vector<7x32xbf16> to vector<7x16xbf16>
    %66 = vector.extract_strided_slice %7 {offsets = [0, 16], sizes = [7, 16], strides = [1, 1]} : vector<7x32xbf16> to vector<7x16xbf16>
    %67 = vector.extract_strided_slice %8 {offsets = [0, 16], sizes = [7, 16], strides = [1, 1]} : vector<7x32xbf16> to vector<7x16xbf16>
    %cst_34 = arith.constant dense<0.000000e+00> : vector<7x7xf32>
    %68 = tpu.matmul %65, %66, %cst_34 {dimension_numbers = #tpu.dot_dimension_numbers<[1], [1], [0], [0], [0, 0, 1, 0], [], []>} : vector<7x16xbf16>, vector<7x16xbf16>, vector<7x7xf32> -> vector<7x7xf32>
    %cst_35 = arith.constant -1.000000e+09 : f32
    %69 = vector.broadcast %cst_35 : f32 to vector<7x7xf32>
    %70 = arith.select %26, %69, %68 : vector<7x7xi1>, vector<7x7xf32>
    %c1 = arith.constant 1 : index
    %c0_36 = arith.constant 0 : index
    %c0_37 = arith.constant 0 : index
    %71 = vector.load %arg7[%c1, %c0_36, %c0_37] : memref<2x7x1xf32, #tpu.memory_space<vmem>>, vector<1x7x1xf32>
    %72 = vector.shape_cast %71 : vector<1x7x1xf32> to vector<7x1xf32>
    %cst_38 = arith.constant dense<0xFF800000> : vector<7xf32>
    %73 = vector.multi_reduction <maximumf>, %70, %cst_38 [1] : vector<7x7xf32> to vector<7xf32>
    %74 = vector.shape_cast %73 : vector<7xf32> to vector<7x1xf32>
    %75 = arith.maximumf %72, %74 : vector<7x1xf32>
    %76 = arith.subf %72, %75 : vector<7x1xf32>
    %77 = math.exp %76 : vector<7x1xf32>
    %78 = vector.broadcast %75 : vector<7x1xf32> to vector<7x7xf32>
    %79 = arith.subf %70, %78 : vector<7x7xf32>
    %80 = math.exp %79 : vector<7x7xf32>
    %c1_39 = arith.constant 1 : index
    %c0_40 = arith.constant 0 : index
    %c0_41 = arith.constant 0 : index
    %81 = vector.load %arg8[%c1_39, %c0_40, %c0_41] : memref<2x7x1xf32, #tpu.memory_space<vmem>>, vector<1x7x1xf32>
    %82 = vector.shape_cast %81 : vector<1x7x1xf32> to vector<7x1xf32>
    %83 = arith.mulf %77, %82 : vector<7x1xf32>
    %cst_42 = arith.constant dense<0.000000e+00> : vector<7xf32>
    %84 = vector.multi_reduction <add>, %80, %cst_42 [1] : vector<7x7xf32> to vector<7xf32>
    %85 = vector.shape_cast %84 : vector<7xf32> to vector<7x1xf32>
    %86 = arith.addf %83, %85 : vector<7x1xf32>
    %c1_43 = arith.constant 1 : index
    %c0_44 = arith.constant 0 : index
    %c0_45 = arith.constant 0 : index
    %87 = vector.load %arg8[%c1_43, %c0_44, %c0_45] : memref<2x7x1xf32, #tpu.memory_space<vmem>>, vector<1x7x1xf32>
    %88 = vector.shape_cast %87 : vector<1x7x1xf32> to vector<7x1xf32>
    %89 = vector.shape_cast %86 : vector<7x1xf32> to vector<1x7x1xf32>
    tpu.vector_store %arg8[%c1_43, %c0_44, %c0_45], %89 {strides = array<i32>} : memref<2x7x1xf32, #tpu.memory_space<vmem>>, vector<1x7x1xf32>,
    %c1_46 = arith.constant 1 : index
    %c0_47 = arith.constant 0 : index
    %c0_48 = arith.constant 0 : index
    %90 = vector.load %arg9[%c1_46, %c0_47, %c0_48] : memref<2x7x16xf32, #tpu.memory_space<vmem>>, vector<1x7x16xf32>
    %91 = vector.shape_cast %90 : vector<1x7x16xf32> to vector<7x16xf32>
    %92 = vector.broadcast %77 : vector<7x1xf32> to vector<7x16xf32>
    %93 = arith.mulf %92, %91 : vector<7x16xf32>
    %94 = arith.truncf %80 : vector<7x7xf32> to vector<7x7xbf16>
    %cst_49 = arith.constant dense<0.000000e+00> : vector<7x16xf32>
    %95 = tpu.matmul %94, %67, %cst_49 {dimension_numbers = #tpu.dot_dimension_numbers<[1], [0], [0], [1], [0, 0, 1, 1], [], []>} : vector<7x7xbf16>, vector<7x16xbf16>, vector<7x16xf32> -> vector<7x16xf32>
    %96 = arith.addf %93, %95 : vector<7x16xf32>
    %c1_50 = arith.constant 1 : index
    %c0_51 = arith.constant 0 : index
    %c0_52 = arith.constant 0 : index
    %97 = vector.load %arg9[%c1_50, %c0_51, %c0_52] : memref<2x7x16xf32, #tpu.memory_space<vmem>>, vector<1x7x16xf32>
    %98 = vector.shape_cast %97 : vector<1x7x16xf32> to vector<7x16xf32>
    %99 = vector.shape_cast %96 : vector<7x16xf32> to vector<1x7x16xf32>
    tpu.vector_store %arg9[%c1_50, %c0_51, %c0_52], %99 {strides = array<i32>} : memref<2x7x16xf32, #tpu.memory_space<vmem>>, vector<1x7x16xf32>,
    %c1_53 = arith.constant 1 : index
    %c0_54 = arith.constant 0 : index
    %c0_55 = arith.constant 0 : index
    %100 = vector.load %arg7[%c1_53, %c0_54, %c0_55] : memref<2x7x1xf32, #tpu.memory_space<vmem>>, vector<1x7x1xf32>
    %101 = vector.shape_cast %100 : vector<1x7x1xf32> to vector<7x1xf32>
    %102 = vector.shape_cast %75 : vector<7x1xf32> to vector<1x7x1xf32>
    tpu.vector_store %arg7[%c1_53, %c0_54, %c0_55], %102 {strides = array<i32>} : memref<2x7x1xf32, #tpu.memory_space<vmem>>, vector<1x7x1xf32>,
    %c0_i32_56 = arith.constant 0 : i32
    %103 = arith.cmpi eq, %arg2, %c0_i32_56 : i32
    %104 = arith.extui %103 : i1 to i32
    %c0_i32_57 = arith.constant 0 : i32
    %105 = arith.cmpi ne, %104, %c0_i32_57 : i32
    scf.if %105 {
      %c0_58 = arith.constant 0 : index
      %c0_59 = arith.constant 0 : index
      %c0_60 = arith.constant 0 : index
      %106 = vector.load %arg8[%c0_58, %c0_59, %c0_60] : memref<2x7x1xf32, #tpu.memory_space<vmem>>, vector<1x7x1xf32>
      %107 = vector.shape_cast %106 : vector<1x7x1xf32> to vector<7x1xf32>
      %108 = tpu.reciprocal %107 {approx = true} : vector<7x1xf32> -> vector<7x1xf32>
      %c0_61 = arith.constant 0 : index
      %c0_62 = arith.constant 0 : index
      %c0_63 = arith.constant 0 : index
      %109 = vector.load %arg9[%c0_61, %c0_62, %c0_63] : memref<2x7x16xf32, #tpu.memory_space<vmem>>, vector<1x7x16xf32>
      %110 = vector.shape_cast %109 : vector<1x7x16xf32> to vector<7x16xf32>
      %111 = vector.broadcast %108 : vector<7x1xf32> to vector<7x16xf32>
      %112 = arith.mulf %110, %111 : vector<7x16xf32>
      %113 = arith.truncf %112 : vector<7x16xf32> to vector<7x16xbf16>
      %c0_64 = arith.constant 0 : index
      %c0_65 = arith.constant 0 : index
      %c0_66 = arith.constant 0 : index
      %114 = vector.load %arg6[%c0_64, %c0_65, %c0_66] : memref<1x7x32xbf16, #tpu.memory_space<vmem>>, vector<1x7x16xbf16>
      %115 = vector.shape_cast %114 : vector<1x7x16xbf16> to vector<7x16xbf16>
      %116 = vector.shape_cast %113 : vector<7x16xbf16> to vector<1x7x16xbf16>
      tpu.vector_store %arg6[%c0_64, %c0_65, %c0_66], %116 {strides = array<i32>} : memref<1x7x32xbf16, #tpu.memory_space<vmem>>, vector<1x7x16xbf16>,
      %c1_67 = arith.constant 1 : index
      %c0_68 = arith.constant 0 : index
      %c0_69 = arith.constant 0 : index
      %117 = vector.load %arg8[%c1_67, %c0_68, %c0_69] : memref<2x7x1xf32, #tpu.memory_space<vmem>>, vector<1x7x1xf32>
      %118 = vector.shape_cast %117 : vector<1x7x1xf32> to vector<7x1xf32>
      %119 = tpu.reciprocal %118 {approx = true} : vector<7x1xf32> -> vector<7x1xf32>
      %c1_70 = arith.constant 1 : index
      %c0_71 = arith.constant 0 : index
      %c0_72 = arith.constant 0 : index
      %120 = vector.load %arg9[%c1_70, %c0_71, %c0_72] : memref<2x7x16xf32, #tpu.memory_space<vmem>>, vector<1x7x16xf32>
      %121 = vector.shape_cast %120 : vector<1x7x16xf32> to vector<7x16xf32>
      %122 = vector.broadcast %119 : vector<7x1xf32> to vector<7x16xf32>
      %123 = arith.mulf %121, %122 : vector<7x16xf32>
      %124 = arith.truncf %123 : vector<7x16xf32> to vector<7x16xbf16>
      %c0_73 = arith.constant 0 : index
      %c0_74 = arith.constant 0 : index
      %c16 = arith.constant 16 : index
      %125 = vector.load %arg6[%c0_73, %c0_74, %c16] : memref<1x7x32xbf16, #tpu.memory_space<vmem>>, vector<1x7x16xbf16>
      %126 = vector.shape_cast %125 : vector<1x7x16xbf16> to vector<7x16xbf16>
      %127 = vector.shape_cast %124 : vector<7x16xbf16> to vector<1x7x16xbf16>
      tpu.vector_store %arg6[%c0_73, %c0_74, %c16], %127 {strides = array<i32>} : memref<1x7x32xbf16, #tpu.memory_space<vmem>>, vector<1x7x16xbf16>,
    } else {
    }
    return
  }
  func.func @transform_0(%arg0: i32, %arg1: i32, %arg2: i32) -> (i32, i32, i32) {
    %c0_i32 = arith.constant 0 : i32
    %c0_i32_0 = arith.constant 0 : i32
    return %arg0, %c0_i32, %arg2 : i32, i32, i32
  }
  func.func @transform_1(%arg0: i32, %arg1: i32, %arg2: i32) -> (i32, i32, i32) {
    %c0_i32 = arith.constant 0 : i32
    %c0_i32_0 = arith.constant 0 : i32
    return %arg0, %arg1, %c0_i32 : i32, i32, i32
  }
  func.func @transform_2(%arg0: i32, %arg1: i32, %arg2: i32) -> (i32, i32, i32) {
    %c0_i32 = arith.constant 0 : i32
    %c0_i32_0 = arith.constant 0 : i32
    return %arg0, %arg2, %c0_i32 : i32, i32, i32
  }
  func.func @transform_3(%arg0: i32, %arg1: i32, %arg2: i32) -> (i32, i32, i32) {
    %c0_i32 = arith.constant 0 : i32
    %c0_i32_0 = arith.constant 0 : i32
    return %arg0, %arg1, %c0_i32 : i32, i32, i32
  }
}

module attributes {stable_mosaic.version = 11 : i64} {
  func.func @_proj_add_ln_kernel(%arg0: i32, %arg1: memref<14x32xbf16, #tpu.memory_space<vmem>>, %arg2: memref<14x32xbf16, #tpu.memory_space<vmem>>, %arg3: memref<14x1xf32, #tpu.memory_space<vmem>>, %arg4: memref<32x32xbf16, #tpu.memory_space<vmem>>, %arg5: memref<3x32xf32, #tpu.memory_space<vmem>>, %arg6: memref<14x32xbf16, #tpu.memory_space<vmem>>) attributes {dimension_semantics = [#tpu.dimension_semantics<parallel>], iteration_bounds = array<i64: 1>, scalar_prefetch = 0 : i64, scratch_operands = 0 : i64, tpu.core_type = #tpu.core_type<tc>, window_params = [{transform_indices = @transform_0, window_bounds = array<i64: 14, 32>}, {transform_indices = @transform_1, window_bounds = array<i64: 14, 32>}, {transform_indices = @transform_2, window_bounds = array<i64: 14, 1>}, {pipeline_mode = #tpu.pipeline_mode<synchronous>, transform_indices = @transform_3, window_bounds = array<i64: 32, 32>}, {pipeline_mode = #tpu.pipeline_mode<synchronous>, transform_indices = @transform_4, window_bounds = array<i64: 3, 32>}, {transform_indices = @transform_5, window_bounds = array<i64: 14, 32>}]} {
    %c0 = arith.constant 0 : index
    %c0_0 = arith.constant 0 : index
    %0 = vector.load %arg1[%c0, %c0_0] : memref<14x32xbf16, #tpu.memory_space<vmem>>, vector<14x32xbf16>
    %c0_1 = arith.constant 0 : index
    %c0_2 = arith.constant 0 : index
    %1 = vector.load %arg4[%c0_1, %c0_2] : memref<32x32xbf16, #tpu.memory_space<vmem>>, vector<32x32xbf16>
    %cst = arith.constant dense<0.000000e+00> : vector<14x32xf32>
    %2 = tpu.matmul %0, %1, %cst {dimension_numbers = #tpu.dot_dimension_numbers<[1], [0], [0], [1], [0, 0, 1, 1], [], []>} : vector<14x32xbf16>, vector<32x32xbf16>, vector<14x32xf32> -> vector<14x32xf32>
    %c0_3 = arith.constant 0 : index
    %c0_4 = arith.constant 0 : index
    %3 = vector.load %arg5[%c0_3, %c0_4] : memref<3x32xf32, #tpu.memory_space<vmem>>, vector<3x32xf32>
    %4 = vector.extract_strided_slice %3 {offsets = [0, 0], sizes = [1, 32], strides = [1, 1]} : vector<3x32xf32> to vector<1x32xf32>
    %5 = vector.broadcast %4 : vector<1x32xf32> to vector<14x32xf32>
    %6 = arith.addf %2, %5 : vector<14x32xf32>
    %c0_5 = arith.constant 0 : index
    %c0_6 = arith.constant 0 : index
    %7 = vector.load %arg2[%c0_5, %c0_6] : memref<14x32xbf16, #tpu.memory_space<vmem>>, vector<14x32xbf16>
    %8 = arith.extf %7 : vector<14x32xbf16> to vector<14x32xf32>
    %9 = arith.addf %6, %8 : vector<14x32xf32>
    %cst_7 = arith.constant dense<0.000000e+00> : vector<14xf32>
    %10 = vector.multi_reduction <add>, %9, %cst_7 [1] : vector<14x32xf32> to vector<14xf32>
    %11 = vector.shape_cast %10 : vector<14xf32> to vector<14x1xf32>
    %cst_8 = arith.constant 3.200000e+01 : f32
    %12 = vector.broadcast %cst_8 : f32 to vector<14x1xf32>
    %13 = arith.divf %11, %12 : vector<14x1xf32>
    %14 = vector.broadcast %13 : vector<14x1xf32> to vector<14x32xf32>
    %15 = arith.subf %9, %14 : vector<14x32xf32>
    %16 = arith.mulf %15, %15 : vector<14x32xf32>
    %cst_9 = arith.constant dense<0.000000e+00> : vector<14xf32>
    %17 = vector.multi_reduction <add>, %16, %cst_9 [1] : vector<14x32xf32> to vector<14xf32>
    %18 = vector.shape_cast %17 : vector<14xf32> to vector<14x1xf32>
    %cst_10 = arith.constant 3.200000e+01 : f32
    %19 = vector.broadcast %cst_10 : f32 to vector<14x1xf32>
    %20 = arith.divf %18, %19 : vector<14x1xf32>
    %21 = vector.broadcast %13 : vector<14x1xf32> to vector<14x32xf32>
    %22 = arith.subf %9, %21 : vector<14x32xf32>
    %cst_11 = arith.constant 9.99999974E-6 : f32
    %23 = vector.broadcast %cst_11 : f32 to vector<14x1xf32>
    %24 = arith.addf %20, %23 : vector<14x1xf32>
    %25 = math.rsqrt %24 : vector<14x1xf32>
    %26 = vector.broadcast %25 : vector<14x1xf32> to vector<14x32xf32>
    %27 = arith.mulf %22, %26 : vector<14x32xf32>
    %28 = vector.extract_strided_slice %3 {offsets = [1, 0], sizes = [1, 32], strides = [1, 1]} : vector<3x32xf32> to vector<1x32xf32>
    %29 = vector.broadcast %28 : vector<1x32xf32> to vector<14x32xf32>
    %30 = arith.mulf %27, %29 : vector<14x32xf32>
    %31 = vector.extract_strided_slice %3 {offsets = [2, 0], sizes = [1, 32], strides = [1, 1]} : vector<3x32xf32> to vector<1x32xf32>
    %32 = vector.broadcast %31 : vector<1x32xf32> to vector<14x32xf32>
    %33 = arith.addf %30, %32 : vector<14x32xf32>
    %c0_12 = arith.constant 0 : index
    %c0_13 = arith.constant 0 : index
    %34 = vector.load %arg3[%c0_12, %c0_13] : memref<14x1xf32, #tpu.memory_space<vmem>>, vector<14x1xf32>
    %35 = vector.broadcast %34 : vector<14x1xf32> to vector<14x32xf32>
    %36 = arith.mulf %33, %35 : vector<14x32xf32>
    %37 = arith.truncf %36 : vector<14x32xf32> to vector<14x32xbf16>
    %c0_14 = arith.constant 0 : index
    %c0_15 = arith.constant 0 : index
    %38 = vector.load %arg6[%c0_14, %c0_15] : memref<14x32xbf16, #tpu.memory_space<vmem>>, vector<14x32xbf16>
    tpu.vector_store %arg6[%c0_14, %c0_15], %37 {strides = array<i32>} : memref<14x32xbf16, #tpu.memory_space<vmem>>, vector<14x32xbf16>,
    return
  }
  func.func @transform_0(%arg0: i32) -> (i32, i32) {
    %c0_i32 = arith.constant 0 : i32
    %c0_i32_0 = arith.constant 0 : i32
    return %arg0, %c0_i32 : i32, i32
  }
  func.func @transform_1(%arg0: i32) -> (i32, i32) {
    %c0_i32 = arith.constant 0 : i32
    %c0_i32_0 = arith.constant 0 : i32
    return %arg0, %c0_i32 : i32, i32
  }
  func.func @transform_2(%arg0: i32) -> (i32, i32) {
    %c0_i32 = arith.constant 0 : i32
    %c0_i32_0 = arith.constant 0 : i32
    return %arg0, %c0_i32 : i32, i32
  }
  func.func @transform_3(%arg0: i32) -> (i32, i32) {
    %c0_i32 = arith.constant 0 : i32
    %c0_i32_0 = arith.constant 0 : i32
    %c0_i32_1 = arith.constant 0 : i32
    return %c0_i32, %c0_i32_0 : i32, i32
  }
  func.func @transform_4(%arg0: i32) -> (i32, i32) {
    %c0_i32 = arith.constant 0 : i32
    %c0_i32_0 = arith.constant 0 : i32
    %c0_i32_1 = arith.constant 0 : i32
    return %c0_i32, %c0_i32_0 : i32, i32
  }
  func.func @transform_5(%arg0: i32) -> (i32, i32) {
    %c0_i32 = arith.constant 0 : i32
    %c0_i32_0 = arith.constant 0 : i32
    return %arg0, %c0_i32 : i32, i32
  }
}

module attributes {stable_mosaic.version = 11 : i64} {
  func.func @_flash_attn_kernel(%arg0: i32, %arg1: i32, %arg2: i32, %arg3: memref<1x1x8xi32, #tpu.memory_space<vmem>>, %arg4: memref<1x7x32xbf16, #tpu.memory_space<vmem>>, %arg5: memref<1x8x64xbf16, #tpu.memory_space<vmem>>, %arg6: memref<1x7x32xbf16, #tpu.memory_space<vmem>>, %arg7: memref<2x7x1xf32, #tpu.memory_space<vmem>>, %arg8: memref<2x7x1xf32, #tpu.memory_space<vmem>>, %arg9: memref<2x7x16xf32, #tpu.memory_space<vmem>>) attributes {dimension_semantics = [#tpu.dimension_semantics<parallel>, #tpu.dimension_semantics<parallel>, #tpu.dimension_semantics<arbitrary>], iteration_bounds = array<i64: 2, 1, 1>, scalar_prefetch = 0 : i64, scratch_operands = 3 : i64, tpu.core_type = #tpu.core_type<tc>, window_params = [{transform_indices = @transform_0, window_bounds = array<i64: 1, 1, 8>}, {transform_indices = @transform_1, window_bounds = array<i64: 1, 7, 32>}, {transform_indices = @transform_2, window_bounds = array<i64: 1, 8, 64>}, {transform_indices = @transform_3, window_bounds = array<i64: 1, 7, 32>}]} {
    %c0_i32 = arith.constant 0 : i32
    %0 = arith.cmpi eq, %arg2, %c0_i32 : i32
    %1 = arith.extui %0 : i1 to i32
    %c0_i32_0 = arith.constant 0 : i32
    %2 = arith.cmpi ne, %1, %c0_i32_0 : i32
    scf.if %2 {
      %cst_57 = arith.constant 0xFF800000 : f32
      %100 = vector.broadcast %cst_57 : f32 to vector<2x7x1xf32>
      %c0_58 = arith.constant 0 : index
      %c0_59 = arith.constant 0 : index
      %c0_60 = arith.constant 0 : index
      %101 = vector.load %arg7[%c0_58, %c0_59, %c0_60] : memref<2x7x1xf32, #tpu.memory_space<vmem>>, vector<2x7x1xf32>
      tpu.vector_store %arg7[%c0_58, %c0_59, %c0_60], %100 {strides = array<i32>} : memref<2x7x1xf32, #tpu.memory_space<vmem>>, vector<2x7x1xf32>,
      %cst_61 = arith.constant 0.000000e+00 : f32
      %102 = vector.broadcast %cst_61 : f32 to vector<2x7x1xf32>
      %c0_62 = arith.constant 0 : index
      %c0_63 = arith.constant 0 : index
      %c0_64 = arith.constant 0 : index
      %103 = vector.load %arg8[%c0_62, %c0_63, %c0_64] : memref<2x7x1xf32, #tpu.memory_space<vmem>>, vector<2x7x1xf32>
      tpu.vector_store %arg8[%c0_62, %c0_63, %c0_64], %102 {strides = array<i32>} : memref<2x7x1xf32, #tpu.memory_space<vmem>>, vector<2x7x1xf32>,
      %cst_65 = arith.constant 0.000000e+00 : f32
      %104 = vector.broadcast %cst_65 : f32 to vector<2x7x16xf32>
      %c0_66 = arith.constant 0 : index
      %c0_67 = arith.constant 0 : index
      %c0_68 = arith.constant 0 : index
      %105 = vector.load %arg9[%c0_66, %c0_67, %c0_68] : memref<2x7x16xf32, #tpu.memory_space<vmem>>, vector<2x7x16xf32>
      tpu.vector_store %arg9[%c0_66, %c0_67, %c0_68], %104 {strides = array<i32>} : memref<2x7x16xf32, #tpu.memory_space<vmem>>, vector<2x7x16xf32>,
    } else {
    }
    %c0 = arith.constant 0 : index
    %c0_1 = arith.constant 0 : index
    %c0_2 = arith.constant 0 : index
    %3 = vector.load %arg4[%c0, %c0_1, %c0_2] : memref<1x7x32xbf16, #tpu.memory_space<vmem>>, vector<1x7x32xbf16>
    %4 = vector.shape_cast %3 : vector<1x7x32xbf16> to vector<7x32xbf16>
    %c0_3 = arith.constant 0 : index
    %c0_4 = arith.constant 0 : index
    %c0_5 = arith.constant 0 : index
    %5 = vector.load %arg5[%c0_3, %c0_4, %c0_5] : memref<1x8x64xbf16, #tpu.memory_space<vmem>>, vector<1x8x64xbf16>
    %6 = vector.shape_cast %5 : vector<1x8x64xbf16> to vector<8x64xbf16>
    %7 = vector.extract_strided_slice %6 {offsets = [0, 0], sizes = [8, 32], strides = [1, 1]} : vector<8x64xbf16> to vector<8x32xbf16>
    %8 = vector.extract_strided_slice %6 {offsets = [0, 32], sizes = [8, 32], strides = [1, 1]} : vector<8x64xbf16> to vector<8x32xbf16>
    %c8_i32 = arith.constant 8 : i32
    %9 = arith.muli %arg2, %c8_i32 : i32
    %10 = tpu.iota {dimensions = array<i32: 1>} : vector<7x8xi32>
    %11 = vector.broadcast %9 : i32 to vector<7x8xi32>
    %12 = arith.addi %11, %10 : vector<7x8xi32>
    %c0_6 = arith.constant 0 : index
    %c0_7 = arith.constant 0 : index
    %c0_8 = arith.constant 0 : index
    %13 = vector.load %arg3[%c0_6, %c0_7, %c0_8] : memref<1x1x8xi32, #tpu.memory_space<vmem>>, vector<1x1x8xi32>
    %14 = vector.shape_cast %13 : vector<1x1x8xi32> to vector<1x8xi32>
    %c0_i32_9 = arith.constant 0 : i32
    %15 = vector.broadcast %c0_i32_9 : i32 to vector<1x8xi32>
    %16 = arith.cmpi sgt, %14, %15 : vector<1x8xi32>
    %c8_i32_10 = arith.constant 8 : i32
    %17 = vector.broadcast %c8_i32_10 : i32 to vector<7x8xi32>
    %18 = arith.cmpi sge, %12, %17 : vector<7x8xi32>
    %19 = vector.broadcast %16 : vector<1x8xi1> to vector<7x8xi1>
    %20 = arith.ori %19, %18 : vector<7x8xi1>
    %21 = vector.extract_strided_slice %4 {offsets = [0, 0], sizes = [7, 16], strides = [1, 1]} : vector<7x32xbf16> to vector<7x16xbf16>
    %22 = vector.extract_strided_slice %7 {offsets = [0, 0], sizes = [8, 16], strides = [1, 1]} : vector<8x32xbf16> to vector<8x16xbf16>
    %23 = vector.extract_strided_slice %8 {offsets = [0, 0], sizes = [8, 16], strides = [1, 1]} : vector<8x32xbf16> to vector<8x16xbf16>
    %cst = arith.constant dense<0.000000e+00> : vector<7x8xf32>
    %24 = tpu.matmul %21, %22, %cst {dimension_numbers = #tpu.dot_dimension_numbers<[1], [1], [0], [0], [0, 0, 1, 0], [], []>} : vector<7x16xbf16>, vector<8x16xbf16>, vector<7x8xf32> -> vector<7x8xf32>
    %cst_11 = arith.constant -1.000000e+09 : f32
    %25 = vector.broadcast %cst_11 : f32 to vector<7x8xf32>
    %26 = arith.select %20, %25, %24 : vector<7x8xi1>, vector<7x8xf32>
    %c0_12 = arith.constant 0 : index
    %c0_13 = arith.constant 0 : index
    %c0_14 = arith.constant 0 : index
    %27 = vector.load %arg7[%c0_12, %c0_13, %c0_14] : memref<2x7x1xf32, #tpu.memory_space<vmem>>, vector<1x7x1xf32>
    %28 = vector.shape_cast %27 : vector<1x7x1xf32> to vector<7x1xf32>
    %cst_15 = arith.constant dense<0xFF800000> : vector<7xf32>
    %29 = vector.multi_reduction <maximumf>, %26, %cst_15 [1] : vector<7x8xf32> to vector<7xf32>
    %30 = vector.shape_cast %29 : vector<7xf32> to vector<7x1xf32>
    %31 = arith.maximumf %28, %30 : vector<7x1xf32>
    %32 = arith.subf %28, %31 : vector<7x1xf32>
    %33 = math.exp %32 : vector<7x1xf32>
    %34 = vector.broadcast %31 : vector<7x1xf32> to vector<7x8xf32>
    %35 = arith.subf %26, %34 : vector<7x8xf32>
    %36 = math.exp %35 : vector<7x8xf32>
    %c0_16 = arith.constant 0 : index
    %c0_17 = arith.constant 0 : index
    %c0_18 = arith.constant 0 : index
    %37 = vector.load %arg8[%c0_16, %c0_17, %c0_18] : memref<2x7x1xf32, #tpu.memory_space<vmem>>, vector<1x7x1xf32>
    %38 = vector.shape_cast %37 : vector<1x7x1xf32> to vector<7x1xf32>
    %39 = arith.mulf %33, %38 : vector<7x1xf32>
    %cst_19 = arith.constant dense<0.000000e+00> : vector<7xf32>
    %40 = vector.multi_reduction <add>, %36, %cst_19 [1] : vector<7x8xf32> to vector<7xf32>
    %41 = vector.shape_cast %40 : vector<7xf32> to vector<7x1xf32>
    %42 = arith.addf %39, %41 : vector<7x1xf32>
    %c0_20 = arith.constant 0 : index
    %c0_21 = arith.constant 0 : index
    %c0_22 = arith.constant 0 : index
    %43 = vector.load %arg8[%c0_20, %c0_21, %c0_22] : memref<2x7x1xf32, #tpu.memory_space<vmem>>, vector<1x7x1xf32>
    %44 = vector.shape_cast %43 : vector<1x7x1xf32> to vector<7x1xf32>
    %45 = vector.shape_cast %42 : vector<7x1xf32> to vector<1x7x1xf32>
    tpu.vector_store %arg8[%c0_20, %c0_21, %c0_22], %45 {strides = array<i32>} : memref<2x7x1xf32, #tpu.memory_space<vmem>>, vector<1x7x1xf32>,
    %c0_23 = arith.constant 0 : index
    %c0_24 = arith.constant 0 : index
    %c0_25 = arith.constant 0 : index
    %46 = vector.load %arg9[%c0_23, %c0_24, %c0_25] : memref<2x7x16xf32, #tpu.memory_space<vmem>>, vector<1x7x16xf32>
    %47 = vector.shape_cast %46 : vector<1x7x16xf32> to vector<7x16xf32>
    %48 = vector.broadcast %33 : vector<7x1xf32> to vector<7x16xf32>
    %49 = arith.mulf %48, %47 : vector<7x16xf32>
    %50 = arith.truncf %36 : vector<7x8xf32> to vector<7x8xbf16>
    %cst_26 = arith.constant dense<0.000000e+00> : vector<7x16xf32>
    %51 = tpu.matmul %50, %23, %cst_26 {dimension_numbers = #tpu.dot_dimension_numbers<[1], [0], [0], [1], [0, 0, 1, 1], [], []>} : vector<7x8xbf16>, vector<8x16xbf16>, vector<7x16xf32> -> vector<7x16xf32>
    %52 = arith.addf %49, %51 : vector<7x16xf32>
    %c0_27 = arith.constant 0 : index
    %c0_28 = arith.constant 0 : index
    %c0_29 = arith.constant 0 : index
    %53 = vector.load %arg9[%c0_27, %c0_28, %c0_29] : memref<2x7x16xf32, #tpu.memory_space<vmem>>, vector<1x7x16xf32>
    %54 = vector.shape_cast %53 : vector<1x7x16xf32> to vector<7x16xf32>
    %55 = vector.shape_cast %52 : vector<7x16xf32> to vector<1x7x16xf32>
    tpu.vector_store %arg9[%c0_27, %c0_28, %c0_29], %55 {strides = array<i32>} : memref<2x7x16xf32, #tpu.memory_space<vmem>>, vector<1x7x16xf32>,
    %c0_30 = arith.constant 0 : index
    %c0_31 = arith.constant 0 : index
    %c0_32 = arith.constant 0 : index
    %56 = vector.load %arg7[%c0_30, %c0_31, %c0_32] : memref<2x7x1xf32, #tpu.memory_space<vmem>>, vector<1x7x1xf32>
    %57 = vector.shape_cast %56 : vector<1x7x1xf32> to vector<7x1xf32>
    %58 = vector.shape_cast %31 : vector<7x1xf32> to vector<1x7x1xf32>
    tpu.vector_store %arg7[%c0_30, %c0_31, %c0_32], %58 {strides = array<i32>} : memref<2x7x1xf32, #tpu.memory_space<vmem>>, vector<1x7x1xf32>,
    %59 = vector.extract_strided_slice %4 {offsets = [0, 16], sizes = [7, 16], strides = [1, 1]} : vector<7x32xbf16> to vector<7x16xbf16>
    %60 = vector.extract_strided_slice %7 {offsets = [0, 16], sizes = [8, 16], strides = [1, 1]} : vector<8x32xbf16> to vector<8x16xbf16>
    %61 = vector.extract_strided_slice %8 {offsets = [0, 16], sizes = [8, 16], strides = [1, 1]} : vector<8x32xbf16> to vector<8x16xbf16>
    %cst_33 = arith.constant dense<0.000000e+00> : vector<7x8xf32>
    %62 = tpu.matmul %59, %60, %cst_33 {dimension_numbers = #tpu.dot_dimension_numbers<[1], [1], [0], [0], [0, 0, 1, 0], [], []>} : vector<7x16xbf16>, vector<8x16xbf16>, vector<7x8xf32> -> vector<7x8xf32>
    %cst_34 = arith.constant -1.000000e+09 : f32
    %63 = vector.broadcast %cst_34 : f32 to vector<7x8xf32>
    %64 = arith.select %20, %63, %62 : vector<7x8xi1>, vector<7x8xf32>
    %c1 = arith.constant 1 : index
    %c0_35 = arith.constant 0 : index
    %c0_36 = arith.constant 0 : index
    %65 = vector.load %arg7[%c1, %c0_35, %c0_36] : memref<2x7x1xf32, #tpu.memory_space<vmem>>, vector<1x7x1xf32>
    %66 = vector.shape_cast %65 : vector<1x7x1xf32> to vector<7x1xf32>
    %cst_37 = arith.constant dense<0xFF800000> : vector<7xf32>
    %67 = vector.multi_reduction <maximumf>, %64, %cst_37 [1] : vector<7x8xf32> to vector<7xf32>
    %68 = vector.shape_cast %67 : vector<7xf32> to vector<7x1xf32>
    %69 = arith.maximumf %66, %68 : vector<7x1xf32>
    %70 = arith.subf %66, %69 : vector<7x1xf32>
    %71 = math.exp %70 : vector<7x1xf32>
    %72 = vector.broadcast %69 : vector<7x1xf32> to vector<7x8xf32>
    %73 = arith.subf %64, %72 : vector<7x8xf32>
    %74 = math.exp %73 : vector<7x8xf32>
    %c1_38 = arith.constant 1 : index
    %c0_39 = arith.constant 0 : index
    %c0_40 = arith.constant 0 : index
    %75 = vector.load %arg8[%c1_38, %c0_39, %c0_40] : memref<2x7x1xf32, #tpu.memory_space<vmem>>, vector<1x7x1xf32>
    %76 = vector.shape_cast %75 : vector<1x7x1xf32> to vector<7x1xf32>
    %77 = arith.mulf %71, %76 : vector<7x1xf32>
    %cst_41 = arith.constant dense<0.000000e+00> : vector<7xf32>
    %78 = vector.multi_reduction <add>, %74, %cst_41 [1] : vector<7x8xf32> to vector<7xf32>
    %79 = vector.shape_cast %78 : vector<7xf32> to vector<7x1xf32>
    %80 = arith.addf %77, %79 : vector<7x1xf32>
    %c1_42 = arith.constant 1 : index
    %c0_43 = arith.constant 0 : index
    %c0_44 = arith.constant 0 : index
    %81 = vector.load %arg8[%c1_42, %c0_43, %c0_44] : memref<2x7x1xf32, #tpu.memory_space<vmem>>, vector<1x7x1xf32>
    %82 = vector.shape_cast %81 : vector<1x7x1xf32> to vector<7x1xf32>
    %83 = vector.shape_cast %80 : vector<7x1xf32> to vector<1x7x1xf32>
    tpu.vector_store %arg8[%c1_42, %c0_43, %c0_44], %83 {strides = array<i32>} : memref<2x7x1xf32, #tpu.memory_space<vmem>>, vector<1x7x1xf32>,
    %c1_45 = arith.constant 1 : index
    %c0_46 = arith.constant 0 : index
    %c0_47 = arith.constant 0 : index
    %84 = vector.load %arg9[%c1_45, %c0_46, %c0_47] : memref<2x7x16xf32, #tpu.memory_space<vmem>>, vector<1x7x16xf32>
    %85 = vector.shape_cast %84 : vector<1x7x16xf32> to vector<7x16xf32>
    %86 = vector.broadcast %71 : vector<7x1xf32> to vector<7x16xf32>
    %87 = arith.mulf %86, %85 : vector<7x16xf32>
    %88 = arith.truncf %74 : vector<7x8xf32> to vector<7x8xbf16>
    %cst_48 = arith.constant dense<0.000000e+00> : vector<7x16xf32>
    %89 = tpu.matmul %88, %61, %cst_48 {dimension_numbers = #tpu.dot_dimension_numbers<[1], [0], [0], [1], [0, 0, 1, 1], [], []>} : vector<7x8xbf16>, vector<8x16xbf16>, vector<7x16xf32> -> vector<7x16xf32>
    %90 = arith.addf %87, %89 : vector<7x16xf32>
    %c1_49 = arith.constant 1 : index
    %c0_50 = arith.constant 0 : index
    %c0_51 = arith.constant 0 : index
    %91 = vector.load %arg9[%c1_49, %c0_50, %c0_51] : memref<2x7x16xf32, #tpu.memory_space<vmem>>, vector<1x7x16xf32>
    %92 = vector.shape_cast %91 : vector<1x7x16xf32> to vector<7x16xf32>
    %93 = vector.shape_cast %90 : vector<7x16xf32> to vector<1x7x16xf32>
    tpu.vector_store %arg9[%c1_49, %c0_50, %c0_51], %93 {strides = array<i32>} : memref<2x7x16xf32, #tpu.memory_space<vmem>>, vector<1x7x16xf32>,
    %c1_52 = arith.constant 1 : index
    %c0_53 = arith.constant 0 : index
    %c0_54 = arith.constant 0 : index
    %94 = vector.load %arg7[%c1_52, %c0_53, %c0_54] : memref<2x7x1xf32, #tpu.memory_space<vmem>>, vector<1x7x1xf32>
    %95 = vector.shape_cast %94 : vector<1x7x1xf32> to vector<7x1xf32>
    %96 = vector.shape_cast %69 : vector<7x1xf32> to vector<1x7x1xf32>
    tpu.vector_store %arg7[%c1_52, %c0_53, %c0_54], %96 {strides = array<i32>} : memref<2x7x1xf32, #tpu.memory_space<vmem>>, vector<1x7x1xf32>,
    %c0_i32_55 = arith.constant 0 : i32
    %97 = arith.cmpi eq, %arg2, %c0_i32_55 : i32
    %98 = arith.extui %97 : i1 to i32
    %c0_i32_56 = arith.constant 0 : i32
    %99 = arith.cmpi ne, %98, %c0_i32_56 : i32
    scf.if %99 {
      %c0_57 = arith.constant 0 : index
      %c0_58 = arith.constant 0 : index
      %c0_59 = arith.constant 0 : index
      %100 = vector.load %arg8[%c0_57, %c0_58, %c0_59] : memref<2x7x1xf32, #tpu.memory_space<vmem>>, vector<1x7x1xf32>
      %101 = vector.shape_cast %100 : vector<1x7x1xf32> to vector<7x1xf32>
      %102 = tpu.reciprocal %101 {approx = true} : vector<7x1xf32> -> vector<7x1xf32>
      %c0_60 = arith.constant 0 : index
      %c0_61 = arith.constant 0 : index
      %c0_62 = arith.constant 0 : index
      %103 = vector.load %arg9[%c0_60, %c0_61, %c0_62] : memref<2x7x16xf32, #tpu.memory_space<vmem>>, vector<1x7x16xf32>
      %104 = vector.shape_cast %103 : vector<1x7x16xf32> to vector<7x16xf32>
      %105 = vector.broadcast %102 : vector<7x1xf32> to vector<7x16xf32>
      %106 = arith.mulf %104, %105 : vector<7x16xf32>
      %107 = arith.truncf %106 : vector<7x16xf32> to vector<7x16xbf16>
      %c0_63 = arith.constant 0 : index
      %c0_64 = arith.constant 0 : index
      %c0_65 = arith.constant 0 : index
      %108 = vector.load %arg6[%c0_63, %c0_64, %c0_65] : memref<1x7x32xbf16, #tpu.memory_space<vmem>>, vector<1x7x16xbf16>
      %109 = vector.shape_cast %108 : vector<1x7x16xbf16> to vector<7x16xbf16>
      %110 = vector.shape_cast %107 : vector<7x16xbf16> to vector<1x7x16xbf16>
      tpu.vector_store %arg6[%c0_63, %c0_64, %c0_65], %110 {strides = array<i32>} : memref<1x7x32xbf16, #tpu.memory_space<vmem>>, vector<1x7x16xbf16>,
      %c1_66 = arith.constant 1 : index
      %c0_67 = arith.constant 0 : index
      %c0_68 = arith.constant 0 : index
      %111 = vector.load %arg8[%c1_66, %c0_67, %c0_68] : memref<2x7x1xf32, #tpu.memory_space<vmem>>, vector<1x7x1xf32>
      %112 = vector.shape_cast %111 : vector<1x7x1xf32> to vector<7x1xf32>
      %113 = tpu.reciprocal %112 {approx = true} : vector<7x1xf32> -> vector<7x1xf32>
      %c1_69 = arith.constant 1 : index
      %c0_70 = arith.constant 0 : index
      %c0_71 = arith.constant 0 : index
      %114 = vector.load %arg9[%c1_69, %c0_70, %c0_71] : memref<2x7x16xf32, #tpu.memory_space<vmem>>, vector<1x7x16xf32>
      %115 = vector.shape_cast %114 : vector<1x7x16xf32> to vector<7x16xf32>
      %116 = vector.broadcast %113 : vector<7x1xf32> to vector<7x16xf32>
      %117 = arith.mulf %115, %116 : vector<7x16xf32>
      %118 = arith.truncf %117 : vector<7x16xf32> to vector<7x16xbf16>
      %c0_72 = arith.constant 0 : index
      %c0_73 = arith.constant 0 : index
      %c16 = arith.constant 16 : index
      %119 = vector.load %arg6[%c0_72, %c0_73, %c16] : memref<1x7x32xbf16, #tpu.memory_space<vmem>>, vector<1x7x16xbf16>
      %120 = vector.shape_cast %119 : vector<1x7x16xbf16> to vector<7x16xbf16>
      %121 = vector.shape_cast %118 : vector<7x16xbf16> to vector<1x7x16xbf16>
      tpu.vector_store %arg6[%c0_72, %c0_73, %c16], %121 {strides = array<i32>} : memref<1x7x32xbf16, #tpu.memory_space<vmem>>, vector<1x7x16xbf16>,
    } else {
    }
    return
  }
  func.func @transform_0(%arg0: i32, %arg1: i32, %arg2: i32) -> (i32, i32, i32) {
    %c0_i32 = arith.constant 0 : i32
    %c0_i32_0 = arith.constant 0 : i32
    return %arg0, %c0_i32, %arg2 : i32, i32, i32
  }
  func.func @transform_1(%arg0: i32, %arg1: i32, %arg2: i32) -> (i32, i32, i32) {
    %c0_i32 = arith.constant 0 : i32
    %c0_i32_0 = arith.constant 0 : i32
    return %arg0, %arg1, %c0_i32 : i32, i32, i32
  }
  func.func @transform_2(%arg0: i32, %arg1: i32, %arg2: i32) -> (i32, i32, i32) {
    %c0_i32 = arith.constant 0 : i32
    %c0_i32_0 = arith.constant 0 : i32
    return %arg0, %arg2, %c0_i32 : i32, i32, i32
  }
  func.func @transform_3(%arg0: i32, %arg1: i32, %arg2: i32) -> (i32, i32, i32) {
    %c0_i32 = arith.constant 0 : i32
    %c0_i32_0 = arith.constant 0 : i32
    return %arg0, %arg1, %c0_i32 : i32, i32, i32
  }
}

module attributes {stable_mosaic.version = 11 : i64} {
  func.func @_ffn_add_ln_kernel(%arg0: i32, %arg1: i32, %arg2: memref<14x32xbf16, #tpu.memory_space<vmem>>, %arg3: memref<14x1xf32, #tpu.memory_space<vmem>>, %arg4: memref<32x64xbf16, #tpu.memory_space<vmem>>, %arg5: memref<1x64xf32, #tpu.memory_space<vmem>>, %arg6: memref<64x32xbf16, #tpu.memory_space<vmem>>, %arg7: memref<3x32xf32, #tpu.memory_space<vmem>>, %arg8: memref<14x32xbf16, #tpu.memory_space<vmem>>, %arg9: memref<14x32xf32, #tpu.memory_space<vmem>>) attributes {dimension_semantics = [#tpu.dimension_semantics<parallel>, #tpu.dimension_semantics<arbitrary>], iteration_bounds = array<i64: 1, 1>, scalar_prefetch = 0 : i64, scratch_operands = 1 : i64, tpu.core_type = #tpu.core_type<tc>, window_params = [{transform_indices = @transform_0, window_bounds = array<i64: 14, 32>}, {transform_indices = @transform_1, window_bounds = array<i64: 14, 1>}, {transform_indices = @transform_2, window_bounds = array<i64: 32, 64>}, {transform_indices = @transform_3, window_bounds = array<i64: 1, 64>}, {transform_indices = @transform_4, window_bounds = array<i64: 64, 32>}, {pipeline_mode = #tpu.pipeline_mode<synchronous>, transform_indices = @transform_5, window_bounds = array<i64: 3, 32>}, {transform_indices = @transform_6, window_bounds = array<i64: 14, 32>}]} {
    %c0_i32 = arith.constant 0 : i32
    %0 = arith.cmpi eq, %arg1, %c0_i32 : i32
    %1 = arith.extui %0 : i1 to i32
    %c0_i32_0 = arith.constant 0 : i32
    %2 = arith.cmpi ne, %1, %c0_i32_0 : i32
    scf.if %2 {
      %cst_16 = arith.constant 0.000000e+00 : f32
      %20 = vector.broadcast %cst_16 : f32 to vector<14x32xf32>
      %c0_17 = arith.constant 0 : index
      %c0_18 = arith.constant 0 : index
      %21 = vector.load %arg9[%c0_17, %c0_18] : memref<14x32xf32, #tpu.memory_space<vmem>>, vector<14x32xf32>
      tpu.vector_store %arg9[%c0_17, %c0_18], %20 {strides = array<i32>} : memref<14x32xf32, #tpu.memory_space<vmem>>, vector<14x32xf32>,
    } else {
    }
    %c0 = arith.constant 0 : index
    %c0_1 = arith.constant 0 : index
    %3 = vector.load %arg2[%c0, %c0_1] : memref<14x32xbf16, #tpu.memory_space<vmem>>, vector<14x32xbf16>
    %c0_2 = arith.constant 0 : index
    %c0_3 = arith.constant 0 : index
    %4 = vector.load %arg4[%c0_2, %c0_3] : memref<32x64xbf16, #tpu.memory_space<vmem>>, vector<32x64xbf16>
    %cst = arith.constant dense<0.000000e+00> : vector<14x64xf32>
    %5 = tpu.matmul %3, %4, %cst {dimension_numbers = #tpu.dot_dimension_numbers<[1], [0], [0], [1], [0, 0, 1, 1], [], []>} : vector<14x32xbf16>, vector<32x64xbf16>, vector<14x64xf32> -> vector<14x64xf32>
    %c0_4 = arith.constant 0 : index
    %c0_5 = arith.constant 0 : index
    %6 = vector.load %arg5[%c0_4, %c0_5] : memref<1x64xf32, #tpu.memory_space<vmem>>, vector<1x64xf32>
    %7 = vector.broadcast %6 : vector<1x64xf32> to vector<14x64xf32>
    %8 = arith.addf %5, %7 : vector<14x64xf32>
    %cst_6 = arith.constant 0.000000e+00 : f32
    %9 = vector.broadcast %cst_6 : f32 to vector<14x64xf32>
    %10 = arith.maximumf %8, %9 : vector<14x64xf32>
    %c0_7 = arith.constant 0 : index
    %c0_8 = arith.constant 0 : index
    %11 = vector.load %arg6[%c0_7, %c0_8] : memref<64x32xbf16, #tpu.memory_space<vmem>>, vector<64x32xbf16>
    %c0_9 = arith.constant 0 : index
    %c0_10 = arith.constant 0 : index
    %12 = vector.load %arg9[%c0_9, %c0_10] : memref<14x32xf32, #tpu.memory_space<vmem>>, vector<14x32xf32>
    %13 = arith.truncf %10 : vector<14x64xf32> to vector<14x64xbf16>
    %cst_11 = arith.constant dense<0.000000e+00> : vector<14x32xf32>
    %14 = tpu.matmul %13, %11, %cst_11 {dimension_numbers = #tpu.dot_dimension_numbers<[1], [0], [0], [1], [0, 0, 1, 1], [], []>} : vector<14x64xbf16>, vector<64x32xbf16>, vector<14x32xf32> -> vector<14x32xf32>
    %15 = arith.addf %12, %14 : vector<14x32xf32>
    %c0_12 = arith.constant 0 : index
    %c0_13 = arith.constant 0 : index
    %16 = vector.load %arg9[%c0_12, %c0_13] : memref<14x32xf32, #tpu.memory_space<vmem>>, vector<14x32xf32>
    tpu.vector_store %arg9[%c0_12, %c0_13], %15 {strides = array<i32>} : memref<14x32xf32, #tpu.memory_space<vmem>>, vector<14x32xf32>,
    %c0_i32_14 = arith.constant 0 : i32
    %17 = arith.cmpi eq, %arg1, %c0_i32_14 : i32
    %18 = arith.extui %17 : i1 to i32
    %c0_i32_15 = arith.constant 0 : i32
    %19 = arith.cmpi ne, %18, %c0_i32_15 : i32
    scf.if %19 {
      %c0_16 = arith.constant 0 : index
      %c0_17 = arith.constant 0 : index
      %20 = vector.load %arg7[%c0_16, %c0_17] : memref<3x32xf32, #tpu.memory_space<vmem>>, vector<3x32xf32>
      %c0_18 = arith.constant 0 : index
      %c0_19 = arith.constant 0 : index
      %21 = vector.load %arg9[%c0_18, %c0_19] : memref<14x32xf32, #tpu.memory_space<vmem>>, vector<14x32xf32>
      %22 = vector.extract_strided_slice %20 {offsets = [0, 0], sizes = [1, 32], strides = [1, 1]} : vector<3x32xf32> to vector<1x32xf32>
      %23 = vector.broadcast %22 : vector<1x32xf32> to vector<14x32xf32>
      %24 = arith.addf %21, %23 : vector<14x32xf32>
      %25 = arith.extf %3 : vector<14x32xbf16> to vector<14x32xf32>
      %26 = arith.addf %24, %25 : vector<14x32xf32>
      %cst_20 = arith.constant dense<0.000000e+00> : vector<14xf32>
      %27 = vector.multi_reduction <add>, %26, %cst_20 [1] : vector<14x32xf32> to vector<14xf32>
      %28 = vector.shape_cast %27 : vector<14xf32> to vector<14x1xf32>
      %cst_21 = arith.constant 3.200000e+01 : f32
      %29 = vector.broadcast %cst_21 : f32 to vector<14x1xf32>
      %30 = arith.divf %28, %29 : vector<14x1xf32>
      %31 = vector.broadcast %30 : vector<14x1xf32> to vector<14x32xf32>
      %32 = arith.subf %26, %31 : vector<14x32xf32>
      %33 = arith.mulf %32, %32 : vector<14x32xf32>
      %cst_22 = arith.constant dense<0.000000e+00> : vector<14xf32>
      %34 = vector.multi_reduction <add>, %33, %cst_22 [1] : vector<14x32xf32> to vector<14xf32>
      %35 = vector.shape_cast %34 : vector<14xf32> to vector<14x1xf32>
      %cst_23 = arith.constant 3.200000e+01 : f32
      %36 = vector.broadcast %cst_23 : f32 to vector<14x1xf32>
      %37 = arith.divf %35, %36 : vector<14x1xf32>
      %38 = vector.broadcast %30 : vector<14x1xf32> to vector<14x32xf32>
      %39 = arith.subf %26, %38 : vector<14x32xf32>
      %cst_24 = arith.constant 9.99999974E-6 : f32
      %40 = vector.broadcast %cst_24 : f32 to vector<14x1xf32>
      %41 = arith.addf %37, %40 : vector<14x1xf32>
      %42 = math.rsqrt %41 : vector<14x1xf32>
      %43 = vector.broadcast %42 : vector<14x1xf32> to vector<14x32xf32>
      %44 = arith.mulf %39, %43 : vector<14x32xf32>
      %45 = vector.extract_strided_slice %20 {offsets = [1, 0], sizes = [1, 32], strides = [1, 1]} : vector<3x32xf32> to vector<1x32xf32>
      %46 = vector.broadcast %45 : vector<1x32xf32> to vector<14x32xf32>
      %47 = arith.mulf %44, %46 : vector<14x32xf32>
      %48 = vector.extract_strided_slice %20 {offsets = [2, 0], sizes = [1, 32], strides = [1, 1]} : vector<3x32xf32> to vector<1x32xf32>
      %49 = vector.broadcast %48 : vector<1x32xf32> to vector<14x32xf32>
      %50 = arith.addf %47, %49 : vector<14x32xf32>
      %c0_25 = arith.constant 0 : index
      %c0_26 = arith.constant 0 : index
      %51 = vector.load %arg3[%c0_25, %c0_26] : memref<14x1xf32, #tpu.memory_space<vmem>>, vector<14x1xf32>
      %52 = vector.broadcast %51 : vector<14x1xf32> to vector<14x32xf32>
      %53 = arith.mulf %50, %52 : vector<14x32xf32>
      %54 = arith.truncf %53 : vector<14x32xf32> to vector<14x32xbf16>
      %c0_27 = arith.constant 0 : index
      %c0_28 = arith.constant 0 : index
      %55 = vector.load %arg8[%c0_27, %c0_28] : memref<14x32xbf16, #tpu.memory_space<vmem>>, vector<14x32xbf16>
      tpu.vector_store %arg8[%c0_27, %c0_28], %54 {strides = array<i32>} : memref<14x32xbf16, #tpu.memory_space<vmem>>, vector<14x32xbf16>,
    } else {
    }
    return
  }
  func.func @transform_0(%arg0: i32, %arg1: i32) -> (i32, i32) {
    %c0_i32 = arith.constant 0 : i32
    %c0_i32_0 = arith.constant 0 : i32
    return %arg0, %c0_i32 : i32, i32
  }
  func.func @transform_1(%arg0: i32, %arg1: i32) -> (i32, i32) {
    %c0_i32 = arith.constant 0 : i32
    %c0_i32_0 = arith.constant 0 : i32
    return %arg0, %c0_i32 : i32, i32
  }
  func.func @transform_2(%arg0: i32, %arg1: i32) -> (i32, i32) {
    %c0_i32 = arith.constant 0 : i32
    %c0_i32_0 = arith.constant 0 : i32
    return %c0_i32, %arg1 : i32, i32
  }
  func.func @transform_3(%arg0: i32, %arg1: i32) -> (i32, i32) {
    %c0_i32 = arith.constant 0 : i32
    %c0_i32_0 = arith.constant 0 : i32
    return %c0_i32, %arg1 : i32, i32
  }
  func.func @transform_4(%arg0: i32, %arg1: i32) -> (i32, i32) {
    %c0_i32 = arith.constant 0 : i32
    %c0_i32_0 = arith.constant 0 : i32
    return %arg1, %c0_i32 : i32, i32
  }
  func.func @transform_5(%arg0: i32, %arg1: i32) -> (i32, i32) {
    %c0_i32 = arith.constant 0 : i32
    %c0_i32_0 = arith.constant 0 : i32
    %c0_i32_1 = arith.constant 0 : i32
    return %c0_i32, %c0_i32_0 : i32, i32
  }
  func.func @transform_6(%arg0: i32, %arg1: i32) -> (i32, i32) {
    %c0_i32 = arith.constant 0 : i32
    %c0_i32_0 = arith.constant 0 : i32
    return %arg0, %c0_i32 : i32, i32
  }
}

module attributes {stable_mosaic.version = 11 : i64} {
  func.func @_vocab_proj_kernel(%arg0: i32, %arg1: i32, %arg2: memref<14x32xbf16, #tpu.memory_space<vmem>>, %arg3: memref<32x32xbf16, #tpu.memory_space<vmem>>, %arg4: memref<14x32xf32, #tpu.memory_space<vmem>>) attributes {dimension_semantics = [#tpu.dimension_semantics<parallel>, #tpu.dimension_semantics<parallel>], iteration_bounds = array<i64: 1, 1>, scalar_prefetch = 0 : i64, scratch_operands = 0 : i64, tpu.core_type = #tpu.core_type<tc>, window_params = [{transform_indices = @transform_0, window_bounds = array<i64: 14, 32>}, {transform_indices = @transform_1, window_bounds = array<i64: 32, 32>}, {transform_indices = @transform_2, window_bounds = array<i64: 14, 32>}]} {
    %c0 = arith.constant 0 : index
    %c0_0 = arith.constant 0 : index
    %0 = vector.load %arg2[%c0, %c0_0] : memref<14x32xbf16, #tpu.memory_space<vmem>>, vector<14x32xbf16>
    %c0_1 = arith.constant 0 : index
    %c0_2 = arith.constant 0 : index
    %1 = vector.load %arg3[%c0_1, %c0_2] : memref<32x32xbf16, #tpu.memory_space<vmem>>, vector<32x32xbf16>
    %cst = arith.constant dense<0.000000e+00> : vector<14x32xf32>
    %2 = tpu.matmul %0, %1, %cst {dimension_numbers = #tpu.dot_dimension_numbers<[1], [0], [0], [1], [0, 0, 1, 1], [], []>} : vector<14x32xbf16>, vector<32x32xbf16>, vector<14x32xf32> -> vector<14x32xf32>
    %cst_3 = arith.constant 0.176776692 : f32
    %3 = vector.broadcast %cst_3 : f32 to vector<14x32xf32>
    %4 = arith.mulf %3, %2 : vector<14x32xf32>
    %c0_4 = arith.constant 0 : index
    %c0_5 = arith.constant 0 : index
    %5 = vector.load %arg4[%c0_4, %c0_5] : memref<14x32xf32, #tpu.memory_space<vmem>>, vector<14x32xf32>
    tpu.vector_store %arg4[%c0_4, %c0_5], %4 {strides = array<i32>} : memref<14x32xf32, #tpu.memory_space<vmem>>, vector<14x32xf32>,
    return
  }
  func.func @transform_0(%arg0: i32, %arg1: i32) -> (i32, i32) {
    %c0_i32 = arith.constant 0 : i32
    %c0_i32_0 = arith.constant 0 : i32
    return %arg1, %c0_i32 : i32, i32
  }
  func.func @transform_1(%arg0: i32, %arg1: i32) -> (i32, i32) {
    %c0_i32 = arith.constant 0 : i32
    %c0_i32_0 = arith.constant 0 : i32
    return %c0_i32, %arg0 : i32, i32
  }
  func.func @transform_2(%arg0: i32, %arg1: i32) -> (i32, i32) {
    %c0_i32 = arith.constant 0 : i32
    return %arg1, %arg0 : i32, i32
  }
}

</mosaic_0001>

<llo_original>
// kernel: transformer_forward.30
$region0: #{transformer_forward.30}
  #allocation0 [shape = 'u32[]', space=smem, size = 0x4, offset = 0x4, fixed_abs, tag = 'smem constant byte address 0x4 - core index']
  #allocation1 [shape = 'u32[72,128]{1,0:T(1,128)}', space=vmem, size = 0x9000, scoped, tag = 'internal scratch']
  %s0 = inlined_call_operand.vmem [shape: bf16[16,32], index: 0, kind: input, shape index: {}]
  %s1 = inlined_call_operand.vmem [shape: bf16[32,64], index: 1, kind: input, shape index: {}]
  %s2 = inlined_call_operand.vmem [shape: f32[1,64], index: 2, kind: input, shape index: {}]
  %s3 = inlined_call_operand.vmem [shape: bf16[16,64], index: 3, kind: output, shape index: {}]
  %s4 = sld [smem:[#allocation0]]
  $region22: #{transformer_forward.30} parent=0
    _
  %s6 = ssub.s32 1, %s4
  %s7 = scalar_select 0, %s6, %s4
  // Predicated region
  $region2: #{transformer_forward.30} parent=0 // pred_check
    _
  $region3: #{transformer_forward.30} parent=0 // pred_check_branch
    %9 = sbr.rel (0) target = $region5
  $region4: #{transformer_forward.30} parent=0 // pred_region
    _
  $region5: #{transformer_forward.30} parent=0 // pred_fallthru
    _
  // Predicated region
  $region6: #{transformer_forward.30} parent=0 // pred_check
    _
  $region7: #{transformer_forward.30} parent=0 // pred_check_branch
    %11 = sbr.rel (0) target = $region9
  $region8: #{transformer_forward.30} parent=0 // pred_region
    _
  $region9: #{transformer_forward.30} parent=0 // pred_fallthru
    _
  // Predicated region
  $region10: #{transformer_forward.30} parent=0 // pred_check
    _
  $region11: #{transformer_forward.30} parent=0 // pred_check_branch
    %13 = sbr.rel (0) target = $region13
  $region12: #{transformer_forward.30} parent=0 // pred_region
    _
  $region13: #{transformer_forward.30} parent=0 // pred_fallthru
    _
  %v15 = vld [vmem:[%s0] sm:$0xf]
  %v16 = vld [vmem:[%s0 + $0x4] sm:$0xf]
  %v17 = vld [vmem:[%s1] sm:$0xf]
  %v18 = vld [vmem:[%s1 + $0x4] sm:$0xf]
  %v19 = vld [vmem:[%s1 + $0x8] sm:$0xf]
  %v20 = vld [vmem:[%s1 + $0xc] sm:$0xf]
  %v21 = vld [vmem:[%s2] sm:$0x1]
  %v23 = vperm.slane %v21, 0
  %v27 = vunpack.c.l.b16 %v15
  %v28 = vunpack.c.l.b16 %v16
  %v29 = vpack.c.b16 %v28, %v27
  %v34 = vunpack.c.l.b16 %v17
  %v35 = vunpack.c.l.b16 %v18
  %v36 = vunpack.c.l.b16 %v19
  %v37 = vunpack.c.l.b16 %v20
  %v38 = vpack.c.b16 %v35, %v34
  %v39 = vpack.c.b16 %v37, %v36
  %vm42 = vcmask 261120
  %v44 = vsel %vm42, %v29, 0
  %46 = vmatpush.bf16.msra.mxu0 0
  %47 = vmatpush.bf16.msra.mxu0 0
  %48 = vmatpush.bf16.msra.mxu0 0
  %49 = vmatpush.bf16.msra.mxu0 0
  %50 = vmatpush.bf16.msra.mxu0 0
  %51 = vmatpush.bf16.msra.mxu0 0
  %52 = vmatpush.bf16.msra.mxu0 %v39
  %53 = vmatpush.bf16.msra.mxu0 %v38
  %54 = vmatmul.bf16.gmra.mxu0 %v44
  %v55 = vpop.f32.mrf.mxu0
  %v56 = vadd.f32 %v23, %v55
  %v57 = vpop.f32.mrf.mxu0
  %v58 = vadd.f32 %v23, %v57
  %59 = vdwg.mxu0
  %v60 = vpack.c.bf16 %v56, %v56
  %v61 = vpack.c.bf16 %v58, %v58
  %vm62 = vcmask 519168
  %63 = vst.msk [vmem:[%s3] sm:$0xf] %vm62, %v60
  %64 = vst.msk [vmem:[%s3 + $0x4] sm:$0xf] %vm62, %v61
  // Predicated region
  $region14: #{transformer_forward.30} parent=0 // pred_check
    _
  $region15: #{transformer_forward.30} parent=0 // pred_check_branch
    %66 = sbr.rel (0) target = $region17
  $region16: #{transformer_forward.30} parent=0 // pred_region
    _
  $region17: #{transformer_forward.30} parent=0 // pred_fallthru
    _
  // Predicated region
  $region18: #{transformer_forward.30} parent=0 // pred_check
    _
  $region19: #{transformer_forward.30} parent=0 // pred_check_branch
    %68 = sbr.rel (0) target = $region21
  $region20: #{transformer_forward.30} parent=0 // pred_region
    _
  $region21: #{transformer_forward.30} parent=0 // pred_fallthru
    _

// kernel: transformer_forward.29
$region0: #{transformer_forward.29}
  #allocation0 [shape = 'u32[]', space=smem, size = 0x4, offset = 0x4, fixed_abs, tag = 'smem constant byte address 0x4 - core index']
  #allocation1 [shape = 'u32[72,128]{1,0:T(1,128)}', space=vmem, size = 0x9000, scoped, tag = 'internal scratch']
  %s0 = inlined_call_operand.vmem [shape: bf16[16,32], index: 0, kind: input, shape index: {}]
  %s1 = inlined_call_operand.vmem [shape: bf16[32,32], index: 1, kind: input, shape index: {}]
  %s2 = inlined_call_operand.vmem [shape: f32[1,32], index: 2, kind: input, shape index: {}]
  %s3 = inlined_call_operand.vmem [shape: bf16[16,32], index: 3, kind: output, shape index: {}]
  %s4 = sld [smem:[#allocation0]]
  $region22: #{transformer_forward.29} parent=0
    _
  %s6 = ssub.s32 1, %s4
  %s7 = scalar_select 0, %s6, %s4
  // Predicated region
  $region2: #{transformer_forward.29} parent=0 // pred_check
    _
  $region3: #{transformer_forward.29} parent=0 // pred_check_branch
    %9 = sbr.rel (0) target = $region5
  $region4: #{transformer_forward.29} parent=0 // pred_region
    _
  $region5: #{transformer_forward.29} parent=0 // pred_fallthru
    _
  // Predicated region
  $region6: #{transformer_forward.29} parent=0 // pred_check
    _
  $region7: #{transformer_forward.29} parent=0 // pred_check_branch
    %11 = sbr.rel (0) target = $region9
  $region8: #{transformer_forward.29} parent=0 // pred_region
    _
  $region9: #{transformer_forward.29} parent=0 // pred_fallthru
    _
  // Predicated region
  $region10: #{transformer_forward.29} parent=0 // pred_check
    _
  $region11: #{transformer_forward.29} parent=0 // pred_check_branch
    %13 = sbr.rel (0) target = $region13
  $region12: #{transformer_forward.29} parent=0 // pred_region
    _
  $region13: #{transformer_forward.29} parent=0 // pred_fallthru
    _
  %v15 = vld [vmem:[%s0] sm:$0xf]
  %v16 = vld [vmem:[%s0 + $0x4] sm:$0xf]
  %v17 = vld [vmem:[%s1] sm:$0xf]
  %v18 = vld [vmem:[%s1 + $0x4] sm:$0xf]
  %v19 = vld [vmem:[%s1 + $0x8] sm:$0xf]
  %v20 = vld [vmem:[%s1 + $0xc] sm:$0xf]
  %v21 = vld [vmem:[%s2] sm:$0x1]
  %v23 = vperm.slane %v21, 0
  %v27 = vunpack.c.l.b16 %v15
  %v28 = vunpack.c.l.b16 %v16
  %v29 = vpack.c.b16 %v28, %v27
  %v34 = vunpack.c.l.b16 %v17
  %v35 = vunpack.c.l.b16 %v18
  %v36 = vunpack.c.l.b16 %v19
  %v37 = vunpack.c.l.b16 %v20
  %v38 = vpack.c.b16 %v35, %v34
  %v39 = vpack.c.b16 %v37, %v36
  %vm42 = vcmask 261120
  %v44 = vsel %vm42, %v29, 0
  %46 = vmatpush.bf16.msra.mxu0 0
  %47 = vmatpush.bf16.msra.mxu0 0
  %48 = vmatpush.bf16.msra.mxu0 0
  %49 = vmatpush.bf16.msra.mxu0 0
  %50 = vmatpush.bf16.msra.mxu0 0
  %51 = vmatpush.bf16.msra.mxu0 0
  %52 = vmatpush.bf16.msra.mxu0 %v39
  %53 = vmatpush.bf16.msra.mxu0 %v38
  %54 = vmatmul.bf16.gmra.mxu0 %v44
  %v55 = vpop.f32.mrf.mxu0
  %v56 = vadd.f32 %v23, %v55
  %v57 = vpop.f32.mrf.mxu0
  %v58 = vadd.f32 %v23, %v57
  %59 = vdwg.mxu0
  %v60 = vpack.c.bf16 %v56, %v56
  %v61 = vpack.c.bf16 %v58, %v58
  %vm62 = vcmask 257024
  %63 = vst.msk [vmem:[%s3] sm:$0xf] %vm62, %v60
  %64 = vst.msk [vmem:[%s3 + $0x4] sm:$0xf] %vm62, %v61
  // Predicated region
  $region14: #{transformer_forward.29} parent=0 // pred_check
    _
  $region15: #{transformer_forward.29} parent=0 // pred_check_branch
    %66 = sbr.rel (0) target = $region17
  $region16: #{transformer_forward.29} parent=0 // pred_region
    _
  $region17: #{transformer_forward.29} parent=0 // pred_fallthru
    _
  // Predicated region
  $region18: #{transformer_forward.29} parent=0 // pred_check
    _
  $region19: #{transformer_forward.29} parent=0 // pred_check_branch
    %68 = sbr.rel (0) target = $region21
  $region20: #{transformer_forward.29} parent=0 // pred_region
    _
  $region21: #{transformer_forward.29} parent=0 // pred_fallthru
    _

// kernel: transformer_forward.31
$region0: #{transformer_forward.31}
  #allocation0 [shape = 'u32[]', space=smem, size = 0x4, offset = 0x4, fixed_abs, tag = 'smem constant byte address 0x4 - core index']
  #allocation1 [shape = 'u32[72,128]{1,0:T(1,128)}', space=vmem, size = 0x9000, scoped, tag = 'internal scratch']
  #allocation2 [shape = 'f32[2,8,1]{2,1,0:T(8,128)}', space=vmem, size = 0x2000, scoped, tag = 'scratch operand']
  #allocation3 [shape = 'f32[2,8,1]{2,1,0:T(8,128)}', space=vmem, size = 0x2000, scoped, tag = 'scratch operand']
  #allocation4 [shape = 'f32[2,8,16]{2,1,0:T(8,128)}', space=vmem, size = 0x2000, scoped, tag = 'scratch operand']
  %s0 = inlined_call_operand.vmem [shape: s32[2,1,8], index: 0, kind: input, shape index: {}]
  %s1 = inlined_call_operand.vmem [shape: bf16[2,8,32], index: 1, kind: input, shape index: {}]
  %s2 = inlined_call_operand.vmem [shape: bf16[2,8,64], index: 2, kind: input, shape index: {}]
  %s3 = inlined_call_operand.vmem [shape: bf16[2,8,32], index: 3, kind: output, shape index: {}]
  %s4 = sld [smem:[#allocation0]]
  $region53: #{transformer_forward.31} parent=0
    _
  %s6 = ssub.s32 1, %s4
  %s7 = scalar_select 0, %s6, %s4
  loop: start=0, step=1, limit=4
  $region2: #{transformer_forward.31} parent=0 // loop_pre_header
    _
  $region3: #{transformer_forward.31} parent=0 // loop_header
    %s9 = sphi 0, %s13
    %p10 = scmp.ge.s32.totalorder %s9, 4
    %s16 = sphi 0, %s35
    %s17 = sphi 0, %s31
    %s18 = sphi 0, %s27
    %s19 = sphi 0, %s16
    %s20 = sphi 0, %s17
    %s21 = sphi 0, %s18
    %s22 = sphi 0, %s19
    %s23 = sphi 0, %s20
    %s24 = sphi 0, %s21
    %s40 = sphi 0, %s42
    %s43 = sphi 0, %s40
    %s44 = sphi 0, %s43
    %s60 = sphi 0, %s44
    %s68 = sphi 0, %s70
    %s71 = sphi 0, %s68
    %s72 = sphi 0, %s71
    %s88 = sphi 0, %s72
    %s96 = sphi 0, %s98
    %s99 = sphi 0, %s96
    %s100 = sphi 0, %s99
    %s116 = sphi 0, %s100
    %s124 = sphi 0, %s126
    %s127 = sphi 0, %s124
    %s128 = sphi 0, %s127
    %s144 = sphi 0, %s128
  $region4: #{transformer_forward.31} parent=0 // loop_header_branch
    %12 = sbr.rel (%p10) target = $region8
  $region5: #{transformer_forward.31} parent=0 // loop_body
    %s14 = ssub.s32 %s9, 1
    %s15 = ssub.s32 %s9, 2
    %s25 = sadd.s32 1, %s18
    %p26 = scmp.ge.s32.totalorder %s25, 1
    %s27 = scalar_select %p26, 0, %s25
    %s28 = sadd.s32 1, %s17
    %s29 = scalar_select %p26, %s28, %s17
    %p30 = scmp.ge.s32.totalorder %s29, 1
    %s31 = scalar_select %p30, 0, %s29
    %s32 = sadd.s32 1, %s16
    %s33 = scalar_select %p30, %s32, %s16
    %p34 = scmp.ge.s32.totalorder %s33, 2
    %s35 = scalar_select %p34, 0, %s33
    %s36 = ssub.s32 %s16, %s35
    %s37 = ssub.s32 %s18, %s27
    %s38 = sor.u32 %s36, %s37
    %p39 = scmp.eq.s32.totalorder %s38, 0
    %s41 = sadd.s32 %s40, 1
    %s42 = scalar_select %p39, %s40, %s41
    %p45 = pneg %p39
    %p46 = scmp.eq.s32.totalorder %s9, 1
    %p47 = por %p45, %p46
    %p48 = scmp.ne.s32.totalorder %s40, %s43
    %p49 = scmp.eq.s32.totalorder %s9, 0
    %p50 = por %p48, %p49
    %p51 = scmp.ne.s32.totalorder %s40, %s43
    %p52 = scmp.eq.s32.totalorder %s14, 1
    %p53 = por %p51, %p52
    %p54 = scmp.ne.s32.totalorder %s43, %s44
    %p55 = scmp.eq.s32.totalorder %s14, 0
    %p56 = por %p54, %p55
    %p57 = scmp.ne.s32.totalorder %s43, %s44
    %p58 = scmp.eq.s32.totalorder %s15, 1
    %p59 = por %p57, %p58
    %p61 = scmp.ne.s32.totalorder %s44, %s60
    %p62 = scmp.eq.s32.totalorder %s15, 0
    %p63 = por %p61, %p62
    %s64 = ssub.s32 %s16, %s35
    %s65 = ssub.s32 %s17, %s31
    %s66 = sor.u32 %s64, %s65
    %p67 = scmp.eq.s32.totalorder %s66, 0
    %s69 = sadd.s32 %s68, 1
    %s70 = scalar_select %p67, %s68, %s69
    %p73 = pneg %p67
    %p74 = scmp.eq.s32.totalorder %s9, 1
    %p75 = por %p73, %p74
    %p76 = scmp.ne.s32.totalorder %s68, %s71
    %p77 = scmp.eq.s32.totalorder %s9, 0
    %p78 = por %p76, %p77
    %p79 = scmp.ne.s32.totalorder %s68, %s71
    %p80 = scmp.eq.s32.totalorder %s14, 1
    %p81 = por %p79, %p80
    %p82 = scmp.ne.s32.totalorder %s71, %s72
    %p83 = scmp.eq.s32.totalorder %s14, 0
    %p84 = por %p82, %p83
    %p85 = scmp.ne.s32.totalorder %s71, %s72
    %p86 = scmp.eq.s32.totalorder %s15, 1
    %p87 = por %p85, %p86
    %p89 = scmp.ne.s32.totalorder %s72, %s88
    %p90 = scmp.eq.s32.totalorder %s15, 0
    %p91 = por %p89, %p90
    %s92 = ssub.s32 %s16, %s35
    %s93 = ssub.s32 %s18, %s27
    %s94 = sor.u32 %s92, %s93
    %p95 = scmp.eq.s32.totalorder %s94, 0
    %s97 = sadd.s32 %s96, 1
    %s98 = scalar_select %p95, %s96, %s97
    %p101 = pneg %p95
    %p102 = scmp.eq.s32.totalorder %s9, 1
    %p103 = por %p101, %p102
    %p104 = scmp.ne.s32.totalorder %s96, %s99
    %p105 = scmp.eq.s32.totalorder %s9, 0
    %p106 = por %p104, %p105
    %p107 = scmp.ne.s32.totalorder %s96, %s99
    %p108 = scmp.eq.s32.totalorder %s14, 1
    %p109 = por %p107, %p108
    %p110 = scmp.ne.s32.totalorder %s99, %s100
    %p111 = scmp.eq.s32.totalorder %s14, 0
    %p112 = por %p110, %p111
    %p113 = scmp.ne.s32.totalorder %s99, %s100
    %p114 = scmp.eq.s32.totalorder %s15, 1
    %p115 = por %p113, %p114
    %p117 = scmp.ne.s32.totalorder %s100, %s116
    %p118 = scmp.eq.s32.totalorder %s15, 0
    %p119 = por %p117, %p118
    %s120 = ssub.s32 %s16, %s35
    %s121 = ssub.s32 %s17, %s31
    %s122 = sor.u32 %s120, %s121
    %p123 = scmp.eq.s32.totalorder %s122, 0
    %s125 = sadd.s32 %s124, 1
    %s126 = scalar_select %p123, %s124, %s125
    %p129 = pneg %p123
    %p130 = scmp.eq.s32.totalorder %s9, 1
    %p131 = por %p129, %p130
    %p132 = scmp.ne.s32.totalorder %s124, %s127
    %p133 = scmp.eq.s32.totalorder %s9, 0
    %p134 = por %p132, %p133
    %p135 = scmp.ne.s32.totalorder %s124, %s127
    %p136 = scmp.eq.s32.totalorder %s14, 1
    %p137 = por %p135, %p136
    %p138 = scmp.ne.s32.totalorder %s127, %s128
    %p139 = scmp.eq.s32.totalorder %s14, 0
    %p140 = por %p138, %p139
    %p141 = scmp.ne.s32.totalorder %s127, %s128
    %p142 = scmp.eq.s32.totalorder %s15, 1
    %p143 = por %p141, %p142
    %p145 = scmp.ne.s32.totalorder %s128, %s144
    %p146 = scmp.eq.s32.totalorder %s15, 0
    %p147 = por %p145, %p146
    %p148 = scmp.le.s32.totalorder 1, %s9
    %p149 = scmp.lt.s32.totalorder %s9, 3
    %p150 = pnand %p148, %p149
    %p151 = pneg %p150
    // Predicated region
    $region9: #{transformer_forward.31} parent=5 // pred_check
      _
    $region10: #{transformer_forward.31} parent=5 // pred_check_branch
      %153 = sbr.rel (%p150) target = $region12
    $region11: #{transformer_forward.31} parent=5 // pred_region
      %s154 = ssub.s32 %s9, 1
    $region12: #{transformer_forward.31} parent=5 // pred_fallthru
      _
    %p155 = scmp.lt.s32.totalorder %s9, 2
    // Predicated region
    $region13: #{transformer_forward.31} parent=5 // pred_check
      %p156 = pneg %p155
    $region14: #{transformer_forward.31} parent=5 // pred_check_branch
      %158 = sbr.rel (%p156) target = $region16
    $region15: #{transformer_forward.31} parent=5 // pred_region
      // Predicated region
      $region17: #{transformer_forward.31} parent=15 // pred_check
        %p159 = pneg %p50
      $region18: #{transformer_forward.31} parent=15 // pred_check_branch
        %161 = sbr.rel (%p159) target = $region20
      $region19: #{transformer_forward.31} parent=15 // pred_region
        %p162 = scmp.lt.s32.totalorder %s16, 1
        %s163 = scalar_select %p162, %s16, 1
        %p164 = scmp.lt.s32.totalorder %s18, 0
        %s165 = scalar_select %p164, %s18, 0
        %s166 = sadd.s32 %s165, %s163
        %s167 = scalar_lea.vmem %s0, %s166
      $region20: #{transformer_forward.31} parent=15 // pred_fallthru
        _
      // Predicated region
      $region21: #{transformer_forward.31} parent=15 // pred_check
        %p168 = pneg %p78
      $region22: #{transformer_forward.31} parent=15 // pred_check_branch
        %170 = sbr.rel (%p168) target = $region24
      $region23: #{transformer_forward.31} parent=15 // pred_region
        %p171 = scmp.lt.s32.totalorder %s16, 1
        %s172 = scalar_select %p171, %s16, 1
        %p173 = scmp.lt.s32.totalorder %s17, 0
        %s174 = scalar_select %p173, %s17, 0
        %s175 = sadd.s32 %s174, %s172
        %s176 = smul.addr %s175, 4
        %s177 = scalar_lea.vmem %s1, %s176
      $region24: #{transformer_forward.31} parent=15 // pred_fallthru
        _
      // Predicated region
      $region25: #{transformer_forward.31} parent=15 // pred_check
        %p178 = pneg %p106
      $region26: #{transformer_forward.31} parent=15 // pred_check_branch
        %180 = sbr.rel (%p178) target = $region28
      $region27: #{transformer_forward.31} parent=15 // pred_region
        %p181 = scmp.lt.s32.totalorder %s16, 1
        %s182 = scalar_select %p181, %s16, 1
        %p183 = scmp.lt.s32.totalorder %s18, 0
        %s184 = scalar_select %p183, %s18, 0
        %s185 = sadd.s32 %s184, %s182
        %s186 = smul.addr %s185, 4
        %s187 = scalar_lea.vmem %s2, %s186
      $region28: #{transformer_forward.31} parent=15 // pred_fallthru
        _
    $region16: #{transformer_forward.31} parent=5 // pred_fallthru
      _
    %p188 = scmp.le.s32.totalorder 1, %s9
    %p189 = scmp.lt.s32.totalorder %s9, 3
    %p190 = pnand %p188, %p189
    %p191 = pneg %p190
    // Predicated region
    $region29: #{transformer_forward.31} parent=5 // pred_check
      _
    $region30: #{transformer_forward.31} parent=5 // pred_check_branch
      %193 = sbr.rel (%p190) target = $region32
    $region31: #{transformer_forward.31} parent=5 // pred_region
      %s194 = ssub.s32 %s9, 1
      %p195 = scmp.lt.s32.totalorder %s19, 1
      %s196 = scalar_select %p195, %s19, 1
      %p197 = scmp.lt.s32.totalorder %s21, 0
      %s198 = scalar_select %p197, %s21, 0
      %s199 = sadd.s32 %s198, %s196
      %s200 = scalar_lea.vmem %s0, %s199
      %p201 = pneg %p56
      %p202 = pneg %p53
      %p203 = scmp.lt.s32.totalorder %s19, 1
      %s204 = scalar_select %p203, %s19, 1
      %p205 = scmp.lt.s32.totalorder %s20, 0
      %s206 = scalar_select %p205, %s20, 0
      %s207 = sadd.s32 %s206, %s204
      %s208 = smul.addr %s207, 4
      %s209 = scalar_lea.vmem %s1, %s208
      %p210 = pneg %p84
      %p211 = pneg %p81
      %p212 = scmp.lt.s32.totalorder %s19, 1
      %s213 = scalar_select %p212, %s19, 1
      %p214 = scmp.lt.s32.totalorder %s21, 0
      %s215 = scalar_select %p214, %s21, 0
      %s216 = sadd.s32 %s215, %s213
      %s217 = smul.addr %s216, 4
      %s218 = scalar_lea.vmem %s2, %s217
      %p219 = pneg %p112
      %p220 = pneg %p109
      %p221 = pneg %p140
      %p222 = pneg %p137
      %p223 = scmp.lt.s32.totalorder %s19, 1
      %s224 = scalar_select %p223, %s19, 1
      %p225 = scmp.lt.s32.totalorder %s20, 0
      %s226 = scalar_select %p225, %s20, 0
      %s227 = sadd.s32 %s226, %s224
      %s228 = smul.addr %s227, 4
      %s229 = scalar_lea.vmem %s3, %s228
      %p230 = scmp.lt.s32.totalorder %s19, 1
      %s231 = scalar_select %p230, %s19, 1
      %p232 = scmp.lt.s32.totalorder %s21, 0
      %s233 = scalar_select %p232, %s21, 0
      %s234 = sadd.s32 %s233, %s231
      %s235 = scalar_lea.vmem %s0, %s234
      %p236 = scmp.lt.s32.totalorder %s19, 1
      %s237 = scalar_select %p236, %s19, 1
      %p238 = scmp.lt.s32.totalorder %s20, 0
      %s239 = scalar_select %p238, %s20, 0
      %s240 = sadd.s32 %s239, %s237
      %s241 = smul.addr %s240, 4
      %s242 = scalar_lea.vmem %s1, %s241
      %p243 = scmp.lt.s32.totalorder %s19, 1
      %s244 = scalar_select %p243, %s19, 1
      %p245 = scmp.lt.s32.totalorder %s21, 0
      %s246 = scalar_select %p245, %s21, 0
      %s247 = sadd.s32 %s246, %s244
      %s248 = smul.addr %s247, 4
      %s249 = scalar_lea.vmem %s2, %s248
      %p250 = scmp.lt.s32.totalorder %s19, 1
      %s251 = scalar_select %p250, %s19, 1
      %p252 = scmp.lt.s32.totalorder %s20, 0
      %s253 = scalar_select %p252, %s20, 0
      %s254 = sadd.s32 %s253, %s251
      %s255 = smul.addr %s254, 4
      %s256 = scalar_lea.vmem %s3, %s255
      %p258 = scmp.eq.s32.totalorder %s21, 0
      // Predicated region
      $region33: #{transformer_forward.31} parent=31 // pred_check
        %p259 = pneg %p258
      $region34: #{transformer_forward.31} parent=31 // pred_check_branch
        %261 = sbr.rel (%p259) target = $region36
      $region35: #{transformer_forward.31} parent=31 // pred_region
        %vm262 = vcmask 7168
        %263 = vst.msk [vmem:[#allocation2] sm:$0xff] %vm262, -inf
        %264 = vst.msk [vmem:[#allocation2 + $0x8] sm:$0xff] %vm262, -inf
        %265 = vst.msk [vmem:[#allocation3] sm:$0xff] %vm262, 0.0
        %266 = vst.msk [vmem:[#allocation3 + $0x8] sm:$0xff] %vm262, 0.0
        %vm267 = vcmask 130048
        %268 = vst.msk [vmem:[#allocation4] sm:$0xff] %vm267, 0.0
        %269 = vst.msk [vmem:[#allocation4 + $0x8] sm:$0xff] %vm267, 0.0
      $region36: #{transformer_forward.31} parent=31 // pred_fallthru
        _
      %v270 = vld [vmem:[%s242] sm:$0xf]
      %v271 = vld [vmem:[%s249] sm:$0xf]
      %s272 = smul.u32 %s21, 8
      %v273 = vlaneseq
      %v274 = vand.u32 %v273, 127
      %v275 = vstv %s272
      %v276 = vadd.s32 %v275, %v274
      %v277 = vld [vmem:[%s235] sm:$0x1]
      %vm278 = vcmp.gt.s32.totalorder %v277, 0
      %vm279 = vcmp.ge.s32.totalorder %v276, 8
      %v280 = vsel %vm278, 1, 0
      %v281 = vperm.slane %v280, 0
      %vm282 = vcmp.eq.s32.totalorder %v281, 1
      %vm283 = vmor %vm282, %vm279
      %vm284 = vcmask 130048
      %v286 = vsel %vm284, %v270, 0
      %v289 = vsel %vm284, %v271, 0
      %291 = vmatpush.bf16.xpose.msra.mxu0 0
      %292 = vmatpush.bf16.xpose.msra.mxu0 0
      %293 = vmatpush.bf16.xpose.msra.mxu0 0
      %294 = vmatpush.bf16.xpose.msra.mxu0 0
      %295 = vmatpush.bf16.xpose.msra.mxu0 0
      %296 = vmatpush.bf16.xpose.msra.mxu0 0
      %297 = vmatpush.bf16.xpose.msra.mxu0 0
      %298 = vmatpush.bf16.xpose.msra.mxu0 %v289
      %299 = vmatmul.bf16.gmra.mxu0 %v286
      %v300 = vpop.f32.mrf.mxu0
      %v301 = vadd.f32 0.0, %v300
      %v302 = vpop.f32.mrf.mxu0
      %303 = vdwg.mxu0
      %v304 = vsel %vm283, -1e+09, %v301
      %v305 = vld [vmem:[#allocation2] sm:$0xff]
      %vm306 = vcmask 64512
      %v307 = vsel %vm306, %v304, -inf
      %308 = vmax.xlane.f32.xlu0 %v307
      %v309 = vpop.xlane.xlu0 %308
      %v310 = vmax.f32 %v305, %v309
      %v311 = vsub.f32 %v305, %v310
      %v312 = vmul.f32 %v311, 1.442695
      %v313 = vpow.pop %v312
      %315 = vset.pattern.permute.xlu0 0
      %316 = vperm.xlu0 %315, %v310
      %v317 = vpop.permute.xlu0 %316
      %v319 = vsub.f32 %v304, %v317
      %v320 = vmul.f32 %v319, 1.442695
      %v321 = vpow.pop %v320
      %v322 = vld [vmem:[#allocation3] sm:$0xff]
      %v323 = vmul.f32 %v313, %v322
      %v324 = vsel %vm306, %v321, 0.0
      %325 = vadd.xlane.f32.xlu0 %v324
      %v326 = vpop.xlane.xlu0 %325
      %v327 = vadd.f32 %v323, %v326
      %vm328 = vcmask 7168
      %329 = vst.msk [vmem:[#allocation3] sm:$0xff] %vm328, %v327
      %v330 = vld [vmem:[#allocation4] sm:$0xff]
      %332 = vset.pattern.permute.xlu0 0
      %333 = vperm.xlu0 %332, %v313
      %v334 = vpop.permute.xlu0 %333
      %v336 = vmul.f32 %v334, %v330
      %v337 = vpack.c.bf16 %v321, %v321
      %v339 = vunpack.c.l.b16 %v271
      %v340 = vpack.c.b16 %v339, %v339
      %341 = vrot.lane.b32.xlu0 %v340, 96
      %v342 = vpop.permute.xlu0 %341
      %v344 = vsel %vm306, %v337, 0
      %vm346 = vcmask 1043456
      %v348 = vsel %vm346, %v342, 0
      %350 = vmatpush.bf16.msra.mxu0 0
      %351 = vmatpush.bf16.msra.mxu0 0
      %352 = vmatpush.bf16.msra.mxu0 0
      %353 = vmatpush.bf16.msra.mxu0 0
      %354 = vmatpush.bf16.msra.mxu0 0
      %355 = vmatpush.bf16.msra.mxu0 0
      %356 = vmatpush.bf16.msra.mxu0 0
      %357 = vmatpush.bf16.msra.mxu0 %v348
      %358 = vmatmul.bf16.gmra.mxu0 %v344
      %v359 = vpop.f32.mrf.mxu0
      %v360 = vadd.f32 0.0, %v359
      %v361 = vpop.f32.mrf.mxu0
      %362 = vdwg.mxu0
      %v363 = vadd.f32 %v336, %v360
      %364 = vst.msk [vmem:[#allocation4] sm:$0xff] %vm284, %v363
      %365 = vst.msk [vmem:[#allocation2] sm:$0xff] %vm328, %v310
      %v367 = vunpack.c.l.b16 %v270
      %v368 = vpack.c.b16 %v367, %v367
      %369 = vrot.lane.b32.xlu0 %v368, 112
      %v370 = vpop.permute.xlu0 %369
      %371 = vrot.lane.b32.xlu0 %v340, 112
      %v372 = vpop.permute.xlu0 %371
      %v374 = vsel %vm284, %v370, 0
      %v377 = vsel %vm284, %v372, 0
      %379 = vmatpush.bf16.xpose.msra.mxu0 0
      %380 = vmatpush.bf16.xpose.msra.mxu0 0
      %381 = vmatpush.bf16.xpose.msra.mxu0 0
      %382 = vmatpush.bf16.xpose.msra.mxu0 0
      %383 = vmatpush.bf16.xpose.msra.mxu0 0
      %384 = vmatpush.bf16.xpose.msra.mxu0 0
      %385 = vmatpush.bf16.xpose.msra.mxu0 0
      %386 = vmatpush.bf16.xpose.msra.mxu0 %v377
      %387 = vmatmul.bf16.gmra.mxu0 %v374
      %v388 = vpop.f32.mrf.mxu0
      %v389 = vadd.f32 0.0, %v388
      %v390 = vpop.f32.mrf.mxu0
      %391 = vdwg.mxu0
      %v392 = vsel %vm283, -1e+09, %v389
      %s393 = scalar_lea.vmem [#allocation2], 8
      %v394 = vld [vmem:[%s393] sm:$0xff]
      %v395 = vsel %vm306, %v392, -inf
      %396 = vmax.xlane.f32.xlu0 %v395
      %v397 = vpop.xlane.xlu0 %396
      %v398 = vmax.f32 %v394, %v397
      %v399 = vsub.f32 %v394, %v398
      %v400 = vmul.f32 %v399, 1.442695
      %v401 = vpow.pop %v400
      %403 = vset.pattern.permute.xlu0 0
      %404 = vperm.xlu0 %403, %v398
      %v405 = vpop.permute.xlu0 %404
      %v407 = vsub.f32 %v392, %v405
      %v408 = vmul.f32 %v407, 1.442695
      %v409 = vpow.pop %v408
      %s410 = scalar_lea.vmem [#allocation3], 8
      %v411 = vld [vmem:[%s410] sm:$0xff]
      %v412 = vmul.f32 %v401, %v411
      %v413 = vsel %vm306, %v409, 0.0
      %414 = vadd.xlane.f32.xlu0 %v413
      %v415 = vpop.xlane.xlu0 %414
      %v416 = vadd.f32 %v412, %v415
      %417 = vst.msk [vmem:[%s410] sm:$0xff] %vm328, %v416
      %s418 = scalar_lea.vmem [#allocation4], 8
      %v419 = vld [vmem:[%s418] sm:$0xff]
      %421 = vset.pattern.permute.xlu0 0
      %422 = vperm.xlu0 %421, %v401
      %v423 = vpop.permute.xlu0 %422
      %v425 = vmul.f32 %v423, %v419
      %v426 = vpack.c.bf16 %v409, %v409
      %427 = vrot.lane.b32.xlu0 %v340, 80
      %v428 = vpop.permute.xlu0 %427
      %v430 = vsel %vm306, %v426, 0
      %v433 = vsel %vm346, %v428, 0
      %435 = vmatpush.bf16.msra.mxu0 0
      %436 = vmatpush.bf16.msra.mxu0 0
      %437 = vmatpush.bf16.msra.mxu0 0
      %438 = vmatpush.bf16.msra.mxu0 0
      %439 = vmatpush.bf16.msra.mxu0 0
      %440 = vmatpush.bf16.msra.mxu0 0
      %441 = vmatpush.bf16.msra.mxu0 0
      %442 = vmatpush.bf16.msra.mxu0 %v433
      %443 = vmatmul.bf16.gmra.mxu0 %v430
      %v444 = vpop.f32.mrf.mxu0
      %v445 = vadd.f32 0.0, %v444
      %v446 = vpop.f32.mrf.mxu0
      %447 = vdwg.mxu0
      %v448 = vadd.f32 %v425, %v445
      %449 = vst.msk [vmem:[%s418] sm:$0xff] %vm284, %v448
      %450 = vst.msk [vmem:[%s393] sm:$0xff] %vm328, %v398
      // Predicated region
      $region37: #{transformer_forward.31} parent=31 // pred_check
        %p451 = pneg %p258
      $region38: #{transformer_forward.31} parent=31 // pred_check_branch
        %453 = sbr.rel (%p451) target = $region40
      $region39: #{transformer_forward.31} parent=31 // pred_region
        %v454 = vld [vmem:[#allocation3] sm:$0xff]
        %v455 = vrcp.pop %v454
        %v456 = vld [vmem:[#allocation4] sm:$0xff]
        %458 = vset.pattern.permute.xlu0 0
        %459 = vperm.xlu0 %458, %v455
        %v460 = vpop.permute.xlu0 %459
        %v462 = vmul.f32 %v456, %v460
        %v463 = vpack.c.bf16 %v462, %v462
        %vm464 = vcmask 125952
        %465 = vst.msk [vmem:[%s256] sm:$0xf] %vm464, %v463
        %v466 = vld [vmem:[%s410] sm:$0xff]
        %v467 = vrcp.pop %v466
        %v468 = vld [vmem:[%s418] sm:$0xff]
        %470 = vset.pattern.permute.xlu0 0
        %471 = vperm.xlu0 %470, %v467
        %v472 = vpop.permute.xlu0 %471
        %v474 = vmul.f32 %v468, %v472
        %v475 = vpack.c.bf16 %v474, %v474
        %477 = vrot.lane.b32.xlu0 %v475, 16
        %v478 = vpop.permute.xlu0 %477
        %vm480 = vcmask 257152
        %481 = vst.msk [vmem:[%s256] sm:$0xf] %vm480, %v478
      $region40: #{transformer_forward.31} parent=31 // pred_fallthru
        _
      %p482 = scmp.lt.s32.totalorder %s19, 1
      %s483 = scalar_select %p482, %s19, 1
      %p484 = scmp.lt.s32.totalorder %s20, 0
      %s485 = scalar_select %p484, %s20, 0
      %s486 = sadd.s32 %s485, %s483
      %s487 = smul.addr %s486, 4
      %s488 = scalar_lea.vmem %s3, %s487
      // Predicated region
      $region41: #{transformer_forward.31} parent=31 // pred_check
        %p489 = pneg %p137
      $region42: #{transformer_forward.31} parent=31 // pred_check_branch
        %491 = sbr.rel (%p489) target = $region44
      $region43: #{transformer_forward.31} parent=31 // pred_region
        _
      $region44: #{transformer_forward.31} parent=31 // pred_fallthru
        _
    $region32: #{transformer_forward.31} parent=5 // pred_fallthru
      _
    %p492 = scmp.le.s32.totalorder 2, %s9
    // Predicated region
    $region45: #{transformer_forward.31} parent=5 // pred_check
      %p493 = pneg %p492
    $region46: #{transformer_forward.31} parent=5 // pred_check_branch
      %495 = sbr.rel (%p493) target = $region48
    $region47: #{transformer_forward.31} parent=5 // pred_region
      %s496 = ssub.s32 %s9, 2
      // Predicated region
      $region49: #{transformer_forward.31} parent=47 // pred_check
        %p497 = pneg %p143
      $region50: #{transformer_forward.31} parent=47 // pred_check_branch
        %499 = sbr.rel (%p497) target = $region52
      $region51: #{transformer_forward.31} parent=47 // pred_region
        %p500 = scmp.lt.s32.totalorder %s22, 1
        %s501 = scalar_select %p500, %s22, 1
        %p502 = scmp.lt.s32.totalorder %s23, 0
        %s503 = scalar_select %p502, %s23, 0
        %s504 = sadd.s32 %s503, %s501
        %s505 = smul.addr %s504, 4
        %s506 = scalar_lea.vmem %s3, %s505
      $region52: #{transformer_forward.31} parent=47 // pred_fallthru
        _
    $region48: #{transformer_forward.31} parent=5 // pred_fallthru
      _
  $region6: #{transformer_forward.31} parent=0 // loop_footer
    %s13 = sadd.s32 1, %s9
  $region7: #{transformer_forward.31} parent=0 // loop_footer_branch
    %8 = sbr.rel target = $region3
  $region8: #{transformer_forward.31} parent=0 // loop_exit
    _

// kernel: transformer_forward.32
$region0: #{transformer_forward.32}
  #allocation0 [shape = 'u32[]', space=smem, size = 0x4, offset = 0x4, fixed_abs, tag = 'smem constant byte address 0x4 - core index']
  #allocation1 [shape = 'u32[72,128]{1,0:T(1,128)}', space=vmem, size = 0x9000, scoped, tag = 'internal scratch']
  %s0 = inlined_call_operand.vmem [shape: bf16[16,32], index: 0, kind: input, shape index: {}]
  %s1 = inlined_call_operand.vmem [shape: bf16[16,32], index: 1, kind: input, shape index: {}]
  %s2 = inlined_call_operand.vmem [shape: f32[16,1], index: 2, kind: input, shape index: {}]
  %s3 = inlined_call_operand.vmem [shape: bf16[32,32], index: 3, kind: input, shape index: {}]
  %s4 = inlined_call_operand.vmem [shape: f32[3,32], index: 4, kind: input, shape index: {}]
  %s5 = inlined_call_operand.vmem [shape: bf16[16,32], index: 5, kind: output, shape index: {}]
  %s6 = sld [smem:[#allocation0]]
  $region30: #{transformer_forward.32} parent=0
    _
  %s8 = ssub.s32 1, %s6
  %s9 = scalar_select 0, %s8, %s6
  // Predicated region
  $region2: #{transformer_forward.32} parent=0 // pred_check
    _
  $region3: #{transformer_forward.32} parent=0 // pred_check_branch
    %11 = sbr.rel (0) target = $region5
  $region4: #{transformer_forward.32} parent=0 // pred_region
    _
  $region5: #{transformer_forward.32} parent=0 // pred_fallthru
    _
  // Predicated region
  $region6: #{transformer_forward.32} parent=0 // pred_check
    _
  $region7: #{transformer_forward.32} parent=0 // pred_check_branch
    %13 = sbr.rel (0) target = $region9
  $region8: #{transformer_forward.32} parent=0 // pred_region
    _
  $region9: #{transformer_forward.32} parent=0 // pred_fallthru
    _
  // Predicated region
  $region10: #{transformer_forward.32} parent=0 // pred_check
    _
  $region11: #{transformer_forward.32} parent=0 // pred_check_branch
    %15 = sbr.rel (0) target = $region13
  $region12: #{transformer_forward.32} parent=0 // pred_region
    _
  $region13: #{transformer_forward.32} parent=0 // pred_fallthru
    _
  // Predicated region
  $region14: #{transformer_forward.32} parent=0 // pred_check
    _
  $region15: #{transformer_forward.32} parent=0 // pred_check_branch
    %17 = sbr.rel (0) target = $region17
  $region16: #{transformer_forward.32} parent=0 // pred_region
    _
  $region17: #{transformer_forward.32} parent=0 // pred_fallthru
    _
  // Predicated region
  $region18: #{transformer_forward.32} parent=0 // pred_check
    _
  $region19: #{transformer_forward.32} parent=0 // pred_check_branch
    %19 = sbr.rel (0) target = $region21
  $region20: #{transformer_forward.32} parent=0 // pred_region
    _
  $region21: #{transformer_forward.32} parent=0 // pred_fallthru
    _
  %v21 = vld [vmem:[%s0] sm:$0xf]
  %v22 = vld [vmem:[%s0 + $0x4] sm:$0xf]
  %v23 = vld [vmem:[%s3] sm:$0xf]
  %v24 = vld [vmem:[%s3 + $0x4] sm:$0xf]
  %v25 = vld [vmem:[%s3 + $0x8] sm:$0xf]
  %v26 = vld [vmem:[%s3 + $0xc] sm:$0xf]
  %v27 = vld [vmem:[%s4] sm:$0x7]
  %v28 = vperm.slane %v27, 0
  %v31 = vunpack.c.l.b16 %v21
  %v32 = vunpack.c.l.b16 %v22
  %v33 = vpack.c.b16 %v32, %v31
  %v38 = vunpack.c.l.b16 %v23
  %v39 = vunpack.c.l.b16 %v24
  %v40 = vunpack.c.l.b16 %v25
  %v41 = vunpack.c.l.b16 %v26
  %v42 = vpack.c.b16 %v39, %v38
  %v43 = vpack.c.b16 %v41, %v40
  %vm46 = vcmask 261120
  %v48 = vsel %vm46, %v33, 0
  %50 = vmatpush.bf16.msra.mxu0 0
  %51 = vmatpush.bf16.msra.mxu0 0
  %52 = vmatpush.bf16.msra.mxu0 0
  %53 = vmatpush.bf16.msra.mxu0 0
  %54 = vmatpush.bf16.msra.mxu0 0
  %55 = vmatpush.bf16.msra.mxu0 0
  %56 = vmatpush.bf16.msra.mxu0 %v43
  %57 = vmatpush.bf16.msra.mxu0 %v42
  %58 = vmatmul.bf16.gmra.mxu0 %v48
  %v59 = vpop.f32.mrf.mxu0
  %v60 = vadd.f32 %v28, %v59
  %v61 = vpop.f32.mrf.mxu0
  %v62 = vadd.f32 %v28, %v61
  %63 = vdwg.mxu0
  %v64 = vld [vmem:[%s1] sm:$0xf]
  %v65 = vld [vmem:[%s1 + $0x4] sm:$0xf]
  %v66 = vunpack.c.l.bf16 %v64
  %v67 = vunpack.c.l.bf16 %v65
  %v68 = vadd.f32 %v60, %v66
  %v69 = vadd.f32 %v62, %v67
  %v70 = vsel %vm46, %v68, 0.0
  %71 = vadd.xlane.f32.xlu0 %v70
  %v72 = vpop.xlane.xlu0 %71
  %v73 = vsel %vm46, %v69, 0.0
  %74 = vadd.xlane.f32.xlu0 %v73
  %v75 = vpop.xlane.xlu0 %74
  %v76 = vrcp.pop 32.0
  %v77 = vmul.f32 32.0, %v76
  %v78 = vsub.f32 1.0, %v77
  %v79 = vmul.f32 %v76, %v78
  %v80 = vadd.f32 %v76, %v79
  %vm81 = vweird.f32 %v76
  %v82 = vsel %vm81, %v76, %v80
  %v83 = vmul.f32 %v72, %v82
  %v84 = vmul.f32 %v75, %v82
  %v85 = vsub.f32 %v68, %v83
  %v86 = vsub.f32 %v69, %v84
  %v87 = vmul.f32 %v85, %v85
  %v88 = vmul.f32 %v86, %v86
  %v89 = vsel %vm46, %v87, 0.0
  %90 = vadd.xlane.f32.xlu0 %v89
  %v91 = vpop.xlane.xlu0 %90
  %v92 = vsel %vm46, %v88, 0.0
  %93 = vadd.xlane.f32.xlu0 %v92
  %v94 = vpop.xlane.xlu0 %93
  %v95 = vmul.f32 %v91, %v82
  %v96 = vmul.f32 %v94, %v82
  %v97 = vadd.f32 %v95, 1e-05
  %v98 = vadd.f32 %v96, 1e-05
  %v99 = vrsqrt.pop %v97
  %v100 = vmul.f32 %v99, %v97
  %v101 = vmul.f32 %v100, %v99
  %v102 = vmul.f32 0.5, %v101
  %v103 = vsub.f32 1.5, %v102
  %v104 = vmul.f32 %v99, %v103
  %vm105 = vweird.f32 %v97
  %vm106 = vweird.f32 %v99
  %vm107 = vmor %vm105, %vm106
  %v108 = vsel %vm107, %v99, %v104
  %v109 = vrsqrt.pop %v98
  %v110 = vmul.f32 %v109, %v98
  %v111 = vmul.f32 %v110, %v109
  %v112 = vmul.f32 0.5, %v111
  %v113 = vsub.f32 1.5, %v112
  %v114 = vmul.f32 %v109, %v113
  %vm115 = vweird.f32 %v98
  %vm116 = vweird.f32 %v109
  %vm117 = vmor %vm115, %vm116
  %v118 = vsel %vm117, %v109, %v114
  %v119 = vmul.f32 %v85, %v108
  %v120 = vmul.f32 %v86, %v118
  %v121 = vperm.slane %v27, 1
  %v122 = vmul.f32 %v119, %v121
  %v123 = vmul.f32 %v120, %v121
  %v124 = vperm.slane %v27, 2
  %v125 = vadd.f32 %v122, %v124
  %v126 = vadd.f32 %v123, %v124
  %v127 = vld [vmem:[%s2] sm:$0xff]
  %v128 = vld [vmem:[%s2 + $0x8] sm:$0xff]
  %130 = vset.pattern.permute.xlu0 0
  %131 = vperm.xlu0 %130, %v127
  %v132 = vpop.permute.xlu0 %131
  %135 = vset.pattern.permute.xlu0 0
  %136 = vperm.xlu0 %135, %v128
  %v137 = vpop.permute.xlu0 %136
  %v139 = vmul.f32 %v125, %v132
  %v140 = vmul.f32 %v126, %v137
  %v141 = vpack.c.bf16 %v139, %v139
  %v142 = vpack.c.bf16 %v140, %v140
  %vm143 = vcmask 257024
  %144 = vst.msk [vmem:[%s5] sm:$0xf] %vm143, %v141
  %145 = vst.msk [vmem:[%s5 + $0x4] sm:$0xf] %vm143, %v142
  // Predicated region
  $region22: #{transformer_forward.32} parent=0 // pred_check
    _
  $region23: #{transformer_forward.32} parent=0 // pred_check_branch
    %147 = sbr.rel (0) target = $region25
  $region24: #{transformer_forward.32} parent=0 // pred_region
    _
  $region25: #{transformer_forward.32} parent=0 // pred_fallthru
    _
  // Predicated region
  $region26: #{transformer_forward.32} parent=0 // pred_check
    _
  $region27: #{transformer_forward.32} parent=0 // pred_check_branch
    %149 = sbr.rel (0) target = $region29
  $region28: #{transformer_forward.32} parent=0 // pred_region
    _
  $region29: #{transformer_forward.32} parent=0 // pred_fallthru
    _

// kernel: transformer_forward.33
$region0: #{transformer_forward.33}
  #allocation0 [shape = 'u32[]', space=smem, size = 0x4, offset = 0x4, fixed_abs, tag = 'smem constant byte address 0x4 - core index']
  #allocation1 [shape = 'u32[72,128]{1,0:T(1,128)}', space=vmem, size = 0x9000, scoped, tag = 'internal scratch']
  #allocation2 [shape = 'f32[16,32]{1,0:T(8,128)}', space=vmem, size = 0x2000, scoped, tag = 'scratch operand']
  %s0 = inlined_call_operand.vmem [shape: bf16[16,32], index: 0, kind: input, shape index: {}]
  %s1 = inlined_call_operand.vmem [shape: f32[16,1], index: 1, kind: input, shape index: {}]
  %s2 = inlined_call_operand.vmem [shape: bf16[32,64], index: 2, kind: input, shape index: {}]
  %s3 = inlined_call_operand.vmem [shape: f32[1,64], index: 3, kind: input, shape index: {}]
  %s4 = inlined_call_operand.vmem [shape: bf16[64,32], index: 4, kind: input, shape index: {}]
  %s5 = inlined_call_operand.vmem [shape: f32[3,32], index: 5, kind: input, shape index: {}]
  %s6 = inlined_call_operand.vmem [shape: bf16[16,32], index: 6, kind: output, shape index: {}]
  %s7 = sld [smem:[#allocation0]]
  $region42: #{transformer_forward.33} parent=0
    _
  %s9 = ssub.s32 1, %s7
  %s10 = scalar_select 0, %s9, %s7
  // Predicated region
  $region2: #{transformer_forward.33} parent=0 // pred_check
    _
  $region3: #{transformer_forward.33} parent=0 // pred_check_branch
    %12 = sbr.rel (0) target = $region5
  $region4: #{transformer_forward.33} parent=0 // pred_region
    _
  $region5: #{transformer_forward.33} parent=0 // pred_fallthru
    _
  // Predicated region
  $region6: #{transformer_forward.33} parent=0 // pred_check
    _
  $region7: #{transformer_forward.33} parent=0 // pred_check_branch
    %14 = sbr.rel (0) target = $region9
  $region8: #{transformer_forward.33} parent=0 // pred_region
    _
  $region9: #{transformer_forward.33} parent=0 // pred_fallthru
    _
  // Predicated region
  $region10: #{transformer_forward.33} parent=0 // pred_check
    _
  $region11: #{transformer_forward.33} parent=0 // pred_check_branch
    %16 = sbr.rel (0) target = $region13
  $region12: #{transformer_forward.33} parent=0 // pred_region
    _
  $region13: #{transformer_forward.33} parent=0 // pred_fallthru
    _
  // Predicated region
  $region14: #{transformer_forward.33} parent=0 // pred_check
    _
  $region15: #{transformer_forward.33} parent=0 // pred_check_branch
    %18 = sbr.rel (0) target = $region17
  $region16: #{transformer_forward.33} parent=0 // pred_region
    _
  $region17: #{transformer_forward.33} parent=0 // pred_fallthru
    _
  // Predicated region
  $region18: #{transformer_forward.33} parent=0 // pred_check
    _
  $region19: #{transformer_forward.33} parent=0 // pred_check_branch
    %20 = sbr.rel (0) target = $region21
  $region20: #{transformer_forward.33} parent=0 // pred_region
    _
  $region21: #{transformer_forward.33} parent=0 // pred_fallthru
    _
  // Predicated region
  $region22: #{transformer_forward.33} parent=0 // pred_check
    _
  $region23: #{transformer_forward.33} parent=0 // pred_check_branch
    %22 = sbr.rel (0) target = $region25
  $region24: #{transformer_forward.33} parent=0 // pred_region
    _
  $region25: #{transformer_forward.33} parent=0 // pred_fallthru
    _
  %p24 = scmp.eq.s32.totalorder 0, 0
  // Predicated region
  $region26: #{transformer_forward.33} parent=0 // pred_check
    %p25 = pneg %p24
  $region27: #{transformer_forward.33} parent=0 // pred_check_branch
    %27 = sbr.rel (%p25) target = $region29
  $region28: #{transformer_forward.33} parent=0 // pred_region
    %vm28 = vcmask 261120
    %29 = vst.msk [vmem:[#allocation2] sm:$0xff] %vm28, 0.0
    %30 = vst.msk [vmem:[#allocation2 + $0x8] sm:$0xff] %vm28, 0.0
  $region29: #{transformer_forward.33} parent=0 // pred_fallthru
    _
  %v31 = vld [vmem:[%s0] sm:$0xf]
  %v32 = vld [vmem:[%s0 + $0x4] sm:$0xf]
  %v33 = vld [vmem:[%s2] sm:$0xf]
  %v34 = vld [vmem:[%s2 + $0x4] sm:$0xf]
  %v35 = vld [vmem:[%s2 + $0x8] sm:$0xf]
  %v36 = vld [vmem:[%s2 + $0xc] sm:$0xf]
  %v37 = vld [vmem:[%s3] sm:$0x1]
  %v39 = vperm.slane %v37, 0
  %v43 = vunpack.c.l.b16 %v31
  %v44 = vunpack.c.l.b16 %v32
  %v45 = vpack.c.b16 %v44, %v43
  %v50 = vunpack.c.l.b16 %v33
  %v51 = vunpack.c.l.b16 %v34
  %v52 = vunpack.c.l.b16 %v35
  %v53 = vunpack.c.l.b16 %v36
  %v54 = vpack.c.b16 %v51, %v50
  %v55 = vpack.c.b16 %v53, %v52
  %vm58 = vcmask 261120
  %v60 = vsel %vm58, %v45, 0
  %62 = vmatpush.bf16.msra.mxu0 0
  %63 = vmatpush.bf16.msra.mxu0 0
  %64 = vmatpush.bf16.msra.mxu0 0
  %65 = vmatpush.bf16.msra.mxu0 0
  %66 = vmatpush.bf16.msra.mxu0 0
  %67 = vmatpush.bf16.msra.mxu0 0
  %68 = vmatpush.bf16.msra.mxu0 %v55
  %69 = vmatpush.bf16.msra.mxu0 %v54
  %70 = vmatmul.bf16.gmra.mxu0 %v60
  %v71 = vpop.f32.mrf.mxu0
  %v72 = vadd.f32 %v39, %v71
  %v73 = vpop.f32.mrf.mxu0
  %v74 = vadd.f32 %v39, %v73
  %75 = vdwg.mxu0
  %v76 = vmax.f32 %v72, 0.0
  %v77 = vmax.f32 %v74, 0.0
  %v78 = vld [vmem:[%s4] sm:$0xf]
  %v79 = vld [vmem:[%s4 + $0x4] sm:$0xf]
  %v80 = vld [vmem:[%s4 + $0x8] sm:$0xf]
  %v81 = vld [vmem:[%s4 + $0xc] sm:$0xf]
  %v82 = vld [vmem:[%s4 + $0x10] sm:$0xf]
  %v83 = vld [vmem:[%s4 + $0x14] sm:$0xf]
  %v84 = vld [vmem:[%s4 + $0x18] sm:$0xf]
  %v85 = vld [vmem:[%s4 + $0x1c] sm:$0xf]
  %v86 = vld [vmem:[#allocation2] sm:$0xff]
  %v87 = vld [vmem:[#allocation2 + $0x8] sm:$0xff]
  %v88 = vpack.c.bf16 %v77, %v76
  %v97 = vunpack.c.l.b16 %v78
  %v98 = vunpack.c.l.b16 %v79
  %v99 = vunpack.c.l.b16 %v80
  %v100 = vunpack.c.l.b16 %v81
  %v101 = vunpack.c.l.b16 %v82
  %v102 = vunpack.c.l.b16 %v83
  %v103 = vunpack.c.l.b16 %v84
  %v104 = vunpack.c.l.b16 %v85
  %v105 = vpack.c.b16 %v98, %v97
  %v106 = vpack.c.b16 %v100, %v99
  %v107 = vpack.c.b16 %v102, %v101
  %v108 = vpack.c.b16 %v104, %v103
  %vm113 = vcmask 523264
  %v115 = vsel %vm113, %v88, 0
  %117 = vmatpush.bf16.msra.mxu0 0
  %118 = vmatpush.bf16.msra.mxu0 0
  %119 = vmatpush.bf16.msra.mxu0 0
  %120 = vmatpush.bf16.msra.mxu0 0
  %121 = vmatpush.bf16.msra.mxu0 %v108
  %122 = vmatpush.bf16.msra.mxu0 %v107
  %123 = vmatpush.bf16.msra.mxu0 %v106
  %124 = vmatpush.bf16.msra.mxu0 %v105
  %125 = vmatmul.bf16.gmra.mxu0 %v115
  %v126 = vpop.f32.mrf.mxu0
  %v127 = vadd.f32 0.0, %v126
  %v128 = vpop.f32.mrf.mxu0
  %v129 = vadd.f32 0.0, %v128
  %130 = vdwg.mxu0
  %v131 = vadd.f32 %v86, %v127
  %v132 = vadd.f32 %v87, %v129
  %133 = vst.msk [vmem:[#allocation2] sm:$0xff] %vm58, %v131
  %134 = vst.msk [vmem:[#allocation2 + $0x8] sm:$0xff] %vm58, %v132
  // Predicated region
  $region30: #{transformer_forward.33} parent=0 // pred_check
    %p135 = pneg %p24
  $region31: #{transformer_forward.33} parent=0 // pred_check_branch
    %137 = sbr.rel (%p135) target = $region33
  $region32: #{transformer_forward.33} parent=0 // pred_region
    %v138 = vld [vmem:[%s5] sm:$0x7]
    %v139 = vld [vmem:[#allocation2] sm:$0xff]
    %v140 = vld [vmem:[#allocation2 + $0x8] sm:$0xff]
    %v141 = vperm.slane %v138, 0
    %v142 = vadd.f32 %v139, %v141
    %v143 = vadd.f32 %v140, %v141
    %v144 = vunpack.c.l.bf16 %v31
    %v145 = vunpack.c.l.bf16 %v32
    %v146 = vadd.f32 %v142, %v144
    %v147 = vadd.f32 %v143, %v145
    %v148 = vsel %vm58, %v146, 0.0
    %149 = vadd.xlane.f32.xlu0 %v148
    %v150 = vpop.xlane.xlu0 %149
    %v151 = vsel %vm58, %v147, 0.0
    %152 = vadd.xlane.f32.xlu0 %v151
    %v153 = vpop.xlane.xlu0 %152
    %v154 = vrcp.pop 32.0
    %v155 = vmul.f32 32.0, %v154
    %v156 = vsub.f32 1.0, %v155
    %v157 = vmul.f32 %v154, %v156
    %v158 = vadd.f32 %v154, %v157
    %vm159 = vweird.f32 %v154
    %v160 = vsel %vm159, %v154, %v158
    %v161 = vmul.f32 %v150, %v160
    %v162 = vmul.f32 %v153, %v160
    %v163 = vsub.f32 %v146, %v161
    %v164 = vsub.f32 %v147, %v162
    %v165 = vmul.f32 %v163, %v163
    %v166 = vmul.f32 %v164, %v164
    %v167 = vsel %vm58, %v165, 0.0
    %168 = vadd.xlane.f32.xlu0 %v167
    %v169 = vpop.xlane.xlu0 %168
    %v170 = vsel %vm58, %v166, 0.0
    %171 = vadd.xlane.f32.xlu0 %v170
    %v172 = vpop.xlane.xlu0 %171
    %v173 = vmul.f32 %v169, %v160
    %v174 = vmul.f32 %v172, %v160
    %v175 = vadd.f32 %v173, 1e-05
    %v176 = vadd.f32 %v174, 1e-05
    %v177 = vrsqrt.pop %v175
    %v178 = vmul.f32 %v177, %v175
    %v179 = vmul.f32 %v178, %v177
    %v180 = vmul.f32 0.5, %v179
    %v181 = vsub.f32 1.5, %v180
    %v182 = vmul.f32 %v177, %v181
    %vm183 = vweird.f32 %v175
    %vm184 = vweird.f32 %v177
    %vm185 = vmor %vm183, %vm184
    %v186 = vsel %vm185, %v177, %v182
    %v187 = vrsqrt.pop %v176
    %v188 = vmul.f32 %v187, %v176
    %v189 = vmul.f32 %v188, %v187
    %v190 = vmul.f32 0.5, %v189
    %v191 = vsub.f32 1.5, %v190
    %v192 = vmul.f32 %v187, %v191
    %vm193 = vweird.f32 %v176
    %vm194 = vweird.f32 %v187
    %vm195 = vmor %vm193, %vm194
    %v196 = vsel %vm195, %v187, %v192
    %v197 = vmul.f32 %v163, %v186
    %v198 = vmul.f32 %v164, %v196
    %v199 = vperm.slane %v138, 1
    %v200 = vmul.f32 %v197, %v199
    %v201 = vmul.f32 %v198, %v199
    %v202 = vperm.slane %v138, 2
    %v203 = vadd.f32 %v200, %v202
    %v204 = vadd.f32 %v201, %v202
    %v205 = vld [vmem:[%s1] sm:$0xff]
    %v206 = vld [vmem:[%s1 + $0x8] sm:$0xff]
    %208 = vset.pattern.permute.xlu0 0
    %209 = vperm.xlu0 %208, %v205
    %v210 = vpop.permute.xlu0 %209
    %213 = vset.pattern.permute.xlu0 0
    %214 = vperm.xlu0 %213, %v206
    %v215 = vpop.permute.xlu0 %214
    %v217 = vmul.f32 %v203, %v210
    %v218 = vmul.f32 %v204, %v215
    %v219 = vpack.c.bf16 %v217, %v217
    %v220 = vpack.c.bf16 %v218, %v218
    %vm221 = vcmask 257024
    %222 = vst.msk [vmem:[%s6] sm:$0xf] %vm221, %v219
    %223 = vst.msk [vmem:[%s6 + $0x4] sm:$0xf] %vm221, %v220
  $region33: #{transformer_forward.33} parent=0 // pred_fallthru
    _
  // Predicated region
  $region34: #{transformer_forward.33} parent=0 // pred_check
    _
  $region35: #{transformer_forward.33} parent=0 // pred_check_branch
    %225 = sbr.rel (0) target = $region37
  $region36: #{transformer_forward.33} parent=0 // pred_region
    _
  $region37: #{transformer_forward.33} parent=0 // pred_fallthru
    _
  // Predicated region
  $region38: #{transformer_forward.33} parent=0 // pred_check
    _
  $region39: #{transformer_forward.33} parent=0 // pred_check_branch
    %227 = sbr.rel (0) target = $region41
  $region40: #{transformer_forward.33} parent=0 // pred_region
    _
  $region41: #{transformer_forward.33} parent=0 // pred_fallthru
    _

// kernel: transformer_forward.39
$region0: #{transformer_forward.39}
  #allocation0 [shape = 'u32[]', space=smem, size = 0x4, offset = 0x4, fixed_abs, tag = 'smem constant byte address 0x4 - core index']
  #allocation1 [shape = 'u32[72,128]{1,0:T(1,128)}', space=vmem, size = 0x9000, scoped, tag = 'internal scratch']
  %s0 = inlined_call_operand.vmem [shape: bf16[14,32], index: 0, kind: input, shape index: {}]
  %s1 = inlined_call_operand.vmem [shape: bf16[32,32], index: 1, kind: input, shape index: {}]
  %s2 = inlined_call_operand.vmem [shape: f32[1,32], index: 2, kind: input, shape index: {}]
  %s3 = inlined_call_operand.vmem [shape: bf16[14,32], index: 3, kind: output, shape index: {}]
  %s4 = sld [smem:[#allocation0]]
  $region22: #{transformer_forward.39} parent=0
    _
  %s6 = ssub.s32 1, %s4
  %s7 = scalar_select 0, %s6, %s4
  // Predicated region
  $region2: #{transformer_forward.39} parent=0 // pred_check
    _
  $region3: #{transformer_forward.39} parent=0 // pred_check_branch
    %9 = sbr.rel (0) target = $region5
  $region4: #{transformer_forward.39} parent=0 // pred_region
    _
  $region5: #{transformer_forward.39} parent=0 // pred_fallthru
    _
  // Predicated region
  $region6: #{transformer_forward.39} parent=0 // pred_check
    _
  $region7: #{transformer_forward.39} parent=0 // pred_check_branch
    %11 = sbr.rel (0) target = $region9
  $region8: #{transformer_forward.39} parent=0 // pred_region
    _
  $region9: #{transformer_forward.39} parent=0 // pred_fallthru
    _
  // Predicated region
  $region10: #{transformer_forward.39} parent=0 // pred_check
    _
  $region11: #{transformer_forward.39} parent=0 // pred_check_branch
    %13 = sbr.rel (0) target = $region13
  $region12: #{transformer_forward.39} parent=0 // pred_region
    _
  $region13: #{transformer_forward.39} parent=0 // pred_fallthru
    _
  %v15 = vld [vmem:[%s0] sm:$0xf]
  %v16 = vld [vmem:[%s0 + $0x4] sm:$0x7]
  %v17 = vld [vmem:[%s1] sm:$0xf]
  %v18 = vld [vmem:[%s1 + $0x4] sm:$0xf]
  %v19 = vld [vmem:[%s1 + $0x8] sm:$0xf]
  %v20 = vld [vmem:[%s1 + $0xc] sm:$0xf]
  %v21 = vld [vmem:[%s2] sm:$0x1]
  %v23 = vperm.slane %v21, 0
  %v27 = vunpack.c.l.b16 %v15
  %v28 = vunpack.c.l.b16 %v16
  %v29 = vpack.c.b16 %v28, %v27
  %v34 = vunpack.c.l.b16 %v17
  %v35 = vunpack.c.l.b16 %v18
  %v36 = vunpack.c.l.b16 %v19
  %v37 = vunpack.c.l.b16 %v20
  %v38 = vpack.c.b16 %v35, %v34
  %v39 = vpack.c.b16 %v37, %v36
  %vm42 = vcmask 261120
  %v44 = vsel %vm42, %v29, 0
  %46 = vmatpush.bf16.msra.mxu0 0
  %47 = vmatpush.bf16.msra.mxu0 0
  %48 = vmatpush.bf16.msra.mxu0 0
  %49 = vmatpush.bf16.msra.mxu0 0
  %50 = vmatpush.bf16.msra.mxu0 0
  %51 = vmatpush.bf16.msra.mxu0 0
  %52 = vmatpush.bf16.msra.mxu0 %v39
  %53 = vmatpush.bf16.msra.mxu0 %v38
  %54 = vmatmul.bf16.gmra.mxu0 %v44
  %v55 = vpop.f32.mrf.mxu0
  %v56 = vadd.f32 %v23, %v55
  %v57 = vpop.f32.mrf.mxu0
  %v58 = vadd.f32 %v23, %v57
  %59 = vdwg.mxu0
  %v60 = vpack.c.bf16 %v56, %v56
  %v61 = vpack.c.bf16 %v58, %v58
  %vm62 = vcmask 257024
  %63 = vst.msk [vmem:[%s3] sm:$0xf] %vm62, %v60
  %vm64 = vcmask 256000
  %65 = vst.msk [vmem:[%s3 + $0x4] sm:$0x7] %vm64, %v61
  // Predicated region
  $region14: #{transformer_forward.39} parent=0 // pred_check
    _
  $region15: #{transformer_forward.39} parent=0 // pred_check_branch
    %67 = sbr.rel (0) target = $region17
  $region16: #{transformer_forward.39} parent=0 // pred_region
    _
  $region17: #{transformer_forward.39} parent=0 // pred_fallthru
    _
  // Predicated region
  $region18: #{transformer_forward.39} parent=0 // pred_check
    _
  $region19: #{transformer_forward.39} parent=0 // pred_check_branch
    %69 = sbr.rel (0) target = $region21
  $region20: #{transformer_forward.39} parent=0 // pred_region
    _
  $region21: #{transformer_forward.39} parent=0 // pred_fallthru
    _

// kernel: transformer_forward.40
$region0: #{transformer_forward.40}
  #allocation0 [shape = 'u32[]', space=smem, size = 0x4, offset = 0x4, fixed_abs, tag = 'smem constant byte address 0x4 - core index']
  #allocation1 [shape = 'u32[72,128]{1,0:T(1,128)}', space=vmem, size = 0x9000, scoped, tag = 'internal scratch']
  %s0 = inlined_call_operand.vmem [shape: bf16[14,32], index: 0, kind: input, shape index: {}]
  %s1 = inlined_call_operand.vmem [shape: bf16[32,64], index: 1, kind: input, shape index: {}]
  %s2 = inlined_call_operand.vmem [shape: f32[1,64], index: 2, kind: input, shape index: {}]
  %s3 = inlined_call_operand.vmem [shape: bf16[14,64], index: 3, kind: output, shape index: {}]
  %s4 = sld [smem:[#allocation0]]
  $region22: #{transformer_forward.40} parent=0
    _
  %s6 = ssub.s32 1, %s4
  %s7 = scalar_select 0, %s6, %s4
  // Predicated region
  $region2: #{transformer_forward.40} parent=0 // pred_check
    _
  $region3: #{transformer_forward.40} parent=0 // pred_check_branch
    %9 = sbr.rel (0) target = $region5
  $region4: #{transformer_forward.40} parent=0 // pred_region
    _
  $region5: #{transformer_forward.40} parent=0 // pred_fallthru
    _
  // Predicated region
  $region6: #{transformer_forward.40} parent=0 // pred_check
    _
  $region7: #{transformer_forward.40} parent=0 // pred_check_branch
    %11 = sbr.rel (0) target = $region9
  $region8: #{transformer_forward.40} parent=0 // pred_region
    _
  $region9: #{transformer_forward.40} parent=0 // pred_fallthru
    _
  // Predicated region
  $region10: #{transformer_forward.40} parent=0 // pred_check
    _
  $region11: #{transformer_forward.40} parent=0 // pred_check_branch
    %13 = sbr.rel (0) target = $region13
  $region12: #{transformer_forward.40} parent=0 // pred_region
    _
  $region13: #{transformer_forward.40} parent=0 // pred_fallthru
    _
  %v15 = vld [vmem:[%s0] sm:$0xf]
  %v16 = vld [vmem:[%s0 + $0x4] sm:$0x7]
  %v17 = vld [vmem:[%s1] sm:$0xf]
  %v18 = vld [vmem:[%s1 + $0x4] sm:$0xf]
  %v19 = vld [vmem:[%s1 + $0x8] sm:$0xf]
  %v20 = vld [vmem:[%s1 + $0xc] sm:$0xf]
  %v21 = vld [vmem:[%s2] sm:$0x1]
  %v23 = vperm.slane %v21, 0
  %v27 = vunpack.c.l.b16 %v15
  %v28 = vunpack.c.l.b16 %v16
  %v29 = vpack.c.b16 %v28, %v27
  %v34 = vunpack.c.l.b16 %v17
  %v35 = vunpack.c.l.b16 %v18
  %v36 = vunpack.c.l.b16 %v19
  %v37 = vunpack.c.l.b16 %v20
  %v38 = vpack.c.b16 %v35, %v34
  %v39 = vpack.c.b16 %v37, %v36
  %vm42 = vcmask 261120
  %v44 = vsel %vm42, %v29, 0
  %46 = vmatpush.bf16.msra.mxu0 0
  %47 = vmatpush.bf16.msra.mxu0 0
  %48 = vmatpush.bf16.msra.mxu0 0
  %49 = vmatpush.bf16.msra.mxu0 0
  %50 = vmatpush.bf16.msra.mxu0 0
  %51 = vmatpush.bf16.msra.mxu0 0
  %52 = vmatpush.bf16.msra.mxu0 %v39
  %53 = vmatpush.bf16.msra.mxu0 %v38
  %54 = vmatmul.bf16.gmra.mxu0 %v44
  %v55 = vpop.f32.mrf.mxu0
  %v56 = vadd.f32 %v23, %v55
  %v57 = vpop.f32.mrf.mxu0
  %v58 = vadd.f32 %v23, %v57
  %59 = vdwg.mxu0
  %v60 = vpack.c.bf16 %v56, %v56
  %v61 = vpack.c.bf16 %v58, %v58
  %vm62 = vcmask 519168
  %63 = vst.msk [vmem:[%s3] sm:$0xf] %vm62, %v60
  %vm64 = vcmask 518144
  %65 = vst.msk [vmem:[%s3 + $0x4] sm:$0x7] %vm64, %v61
  // Predicated region
  $region14: #{transformer_forward.40} parent=0 // pred_check
    _
  $region15: #{transformer_forward.40} parent=0 // pred_check_branch
    %67 = sbr.rel (0) target = $region17
  $region16: #{transformer_forward.40} parent=0 // pred_region
    _
  $region17: #{transformer_forward.40} parent=0 // pred_fallthru
    _
  // Predicated region
  $region18: #{transformer_forward.40} parent=0 // pred_check
    _
  $region19: #{transformer_forward.40} parent=0 // pred_check_branch
    %69 = sbr.rel (0) target = $region21
  $region20: #{transformer_forward.40} parent=0 // pred_region
    _
  $region21: #{transformer_forward.40} parent=0 // pred_fallthru
    _

// kernel: transformer_forward.42
$region0: #{transformer_forward.42}
  #allocation0 [shape = 'u32[]', space=smem, size = 0x4, offset = 0x4, fixed_abs, tag = 'smem constant byte address 0x4 - core index']
  #allocation1 [shape = 'u32[72,128]{1,0:T(1,128)}', space=vmem, size = 0x9000, scoped, tag = 'internal scratch']
  %s0 = inlined_call_operand.vmem [shape: bf16[14,32], index: 0, kind: input, shape index: {}]
  %s1 = inlined_call_operand.vmem [shape: bf16[14,32], index: 1, kind: input, shape index: {}]
  %s2 = inlined_call_operand.vmem [shape: f32[14,1], index: 2, kind: input, shape index: {}]
  %s3 = inlined_call_operand.vmem [shape: bf16[32,32], index: 3, kind: input, shape index: {}]
  %s4 = inlined_call_operand.vmem [shape: f32[3,32], index: 4, kind: input, shape index: {}]
  %s5 = inlined_call_operand.vmem [shape: bf16[14,32], index: 5, kind: output, shape index: {}]
  %s6 = sld [smem:[#allocation0]]
  $region30: #{transformer_forward.42} parent=0
    _
  %s8 = ssub.s32 1, %s6
  %s9 = scalar_select 0, %s8, %s6
  // Predicated region
  $region2: #{transformer_forward.42} parent=0 // pred_check
    _
  $region3: #{transformer_forward.42} parent=0 // pred_check_branch
    %11 = sbr.rel (0) target = $region5
  $region4: #{transformer_forward.42} parent=0 // pred_region
    _
  $region5: #{transformer_forward.42} parent=0 // pred_fallthru
    _
  // Predicated region
  $region6: #{transformer_forward.42} parent=0 // pred_check
    _
  $region7: #{transformer_forward.42} parent=0 // pred_check_branch
    %13 = sbr.rel (0) target = $region9
  $region8: #{transformer_forward.42} parent=0 // pred_region
    _
  $region9: #{transformer_forward.42} parent=0 // pred_fallthru
    _
  // Predicated region
  $region10: #{transformer_forward.42} parent=0 // pred_check
    _
  $region11: #{transformer_forward.42} parent=0 // pred_check_branch
    %15 = sbr.rel (0) target = $region13
  $region12: #{transformer_forward.42} parent=0 // pred_region
    _
  $region13: #{transformer_forward.42} parent=0 // pred_fallthru
    _
  // Predicated region
  $region14: #{transformer_forward.42} parent=0 // pred_check
    _
  $region15: #{transformer_forward.42} parent=0 // pred_check_branch
    %17 = sbr.rel (0) target = $region17
  $region16: #{transformer_forward.42} parent=0 // pred_region
    _
  $region17: #{transformer_forward.42} parent=0 // pred_fallthru
    _
  // Predicated region
  $region18: #{transformer_forward.42} parent=0 // pred_check
    _
  $region19: #{transformer_forward.42} parent=0 // pred_check_branch
    %19 = sbr.rel (0) target = $region21
  $region20: #{transformer_forward.42} parent=0 // pred_region
    _
  $region21: #{transformer_forward.42} parent=0 // pred_fallthru
    _
  %v21 = vld [vmem:[%s0] sm:$0xf]
  %v22 = vld [vmem:[%s0 + $0x4] sm:$0x7]
  %v23 = vld [vmem:[%s3] sm:$0xf]
  %v24 = vld [vmem:[%s3 + $0x4] sm:$0xf]
  %v25 = vld [vmem:[%s3 + $0x8] sm:$0xf]
  %v26 = vld [vmem:[%s3 + $0xc] sm:$0xf]
  %v27 = vld [vmem:[%s4] sm:$0x7]
  %v28 = vperm.slane %v27, 0
  %v31 = vunpack.c.l.b16 %v21
  %v32 = vunpack.c.l.b16 %v22
  %v33 = vpack.c.b16 %v32, %v31
  %v38 = vunpack.c.l.b16 %v23
  %v39 = vunpack.c.l.b16 %v24
  %v40 = vunpack.c.l.b16 %v25
  %v41 = vunpack.c.l.b16 %v26
  %v42 = vpack.c.b16 %v39, %v38
  %v43 = vpack.c.b16 %v41, %v40
  %vm46 = vcmask 261120
  %v48 = vsel %vm46, %v33, 0
  %50 = vmatpush.bf16.msra.mxu0 0
  %51 = vmatpush.bf16.msra.mxu0 0
  %52 = vmatpush.bf16.msra.mxu0 0
  %53 = vmatpush.bf16.msra.mxu0 0
  %54 = vmatpush.bf16.msra.mxu0 0
  %55 = vmatpush.bf16.msra.mxu0 0
  %56 = vmatpush.bf16.msra.mxu0 %v43
  %57 = vmatpush.bf16.msra.mxu0 %v42
  %58 = vmatmul.bf16.gmra.mxu0 %v48
  %v59 = vpop.f32.mrf.mxu0
  %v60 = vadd.f32 %v28, %v59
  %v61 = vpop.f32.mrf.mxu0
  %v62 = vadd.f32 %v28, %v61
  %63 = vdwg.mxu0
  %v64 = vld [vmem:[%s1] sm:$0xf]
  %v65 = vld [vmem:[%s1 + $0x4] sm:$0x7]
  %v66 = vunpack.c.l.bf16 %v64
  %v67 = vunpack.c.l.bf16 %v65
  %v68 = vadd.f32 %v60, %v66
  %v69 = vadd.f32 %v62, %v67
  %v70 = vsel %vm46, %v68, 0.0
  %71 = vadd.xlane.f32.xlu0 %v70
  %v72 = vpop.xlane.xlu0 %71
  %vm73 = vcmask 259072
  %v74 = vsel %vm73, %v69, 0.0
  %75 = vadd.xlane.f32.xlu0 %v74
  %v76 = vpop.xlane.xlu0 %75
  %v77 = vrcp.pop 32.0
  %v78 = vmul.f32 32.0, %v77
  %v79 = vsub.f32 1.0, %v78
  %v80 = vmul.f32 %v77, %v79
  %v81 = vadd.f32 %v77, %v80
  %vm82 = vweird.f32 %v77
  %v83 = vsel %vm82, %v77, %v81
  %v84 = vmul.f32 %v72, %v83
  %v85 = vmul.f32 %v76, %v83
  %v86 = vsub.f32 %v68, %v84
  %v87 = vsub.f32 %v69, %v85
  %v88 = vmul.f32 %v86, %v86
  %v89 = vmul.f32 %v87, %v87
  %v90 = vsel %vm46, %v88, 0.0
  %91 = vadd.xlane.f32.xlu0 %v90
  %v92 = vpop.xlane.xlu0 %91
  %v93 = vsel %vm73, %v89, 0.0
  %94 = vadd.xlane.f32.xlu0 %v93
  %v95 = vpop.xlane.xlu0 %94
  %v96 = vmul.f32 %v92, %v83
  %v97 = vmul.f32 %v95, %v83
  %v98 = vadd.f32 %v96, 1e-05
  %v99 = vadd.f32 %v97, 1e-05
  %v100 = vrsqrt.pop %v98
  %v101 = vmul.f32 %v100, %v98
  %v102 = vmul.f32 %v101, %v100
  %v103 = vmul.f32 0.5, %v102
  %v104 = vsub.f32 1.5, %v103
  %v105 = vmul.f32 %v100, %v104
  %vm106 = vweird.f32 %v98
  %vm107 = vweird.f32 %v100
  %vm108 = vmor %vm106, %vm107
  %v109 = vsel %vm108, %v100, %v105
  %v110 = vrsqrt.pop %v99
  %v111 = vmul.f32 %v110, %v99
  %v112 = vmul.f32 %v111, %v110
  %v113 = vmul.f32 0.5, %v112
  %v114 = vsub.f32 1.5, %v113
  %v115 = vmul.f32 %v110, %v114
  %vm116 = vweird.f32 %v99
  %vm117 = vweird.f32 %v110
  %vm118 = vmor %vm116, %vm117
  %v119 = vsel %vm118, %v110, %v115
  %v120 = vmul.f32 %v86, %v109
  %v121 = vmul.f32 %v87, %v119
  %v122 = vperm.slane %v27, 1
  %v123 = vmul.f32 %v120, %v122
  %v124 = vmul.f32 %v121, %v122
  %v125 = vperm.slane %v27, 2
  %v126 = vadd.f32 %v123, %v125
  %v127 = vadd.f32 %v124, %v125
  %v128 = vld [vmem:[%s2] sm:$0xff]
  %v129 = vld [vmem:[%s2 + $0x8] sm:$0x3f]
  %131 = vset.pattern.permute.xlu0 0
  %132 = vperm.xlu0 %131, %v128
  %v133 = vpop.permute.xlu0 %132
  %136 = vset.pattern.permute.xlu0 0
  %137 = vperm.xlu0 %136, %v129
  %v138 = vpop.permute.xlu0 %137
  %v140 = vmul.f32 %v126, %v133
  %v141 = vmul.f32 %v127, %v138
  %v142 = vpack.c.bf16 %v140, %v140
  %v143 = vpack.c.bf16 %v141, %v141
  %vm144 = vcmask 257024
  %145 = vst.msk [vmem:[%s5] sm:$0xf] %vm144, %v142
  %vm146 = vcmask 256000
  %147 = vst.msk [vmem:[%s5 + $0x4] sm:$0x7] %vm146, %v143
  // Predicated region
  $region22: #{transformer_forward.42} parent=0 // pred_check
    _
  $region23: #{transformer_forward.42} parent=0 // pred_check_branch
    %149 = sbr.rel (0) target = $region25
  $region24: #{transformer_forward.42} parent=0 // pred_region
    _
  $region25: #{transformer_forward.42} parent=0 // pred_fallthru
    _
  // Predicated region
  $region26: #{transformer_forward.42} parent=0 // pred_check
    _
  $region27: #{transformer_forward.42} parent=0 // pred_check_branch
    %151 = sbr.rel (0) target = $region29
  $region28: #{transformer_forward.42} parent=0 // pred_region
    _
  $region29: #{transformer_forward.42} parent=0 // pred_fallthru
    _

// kernel: transformer_forward.41
$region0: #{transformer_forward.41}
  #allocation0 [shape = 'u32[]', space=smem, size = 0x4, offset = 0x4, fixed_abs, tag = 'smem constant byte address 0x4 - core index']
  #allocation1 [shape = 'u32[72,128]{1,0:T(1,128)}', space=vmem, size = 0x9000, scoped, tag = 'internal scratch']
  #allocation2 [shape = 'f32[2,7,1]{2,1,0:T(8,128)}', space=vmem, size = 0x2000, scoped, tag = 'scratch operand']
  #allocation3 [shape = 'f32[2,7,1]{2,1,0:T(8,128)}', space=vmem, size = 0x2000, scoped, tag = 'scratch operand']
  #allocation4 [shape = 'f32[2,7,16]{2,1,0:T(8,128)}', space=vmem, size = 0x2000, scoped, tag = 'scratch operand']
  %s0 = inlined_call_operand.vmem [shape: s32[2,1,7], index: 0, kind: input, shape index: {}]
  %s1 = inlined_call_operand.vmem [shape: bf16[2,7,32], index: 1, kind: input, shape index: {}]
  %s2 = inlined_call_operand.vmem [shape: bf16[2,7,64], index: 2, kind: input, shape index: {}]
  %s3 = inlined_call_operand.vmem [shape: bf16[2,7,32], index: 3, kind: output, shape index: {}]
  %s4 = sld [smem:[#allocation0]]
  $region53: #{transformer_forward.41} parent=0
    _
  %s6 = ssub.s32 1, %s4
  %s7 = scalar_select 0, %s6, %s4
  loop: start=0, step=1, limit=4
  $region2: #{transformer_forward.41} parent=0 // loop_pre_header
    _
  $region3: #{transformer_forward.41} parent=0 // loop_header
    %s9 = sphi 0, %s13
    %p10 = scmp.ge.s32.totalorder %s9, 4
    %s16 = sphi 0, %s35
    %s17 = sphi 0, %s31
    %s18 = sphi 0, %s27
    %s19 = sphi 0, %s16
    %s20 = sphi 0, %s17
    %s21 = sphi 0, %s18
    %s22 = sphi 0, %s19
    %s23 = sphi 0, %s20
    %s24 = sphi 0, %s21
    %s40 = sphi 0, %s42
    %s43 = sphi 0, %s40
    %s44 = sphi 0, %s43
    %s60 = sphi 0, %s44
    %s68 = sphi 0, %s70
    %s71 = sphi 0, %s68
    %s72 = sphi 0, %s71
    %s88 = sphi 0, %s72
    %s96 = sphi 0, %s98
    %s99 = sphi 0, %s96
    %s100 = sphi 0, %s99
    %s116 = sphi 0, %s100
    %s124 = sphi 0, %s126
    %s127 = sphi 0, %s124
    %s128 = sphi 0, %s127
    %s144 = sphi 0, %s128
  $region4: #{transformer_forward.41} parent=0 // loop_header_branch
    %12 = sbr.rel (%p10) target = $region8
  $region5: #{transformer_forward.41} parent=0 // loop_body
    %s14 = ssub.s32 %s9, 1
    %s15 = ssub.s32 %s9, 2
    %s25 = sadd.s32 1, %s18
    %p26 = scmp.ge.s32.totalorder %s25, 1
    %s27 = scalar_select %p26, 0, %s25
    %s28 = sadd.s32 1, %s17
    %s29 = scalar_select %p26, %s28, %s17
    %p30 = scmp.ge.s32.totalorder %s29, 1
    %s31 = scalar_select %p30, 0, %s29
    %s32 = sadd.s32 1, %s16
    %s33 = scalar_select %p30, %s32, %s16
    %p34 = scmp.ge.s32.totalorder %s33, 2
    %s35 = scalar_select %p34, 0, %s33
    %s36 = ssub.s32 %s16, %s35
    %s37 = ssub.s32 %s18, %s27
    %s38 = sor.u32 %s36, %s37
    %p39 = scmp.eq.s32.totalorder %s38, 0
    %s41 = sadd.s32 %s40, 1
    %s42 = scalar_select %p39, %s40, %s41
    %p45 = pneg %p39
    %p46 = scmp.eq.s32.totalorder %s9, 1
    %p47 = por %p45, %p46
    %p48 = scmp.ne.s32.totalorder %s40, %s43
    %p49 = scmp.eq.s32.totalorder %s9, 0
    %p50 = por %p48, %p49
    %p51 = scmp.ne.s32.totalorder %s40, %s43
    %p52 = scmp.eq.s32.totalorder %s14, 1
    %p53 = por %p51, %p52
    %p54 = scmp.ne.s32.totalorder %s43, %s44
    %p55 = scmp.eq.s32.totalorder %s14, 0
    %p56 = por %p54, %p55
    %p57 = scmp.ne.s32.totalorder %s43, %s44
    %p58 = scmp.eq.s32.totalorder %s15, 1
    %p59 = por %p57, %p58
    %p61 = scmp.ne.s32.totalorder %s44, %s60
    %p62 = scmp.eq.s32.totalorder %s15, 0
    %p63 = por %p61, %p62
    %s64 = ssub.s32 %s16, %s35
    %s65 = ssub.s32 %s17, %s31
    %s66 = sor.u32 %s64, %s65
    %p67 = scmp.eq.s32.totalorder %s66, 0
    %s69 = sadd.s32 %s68, 1
    %s70 = scalar_select %p67, %s68, %s69
    %p73 = pneg %p67
    %p74 = scmp.eq.s32.totalorder %s9, 1
    %p75 = por %p73, %p74
    %p76 = scmp.ne.s32.totalorder %s68, %s71
    %p77 = scmp.eq.s32.totalorder %s9, 0
    %p78 = por %p76, %p77
    %p79 = scmp.ne.s32.totalorder %s68, %s71
    %p80 = scmp.eq.s32.totalorder %s14, 1
    %p81 = por %p79, %p80
    %p82 = scmp.ne.s32.totalorder %s71, %s72
    %p83 = scmp.eq.s32.totalorder %s14, 0
    %p84 = por %p82, %p83
    %p85 = scmp.ne.s32.totalorder %s71, %s72
    %p86 = scmp.eq.s32.totalorder %s15, 1
    %p87 = por %p85, %p86
    %p89 = scmp.ne.s32.totalorder %s72, %s88
    %p90 = scmp.eq.s32.totalorder %s15, 0
    %p91 = por %p89, %p90
    %s92 = ssub.s32 %s16, %s35
    %s93 = ssub.s32 %s18, %s27
    %s94 = sor.u32 %s92, %s93
    %p95 = scmp.eq.s32.totalorder %s94, 0
    %s97 = sadd.s32 %s96, 1
    %s98 = scalar_select %p95, %s96, %s97
    %p101 = pneg %p95
    %p102 = scmp.eq.s32.totalorder %s9, 1
    %p103 = por %p101, %p102
    %p104 = scmp.ne.s32.totalorder %s96, %s99
    %p105 = scmp.eq.s32.totalorder %s9, 0
    %p106 = por %p104, %p105
    %p107 = scmp.ne.s32.totalorder %s96, %s99
    %p108 = scmp.eq.s32.totalorder %s14, 1
    %p109 = por %p107, %p108
    %p110 = scmp.ne.s32.totalorder %s99, %s100
    %p111 = scmp.eq.s32.totalorder %s14, 0
    %p112 = por %p110, %p111
    %p113 = scmp.ne.s32.totalorder %s99, %s100
    %p114 = scmp.eq.s32.totalorder %s15, 1
    %p115 = por %p113, %p114
    %p117 = scmp.ne.s32.totalorder %s100, %s116
    %p118 = scmp.eq.s32.totalorder %s15, 0
    %p119 = por %p117, %p118
    %s120 = ssub.s32 %s16, %s35
    %s121 = ssub.s32 %s17, %s31
    %s122 = sor.u32 %s120, %s121
    %p123 = scmp.eq.s32.totalorder %s122, 0
    %s125 = sadd.s32 %s124, 1
    %s126 = scalar_select %p123, %s124, %s125
    %p129 = pneg %p123
    %p130 = scmp.eq.s32.totalorder %s9, 1
    %p131 = por %p129, %p130
    %p132 = scmp.ne.s32.totalorder %s124, %s127
    %p133 = scmp.eq.s32.totalorder %s9, 0
    %p134 = por %p132, %p133
    %p135 = scmp.ne.s32.totalorder %s124, %s127
    %p136 = scmp.eq.s32.totalorder %s14, 1
    %p137 = por %p135, %p136
    %p138 = scmp.ne.s32.totalorder %s127, %s128
    %p139 = scmp.eq.s32.totalorder %s14, 0
    %p140 = por %p138, %p139
    %p141 = scmp.ne.s32.totalorder %s127, %s128
    %p142 = scmp.eq.s32.totalorder %s15, 1
    %p143 = por %p141, %p142
    %p145 = scmp.ne.s32.totalorder %s128, %s144
    %p146 = scmp.eq.s32.totalorder %s15, 0
    %p147 = por %p145, %p146
    %p148 = scmp.le.s32.totalorder 1, %s9
    %p149 = scmp.lt.s32.totalorder %s9, 3
    %p150 = pnand %p148, %p149
    %p151 = pneg %p150
    // Predicated region
    $region9: #{transformer_forward.41} parent=5 // pred_check
      _
    $region10: #{transformer_forward.41} parent=5 // pred_check_branch
      %153 = sbr.rel (%p150) target = $region12
    $region11: #{transformer_forward.41} parent=5 // pred_region
      %s154 = ssub.s32 %s9, 1
    $region12: #{transformer_forward.41} parent=5 // pred_fallthru
      _
    %p155 = scmp.lt.s32.totalorder %s9, 2
    // Predicated region
    $region13: #{transformer_forward.41} parent=5 // pred_check
      %p156 = pneg %p155
    $region14: #{transformer_forward.41} parent=5 // pred_check_branch
      %158 = sbr.rel (%p156) target = $region16
    $region15: #{transformer_forward.41} parent=5 // pred_region
      // Predicated region
      $region17: #{transformer_forward.41} parent=15 // pred_check
        %p159 = pneg %p50
      $region18: #{transformer_forward.41} parent=15 // pred_check_branch
        %161 = sbr.rel (%p159) target = $region20
      $region19: #{transformer_forward.41} parent=15 // pred_region
        %p162 = scmp.lt.s32.totalorder %s16, 1
        %s163 = scalar_select %p162, %s16, 1
        %p164 = scmp.lt.s32.totalorder %s18, 0
        %s165 = scalar_select %p164, %s18, 0
        %s166 = sadd.s32 %s165, %s163
        %s167 = scalar_lea.vmem %s0, %s166
      $region20: #{transformer_forward.41} parent=15 // pred_fallthru
        _
      // Predicated region
      $region21: #{transformer_forward.41} parent=15 // pred_check
        %p168 = pneg %p78
      $region22: #{transformer_forward.41} parent=15 // pred_check_branch
        %170 = sbr.rel (%p168) target = $region24
      $region23: #{transformer_forward.41} parent=15 // pred_region
        %p171 = scmp.lt.s32.totalorder %s16, 1
        %s172 = scalar_select %p171, %s16, 1
        %p173 = scmp.lt.s32.totalorder %s17, 0
        %s174 = scalar_select %p173, %s17, 0
        %s175 = sadd.s32 %s174, %s172
        %s176 = smul.addr %s175, 4
        %s177 = scalar_lea.vmem %s1, %s176
      $region24: #{transformer_forward.41} parent=15 // pred_fallthru
        _
      // Predicated region
      $region25: #{transformer_forward.41} parent=15 // pred_check
        %p178 = pneg %p106
      $region26: #{transformer_forward.41} parent=15 // pred_check_branch
        %180 = sbr.rel (%p178) target = $region28
      $region27: #{transformer_forward.41} parent=15 // pred_region
        %p181 = scmp.lt.s32.totalorder %s16, 1
        %s182 = scalar_select %p181, %s16, 1
        %p183 = scmp.lt.s32.totalorder %s18, 0
        %s184 = scalar_select %p183, %s18, 0
        %s185 = sadd.s32 %s184, %s182
        %s186 = smul.addr %s185, 4
        %s187 = scalar_lea.vmem %s2, %s186
      $region28: #{transformer_forward.41} parent=15 // pred_fallthru
        _
    $region16: #{transformer_forward.41} parent=5 // pred_fallthru
      _
    %p188 = scmp.le.s32.totalorder 1, %s9
    %p189 = scmp.lt.s32.totalorder %s9, 3
    %p190 = pnand %p188, %p189
    %p191 = pneg %p190
    // Predicated region
    $region29: #{transformer_forward.41} parent=5 // pred_check
      _
    $region30: #{transformer_forward.41} parent=5 // pred_check_branch
      %193 = sbr.rel (%p190) target = $region32
    $region31: #{transformer_forward.41} parent=5 // pred_region
      %s194 = ssub.s32 %s9, 1
      %p195 = scmp.lt.s32.totalorder %s19, 1
      %s196 = scalar_select %p195, %s19, 1
      %p197 = scmp.lt.s32.totalorder %s21, 0
      %s198 = scalar_select %p197, %s21, 0
      %s199 = sadd.s32 %s198, %s196
      %s200 = scalar_lea.vmem %s0, %s199
      %p201 = pneg %p56
      %p202 = pneg %p53
      %p203 = scmp.lt.s32.totalorder %s19, 1
      %s204 = scalar_select %p203, %s19, 1
      %p205 = scmp.lt.s32.totalorder %s20, 0
      %s206 = scalar_select %p205, %s20, 0
      %s207 = sadd.s32 %s206, %s204
      %s208 = smul.addr %s207, 4
      %s209 = scalar_lea.vmem %s1, %s208
      %p210 = pneg %p84
      %p211 = pneg %p81
      %p212 = scmp.lt.s32.totalorder %s19, 1
      %s213 = scalar_select %p212, %s19, 1
      %p214 = scmp.lt.s32.totalorder %s21, 0
      %s215 = scalar_select %p214, %s21, 0
      %s216 = sadd.s32 %s215, %s213
      %s217 = smul.addr %s216, 4
      %s218 = scalar_lea.vmem %s2, %s217
      %p219 = pneg %p112
      %p220 = pneg %p109
      %p221 = pneg %p140
      %p222 = pneg %p137
      %p223 = scmp.lt.s32.totalorder %s19, 1
      %s224 = scalar_select %p223, %s19, 1
      %p225 = scmp.lt.s32.totalorder %s20, 0
      %s226 = scalar_select %p225, %s20, 0
      %s227 = sadd.s32 %s226, %s224
      %s228 = smul.addr %s227, 4
      %s229 = scalar_lea.vmem %s3, %s228
      %p230 = scmp.lt.s32.totalorder %s19, 1
      %s231 = scalar_select %p230, %s19, 1
      %p232 = scmp.lt.s32.totalorder %s21, 0
      %s233 = scalar_select %p232, %s21, 0
      %s234 = sadd.s32 %s233, %s231
      %s235 = scalar_lea.vmem %s0, %s234
      %p236 = scmp.lt.s32.totalorder %s19, 1
      %s237 = scalar_select %p236, %s19, 1
      %p238 = scmp.lt.s32.totalorder %s20, 0
      %s239 = scalar_select %p238, %s20, 0
      %s240 = sadd.s32 %s239, %s237
      %s241 = smul.addr %s240, 4
      %s242 = scalar_lea.vmem %s1, %s241
      %p243 = scmp.lt.s32.totalorder %s19, 1
      %s244 = scalar_select %p243, %s19, 1
      %p245 = scmp.lt.s32.totalorder %s21, 0
      %s246 = scalar_select %p245, %s21, 0
      %s247 = sadd.s32 %s246, %s244
      %s248 = smul.addr %s247, 4
      %s249 = scalar_lea.vmem %s2, %s248
      %p250 = scmp.lt.s32.totalorder %s19, 1
      %s251 = scalar_select %p250, %s19, 1
      %p252 = scmp.lt.s32.totalorder %s20, 0
      %s253 = scalar_select %p252, %s20, 0
      %s254 = sadd.s32 %s253, %s251
      %s255 = smul.addr %s254, 4
      %s256 = scalar_lea.vmem %s3, %s255
      %p258 = scmp.eq.s32.totalorder %s21, 0
      // Predicated region
      $region33: #{transformer_forward.41} parent=31 // pred_check
        %p259 = pneg %p258
      $region34: #{transformer_forward.41} parent=31 // pred_check_branch
        %261 = sbr.rel (%p259) target = $region36
      $region35: #{transformer_forward.41} parent=31 // pred_region
        %vm262 = vcmask 6144
        %263 = vst.msk [vmem:[#allocation2] sm:$0x7f] %vm262, -inf
        %264 = vst.msk [vmem:[#allocation2 + $0x8] sm:$0x7f] %vm262, -inf
        %265 = vst.msk [vmem:[#allocation3] sm:$0x7f] %vm262, 0.0
        %266 = vst.msk [vmem:[#allocation3 + $0x8] sm:$0x7f] %vm262, 0.0
        %vm267 = vcmask 129024
        %268 = vst.msk [vmem:[#allocation4] sm:$0x7f] %vm267, 0.0
        %269 = vst.msk [vmem:[#allocation4 + $0x8] sm:$0x7f] %vm267, 0.0
      $region36: #{transformer_forward.41} parent=31 // pred_fallthru
        _
      %v270 = vld [vmem:[%s242] sm:$0xf]
      %v271 = vld [vmem:[%s249] sm:$0xf]
      %s272 = smul.u32 %s21, 7
      %v273 = vlaneseq
      %v274 = vand.u32 %v273, 127
      %v275 = vstv %s272
      %v276 = vadd.s32 %v275, %v274
      %v277 = vld [vmem:[%s235] sm:$0x1]
      %vm278 = vcmp.gt.s32.totalorder %v277, 0
      %vm279 = vcmp.ge.s32.totalorder %v276, 7
      %v280 = vsel %vm278, 1, 0
      %v281 = vperm.slane %v280, 0
      %vm282 = vcmp.eq.s32.totalorder %v281, 1
      %vm283 = vmor %vm282, %vm279
      %s284 = smul.u32 %s20, 7
      %v285 = vlaneseq
      %v286 = vshrl.u32 %v285, 7
      %v287 = vstv %s284
      %v288 = vadd.s32 %v287, %v286
      %vm289 = vcmp.gt.s32.totalorder %v276, %v288
      %vm290 = vmor %vm283, %vm289
      %vm291 = vcmask 130048
      %v293 = vsel %vm291, %v270, 0
      %v296 = vsel %vm291, %v271, 0
      %298 = vmatpush.bf16.xpose.msra.mxu0 0
      %299 = vmatpush.bf16.xpose.msra.mxu0 0
      %300 = vmatpush.bf16.xpose.msra.mxu0 0
      %301 = vmatpush.bf16.xpose.msra.mxu0 0
      %302 = vmatpush.bf16.xpose.msra.mxu0 0
      %303 = vmatpush.bf16.xpose.msra.mxu0 0
      %304 = vmatpush.bf16.xpose.msra.mxu0 0
      %305 = vmatpush.bf16.xpose.msra.mxu0 %v296
      %306 = vmatmul.bf16.gmra.mxu0 %v293
      %v307 = vpop.f32.mrf.mxu0
      %v308 = vadd.f32 0.0, %v307
      %v309 = vpop.f32.mrf.mxu0
      %310 = vdwg.mxu0
      %v311 = vsel %vm290, -1e+09, %v308
      %v312 = vld [vmem:[#allocation2] sm:$0x7f]
      %vm313 = vcmask 55296
      %v314 = vsel %vm313, %v311, -inf
      %315 = vmax.xlane.f32.xlu0 %v314
      %v316 = vpop.xlane.xlu0 %315
      %v317 = vmax.f32 %v312, %v316
      %v318 = vsub.f32 %v312, %v317
      %v319 = vmul.f32 %v318, 1.442695
      %v320 = vpow.pop %v319
      %322 = vset.pattern.permute.xlu0 0
      %323 = vperm.xlu0 %322, %v317
      %v324 = vpop.permute.xlu0 %323
      %v326 = vsub.f32 %v311, %v324
      %v327 = vmul.f32 %v326, 1.442695
      %v328 = vpow.pop %v327
      %v329 = vld [vmem:[#allocation3] sm:$0x7f]
      %v330 = vmul.f32 %v320, %v329
      %v331 = vsel %vm313, %v328, 0.0
      %332 = vadd.xlane.f32.xlu0 %v331
      %v333 = vpop.xlane.xlu0 %332
      %v334 = vadd.f32 %v330, %v333
      %vm335 = vcmask 6144
      %336 = vst.msk [vmem:[#allocation3] sm:$0x7f] %vm335, %v334
      %v337 = vld [vmem:[#allocation4] sm:$0x7f]
      %339 = vset.pattern.permute.xlu0 0
      %340 = vperm.xlu0 %339, %v320
      %v341 = vpop.permute.xlu0 %340
      %v343 = vmul.f32 %v341, %v337
      %v344 = vpack.c.bf16 %v328, %v328
      %v346 = vunpack.c.l.b16 %v271
      %v347 = vpack.c.b16 %v346, %v346
      %348 = vrot.lane.b32.xlu0 %v347, 96
      %v349 = vpop.permute.xlu0 %348
      %vm350 = vcmask 56320
      %v352 = vsel %vm350, %v344, 0
      %vm354 = vcmask 1042432
      %vm355 = vcmask 1043456
      %v356 = vsel %vm354, 4294967295, 65535
      %v357 = vsel %vm355, %v356, 0
      %v359 = vand.u32 %v349, %v357
      %361 = vmatpush.bf16.msra.mxu0 0
      %362 = vmatpush.bf16.msra.mxu0 0
      %363 = vmatpush.bf16.msra.mxu0 0
      %364 = vmatpush.bf16.msra.mxu0 0
      %365 = vmatpush.bf16.msra.mxu0 0
      %366 = vmatpush.bf16.msra.mxu0 0
      %367 = vmatpush.bf16.msra.mxu0 0
      %368 = vmatpush.bf16.msra.mxu0 %v359
      %369 = vmatmul.bf16.gmra.mxu0 %v352
      %v370 = vpop.f32.mrf.mxu0
      %v371 = vadd.f32 0.0, %v370
      %v372 = vpop.f32.mrf.mxu0
      %373 = vdwg.mxu0
      %v374 = vadd.f32 %v343, %v371
      %vm375 = vcmask 129024
      %376 = vst.msk [vmem:[#allocation4] sm:$0x7f] %vm375, %v374
      %377 = vst.msk [vmem:[#allocation2] sm:$0x7f] %vm335, %v317
      %v379 = vunpack.c.l.b16 %v270
      %v380 = vpack.c.b16 %v379, %v379
      %381 = vrot.lane.b32.xlu0 %v380, 112
      %v382 = vpop.permute.xlu0 %381
      %383 = vrot.lane.b32.xlu0 %v347, 112
      %v384 = vpop.permute.xlu0 %383
      %v386 = vsel %vm291, %v382, 0
      %v389 = vsel %vm291, %v384, 0
      %391 = vmatpush.bf16.xpose.msra.mxu0 0
      %392 = vmatpush.bf16.xpose.msra.mxu0 0
      %393 = vmatpush.bf16.xpose.msra.mxu0 0
      %394 = vmatpush.bf16.xpose.msra.mxu0 0
      %395 = vmatpush.bf16.xpose.msra.mxu0 0
      %396 = vmatpush.bf16.xpose.msra.mxu0 0
      %397 = vmatpush.bf16.xpose.msra.mxu0 0
      %398 = vmatpush.bf16.xpose.msra.mxu0 %v389
      %399 = vmatmul.bf16.gmra.mxu0 %v386
      %v400 = vpop.f32.mrf.mxu0
      %v401 = vadd.f32 0.0, %v400
      %v402 = vpop.f32.mrf.mxu0
      %403 = vdwg.mxu0
      %v404 = vsel %vm290, -1e+09, %v401
      %s405 = scalar_lea.vmem [#allocation2], 8
      %v406 = vld [vmem:[%s405] sm:$0x7f]
      %v407 = vsel %vm313, %v404, -inf
      %408 = vmax.xlane.f32.xlu0 %v407
      %v409 = vpop.xlane.xlu0 %408
      %v410 = vmax.f32 %v406, %v409
      %v411 = vsub.f32 %v406, %v410
      %v412 = vmul.f32 %v411, 1.442695
      %v413 = vpow.pop %v412
      %415 = vset.pattern.permute.xlu0 0
      %416 = vperm.xlu0 %415, %v410
      %v417 = vpop.permute.xlu0 %416
      %v419 = vsub.f32 %v404, %v417
      %v420 = vmul.f32 %v419, 1.442695
      %v421 = vpow.pop %v420
      %s422 = scalar_lea.vmem [#allocation3], 8
      %v423 = vld [vmem:[%s422] sm:$0x7f]
      %v424 = vmul.f32 %v413, %v423
      %v425 = vsel %vm313, %v421, 0.0
      %426 = vadd.xlane.f32.xlu0 %v425
      %v427 = vpop.xlane.xlu0 %426
      %v428 = vadd.f32 %v424, %v427
      %429 = vst.msk [vmem:[%s422] sm:$0x7f] %vm335, %v428
      %s430 = scalar_lea.vmem [#allocation4], 8
      %v431 = vld [vmem:[%s430] sm:$0x7f]
      %433 = vset.pattern.permute.xlu0 0
      %434 = vperm.xlu0 %433, %v413
      %v435 = vpop.permute.xlu0 %434
      %v437 = vmul.f32 %v435, %v431
      %v438 = vpack.c.bf16 %v421, %v421
      %439 = vrot.lane.b32.xlu0 %v347, 80
      %v440 = vpop.permute.xlu0 %439
      %v442 = vsel %vm350, %v438, 0
      %v445 = vand.u32 %v440, %v357
      %447 = vmatpush.bf16.msra.mxu0 0
      %448 = vmatpush.bf16.msra.mxu0 0
      %449 = vmatpush.bf16.msra.mxu0 0
      %450 = vmatpush.bf16.msra.mxu0 0
      %451 = vmatpush.bf16.msra.mxu0 0
      %452 = vmatpush.bf16.msra.mxu0 0
      %453 = vmatpush.bf16.msra.mxu0 0
      %454 = vmatpush.bf16.msra.mxu0 %v445
      %455 = vmatmul.bf16.gmra.mxu0 %v442
      %v456 = vpop.f32.mrf.mxu0
      %v457 = vadd.f32 0.0, %v456
      %v458 = vpop.f32.mrf.mxu0
      %459 = vdwg.mxu0
      %v460 = vadd.f32 %v437, %v457
      %461 = vst.msk [vmem:[%s430] sm:$0x7f] %vm375, %v460
      %462 = vst.msk [vmem:[%s405] sm:$0x7f] %vm335, %v410
      // Predicated region
      $region37: #{transformer_forward.41} parent=31 // pred_check
        %p463 = pneg %p258
      $region38: #{transformer_forward.41} parent=31 // pred_check_branch
        %465 = sbr.rel (%p463) target = $region40
      $region39: #{transformer_forward.41} parent=31 // pred_region
        %v466 = vld [vmem:[#allocation3] sm:$0x7f]
        %v467 = vrcp.pop %v466
        %v468 = vld [vmem:[#allocation4] sm:$0x7f]
        %470 = vset.pattern.permute.xlu0 0
        %471 = vperm.xlu0 %470, %v467
        %v472 = vpop.permute.xlu0 %471
        %v474 = vmul.f32 %v468, %v472
        %v475 = vpack.c.bf16 %v474, %v474
        %vm476 = vcmask 125952
        %vm477 = vsmask.f32 3328
        %vm478 = vmand %vm476, %vm477
        %v479 = vld [vmem:[%s256] sm:$0xf]
        %v480 = vsel %vm478, %v475, %v479
        %481 = vst [vmem:[%s256] sm:$0xf] %v480
        %v482 = vld [vmem:[%s422] sm:$0x7f]
        %v483 = vrcp.pop %v482
        %v484 = vld [vmem:[%s430] sm:$0x7f]
        %486 = vset.pattern.permute.xlu0 0
        %487 = vperm.xlu0 %486, %v483
        %v488 = vpop.permute.xlu0 %487
        %v490 = vmul.f32 %v484, %v488
        %v491 = vpack.c.bf16 %v490, %v490
        %493 = vrot.lane.b32.xlu0 %v491, 16
        %v494 = vpop.permute.xlu0 %493
        %vm496 = vcmask 257152
        %vm497 = vmand %vm496, %vm477
        %v498 = vld [vmem:[%s256] sm:$0xf]
        %v499 = vsel %vm497, %v494, %v498
        %500 = vst [vmem:[%s256] sm:$0xf] %v499
      $region40: #{transformer_forward.41} parent=31 // pred_fallthru
        _
      %p501 = scmp.lt.s32.totalorder %s19, 1
      %s502 = scalar_select %p501, %s19, 1
      %p503 = scmp.lt.s32.totalorder %s20, 0
      %s504 = scalar_select %p503, %s20, 0
      %s505 = sadd.s32 %s504, %s502
      %s506 = smul.addr %s505, 4
      %s507 = scalar_lea.vmem %s3, %s506
      // Predicated region
      $region41: #{transformer_forward.41} parent=31 // pred_check
        %p508 = pneg %p137
      $region42: #{transformer_forward.41} parent=31 // pred_check_branch
        %510 = sbr.rel (%p508) target = $region44
      $region43: #{transformer_forward.41} parent=31 // pred_region
        _
      $region44: #{transformer_forward.41} parent=31 // pred_fallthru
        _
    $region32: #{transformer_forward.41} parent=5 // pred_fallthru
      _
    %p511 = scmp.le.s32.totalorder 2, %s9
    // Predicated region
    $region45: #{transformer_forward.41} parent=5 // pred_check
      %p512 = pneg %p511
    $region46: #{transformer_forward.41} parent=5 // pred_check_branch
      %514 = sbr.rel (%p512) target = $region48
    $region47: #{transformer_forward.41} parent=5 // pred_region
      %s515 = ssub.s32 %s9, 2
      // Predicated region
      $region49: #{transformer_forward.41} parent=47 // pred_check
        %p516 = pneg %p143
      $region50: #{transformer_forward.41} parent=47 // pred_check_branch
        %518 = sbr.rel (%p516) target = $region52
      $region51: #{transformer_forward.41} parent=47 // pred_region
        %p519 = scmp.lt.s32.totalorder %s22, 1
        %s520 = scalar_select %p519, %s22, 1
        %p521 = scmp.lt.s32.totalorder %s23, 0
        %s522 = scalar_select %p521, %s23, 0
        %s523 = sadd.s32 %s522, %s520
        %s524 = smul.addr %s523, 4
        %s525 = scalar_lea.vmem %s3, %s524
      $region52: #{transformer_forward.41} parent=47 // pred_fallthru
        _
    $region48: #{transformer_forward.41} parent=5 // pred_fallthru
      _
  $region6: #{transformer_forward.41} parent=0 // loop_footer
    %s13 = sadd.s32 1, %s9
  $region7: #{transformer_forward.41} parent=0 // loop_footer_branch
    %8 = sbr.rel target = $region3
  $region8: #{transformer_forward.41} parent=0 // loop_exit
    _

// kernel: transformer_forward.57
$region0: #{transformer_forward.57}
  #allocation0 [shape = 'u32[]', space=smem, size = 0x4, offset = 0x4, fixed_abs, tag = 'smem constant byte address 0x4 - core index']
  #allocation1 [shape = 'u32[72,128]{1,0:T(1,128)}', space=vmem, size = 0x9000, scoped, tag = 'internal scratch']
  %s0 = inlined_call_operand.vmem [shape: bf16[14,32], index: 0, kind: input, shape index: {}]
  %s1 = inlined_call_operand.vmem [shape: bf16[32,32], index: 1, kind: input, shape index: {}]
  %s2 = inlined_call_operand.hbm [shape: f32[14,32], index: 2, kind: output, shape index: {}]
  %s3 = sld [smem:[#allocation0]]
  $region18: #{transformer_forward.57} parent=0
    _
  %s5 = ssub.s32 1, %s3
  %s6 = scalar_select 0, %s5, %s3
  $region1: #{transformer_forward.57} parent=0
    #allocation2 [shape = 'u8[8192]{0}', space=vmem, size = 0x2000, scoped, tag = 'output window, operand 0, single buffered']
    #allocation3 [shape = 's32[1]{0}', space=sflag, size = 0x4, scoped, tag = 'scoped memory for transformer_forward.57']
    %7 = vsyncpa [#allocation3], 0
    // Predicated region
    $region2: #{transformer_forward.57} parent=1 // pred_check
      _
    $region3: #{transformer_forward.57} parent=1 // pred_check_branch
      %9 = sbr.rel (0) target = $region5
    $region4: #{transformer_forward.57} parent=1 // pred_region
      _
    $region5: #{transformer_forward.57} parent=1 // pred_fallthru
      _
    // Predicated region
    $region6: #{transformer_forward.57} parent=1 // pred_check
      _
    $region7: #{transformer_forward.57} parent=1 // pred_check_branch
      %11 = sbr.rel (0) target = $region9
    $region8: #{transformer_forward.57} parent=1 // pred_region
      _
    $region9: #{transformer_forward.57} parent=1 // pred_fallthru
      _
    %v13 = vld [vmem:[%s0] sm:$0xf]
    %v14 = vld [vmem:[%s0 + $0x4] sm:$0x7]
    %v15 = vld [vmem:[%s1] sm:$0xf]
    %v16 = vld [vmem:[%s1 + $0x4] sm:$0xf]
    %v17 = vld [vmem:[%s1 + $0x8] sm:$0xf]
    %v18 = vld [vmem:[%s1 + $0xc] sm:$0xf]
    %v21 = vunpack.c.l.b16 %v13
    %v22 = vunpack.c.l.b16 %v14
    %v23 = vpack.c.b16 %v22, %v21
    %v28 = vunpack.c.l.b16 %v15
    %v29 = vunpack.c.l.b16 %v16
    %v30 = vunpack.c.l.b16 %v17
    %v31 = vunpack.c.l.b16 %v18
    %v32 = vpack.c.b16 %v29, %v28
    %v33 = vpack.c.b16 %v31, %v30
    %vm36 = vcmask 261120
    %v38 = vsel %vm36, %v23, 0
    %40 = vmatpush.bf16.msra.mxu0 0
    %41 = vmatpush.bf16.msra.mxu0 0
    %42 = vmatpush.bf16.msra.mxu0 0
    %43 = vmatpush.bf16.msra.mxu0 0
    %44 = vmatpush.bf16.msra.mxu0 0
    %45 = vmatpush.bf16.msra.mxu0 0
    %46 = vmatpush.bf16.msra.mxu0 %v33
    %47 = vmatpush.bf16.msra.mxu0 %v32
    %48 = vmatmul.bf16.gmra.mxu0 %v38
    %v49 = vpop.f32.mrf.mxu0
    %v50 = vadd.f32 0.0, %v49
    %v51 = vpop.f32.mrf.mxu0
    %v52 = vadd.f32 0.0, %v51
    %53 = vdwg.mxu0
    %v54 = vmul.f32 %v50, 0.17677669
    %v55 = vmul.f32 %v52, 0.17677669
    %56 = vst.msk [vmem:[#allocation2] sm:$0xff] %vm36, %v54
    %vm57 = vcmask 259072
    %58 = vst.msk [vmem:[#allocation2 + $0x8] sm:$0x3f] %vm57, %v55
    // Predicated region
    $region10: #{transformer_forward.57} parent=1 // pred_check
      _
    $region11: #{transformer_forward.57} parent=1 // pred_check_branch
      %60 = sbr.rel (0) target = $region13
    $region12: #{transformer_forward.57} parent=1 // pred_region
      %62 = vsyncadd [#allocation3], 0
      %s63 = sshll.u32 [#allocation2], 4
      %s64 = int_to_ptr.vmem [resolvable:$true] %s63
      %s65 = sshll.u32 %s2, 4
      %s66 = int_to_ptr.hbm [resolvable:$true] %s65
      %71 = dma.vmem_to_hbm [thread:$0]  %s64, 256, %s66, [#allocation3], 128, 128, 8
    $region13: #{transformer_forward.57} parent=1 // pred_fallthru
      _
    // Predicated region
    $region14: #{transformer_forward.57} parent=1 // pred_check
      _
    $region15: #{transformer_forward.57} parent=1 // pred_check_branch
      %73 = sbr.rel (0) target = $region17
    $region16: #{transformer_forward.57} parent=1 // pred_region
      %75 = dma.done [#allocation3], 256
    $region17: #{transformer_forward.57} parent=1 // pred_fallthru
      _
    %76 = vsyncpa [#allocation3], 1

// kernel: transformer_forward.47
$region0: #{transformer_forward.47}
  #allocation0 [shape = 'u32[]', space=smem, size = 0x4, offset = 0x4, fixed_abs, tag = 'smem constant byte address 0x4 - core index']
  #allocation1 [shape = 'u32[72,128]{1,0:T(1,128)}', space=vmem, size = 0x9000, scoped, tag = 'internal scratch']
  #allocation2 [shape = 'f32[14,32]{1,0:T(8,128)}', space=vmem, size = 0x2000, scoped, tag = 'scratch operand']
  %s0 = inlined_call_operand.vmem [shape: bf16[14,32], index: 0, kind: input, shape index: {}]
  %s1 = inlined_call_operand.vmem [shape: f32[14,1], index: 1, kind: input, shape index: {}]
  %s2 = inlined_call_operand.vmem [shape: bf16[32,64], index: 2, kind: input, shape index: {}]
  %s3 = inlined_call_operand.vmem [shape: f32[1,64], index: 3, kind: input, shape index: {}]
  %s4 = inlined_call_operand.vmem [shape: bf16[64,32], index: 4, kind: input, shape index: {}]
  %s5 = inlined_call_operand.vmem [shape: f32[3,32], index: 5, kind: input, shape index: {}]
  %s6 = inlined_call_operand.vmem [shape: bf16[14,32], index: 6, kind: output, shape index: {}]
  %s7 = sld [smem:[#allocation0]]
  $region42: #{transformer_forward.47} parent=0
    _
  %s9 = ssub.s32 1, %s7
  %s10 = scalar_select 0, %s9, %s7
  // Predicated region
  $region2: #{transformer_forward.47} parent=0 // pred_check
    _
  $region3: #{transformer_forward.47} parent=0 // pred_check_branch
    %12 = sbr.rel (0) target = $region5
  $region4: #{transformer_forward.47} parent=0 // pred_region
    _
  $region5: #{transformer_forward.47} parent=0 // pred_fallthru
    _
  // Predicated region
  $region6: #{transformer_forward.47} parent=0 // pred_check
    _
  $region7: #{transformer_forward.47} parent=0 // pred_check_branch
    %14 = sbr.rel (0) target = $region9
  $region8: #{transformer_forward.47} parent=0 // pred_region
    _
  $region9: #{transformer_forward.47} parent=0 // pred_fallthru
    _
  // Predicated region
  $region10: #{transformer_forward.47} parent=0 // pred_check
    _
  $region11: #{transformer_forward.47} parent=0 // pred_check_branch
    %16 = sbr.rel (0) target = $region13
  $region12: #{transformer_forward.47} parent=0 // pred_region
    _
  $region13: #{transformer_forward.47} parent=0 // pred_fallthru
    _
  // Predicated region
  $region14: #{transformer_forward.47} parent=0 // pred_check
    _
  $region15: #{transformer_forward.47} parent=0 // pred_check_branch
    %18 = sbr.rel (0) target = $region17
  $region16: #{transformer_forward.47} parent=0 // pred_region
    _
  $region17: #{transformer_forward.47} parent=0 // pred_fallthru
    _
  // Predicated region
  $region18: #{transformer_forward.47} parent=0 // pred_check
    _
  $region19: #{transformer_forward.47} parent=0 // pred_check_branch
    %20 = sbr.rel (0) target = $region21
  $region20: #{transformer_forward.47} parent=0 // pred_region
    _
  $region21: #{transformer_forward.47} parent=0 // pred_fallthru
    _
  // Predicated region
  $region22: #{transformer_forward.47} parent=0 // pred_check
    _
  $region23: #{transformer_forward.47} parent=0 // pred_check_branch
    %22 = sbr.rel (0) target = $region25
  $region24: #{transformer_forward.47} parent=0 // pred_region
    _
  $region25: #{transformer_forward.47} parent=0 // pred_fallthru
    _
  %p24 = scmp.eq.s32.totalorder 0, 0
  // Predicated region
  $region26: #{transformer_forward.47} parent=0 // pred_check
    %p25 = pneg %p24
  $region27: #{transformer_forward.47} parent=0 // pred_check_branch
    %27 = sbr.rel (%p25) target = $region29
  $region28: #{transformer_forward.47} parent=0 // pred_region
    %vm28 = vcmask 261120
    %29 = vst.msk [vmem:[#allocation2] sm:$0xff] %vm28, 0.0
    %vm30 = vcmask 259072
    %31 = vst.msk [vmem:[#allocation2 + $0x8] sm:$0x3f] %vm30, 0.0
  $region29: #{transformer_forward.47} parent=0 // pred_fallthru
    _
  %v32 = vld [vmem:[%s0] sm:$0xf]
  %v33 = vld [vmem:[%s0 + $0x4] sm:$0x7]
  %v34 = vld [vmem:[%s2] sm:$0xf]
  %v35 = vld [vmem:[%s2 + $0x4] sm:$0xf]
  %v36 = vld [vmem:[%s2 + $0x8] sm:$0xf]
  %v37 = vld [vmem:[%s2 + $0xc] sm:$0xf]
  %v38 = vld [vmem:[%s3] sm:$0x1]
  %v40 = vperm.slane %v38, 0
  %v44 = vunpack.c.l.b16 %v32
  %v45 = vunpack.c.l.b16 %v33
  %v46 = vpack.c.b16 %v45, %v44
  %v51 = vunpack.c.l.b16 %v34
  %v52 = vunpack.c.l.b16 %v35
  %v53 = vunpack.c.l.b16 %v36
  %v54 = vunpack.c.l.b16 %v37
  %v55 = vpack.c.b16 %v52, %v51
  %v56 = vpack.c.b16 %v54, %v53
  %vm59 = vcmask 261120
  %v61 = vsel %vm59, %v46, 0
  %63 = vmatpush.bf16.msra.mxu0 0
  %64 = vmatpush.bf16.msra.mxu0 0
  %65 = vmatpush.bf16.msra.mxu0 0
  %66 = vmatpush.bf16.msra.mxu0 0
  %67 = vmatpush.bf16.msra.mxu0 0
  %68 = vmatpush.bf16.msra.mxu0 0
  %69 = vmatpush.bf16.msra.mxu0 %v56
  %70 = vmatpush.bf16.msra.mxu0 %v55
  %71 = vmatmul.bf16.gmra.mxu0 %v61
  %v72 = vpop.f32.mrf.mxu0
  %v73 = vadd.f32 %v40, %v72
  %v74 = vpop.f32.mrf.mxu0
  %v75 = vadd.f32 %v40, %v74
  %76 = vdwg.mxu0
  %v77 = vmax.f32 %v73, 0.0
  %v78 = vmax.f32 %v75, 0.0
  %v79 = vld [vmem:[%s4] sm:$0xf]
  %v80 = vld [vmem:[%s4 + $0x4] sm:$0xf]
  %v81 = vld [vmem:[%s4 + $0x8] sm:$0xf]
  %v82 = vld [vmem:[%s4 + $0xc] sm:$0xf]
  %v83 = vld [vmem:[%s4 + $0x10] sm:$0xf]
  %v84 = vld [vmem:[%s4 + $0x14] sm:$0xf]
  %v85 = vld [vmem:[%s4 + $0x18] sm:$0xf]
  %v86 = vld [vmem:[%s4 + $0x1c] sm:$0xf]
  %v87 = vld [vmem:[#allocation2] sm:$0xff]
  %v88 = vld [vmem:[#allocation2 + $0x8] sm:$0x3f]
  %v89 = vpack.c.bf16 %v78, %v77
  %v98 = vunpack.c.l.b16 %v79
  %v99 = vunpack.c.l.b16 %v80
  %v100 = vunpack.c.l.b16 %v81
  %v101 = vunpack.c.l.b16 %v82
  %v102 = vunpack.c.l.b16 %v83
  %v103 = vunpack.c.l.b16 %v84
  %v104 = vunpack.c.l.b16 %v85
  %v105 = vunpack.c.l.b16 %v86
  %v106 = vpack.c.b16 %v99, %v98
  %v107 = vpack.c.b16 %v101, %v100
  %v108 = vpack.c.b16 %v103, %v102
  %v109 = vpack.c.b16 %v105, %v104
  %vm114 = vcmask 523264
  %v116 = vsel %vm114, %v89, 0
  %118 = vmatpush.bf16.msra.mxu0 0
  %119 = vmatpush.bf16.msra.mxu0 0
  %120 = vmatpush.bf16.msra.mxu0 0
  %121 = vmatpush.bf16.msra.mxu0 0
  %122 = vmatpush.bf16.msra.mxu0 %v109
  %123 = vmatpush.bf16.msra.mxu0 %v108
  %124 = vmatpush.bf16.msra.mxu0 %v107
  %125 = vmatpush.bf16.msra.mxu0 %v106
  %126 = vmatmul.bf16.gmra.mxu0 %v116
  %v127 = vpop.f32.mrf.mxu0
  %v128 = vadd.f32 0.0, %v127
  %v129 = vpop.f32.mrf.mxu0
  %v130 = vadd.f32 0.0, %v129
  %131 = vdwg.mxu0
  %v132 = vadd.f32 %v87, %v128
  %v133 = vadd.f32 %v88, %v130
  %134 = vst.msk [vmem:[#allocation2] sm:$0xff] %vm59, %v132
  %vm135 = vcmask 259072
  %136 = vst.msk [vmem:[#allocation2 + $0x8] sm:$0x3f] %vm135, %v133
  // Predicated region
  $region30: #{transformer_forward.47} parent=0 // pred_check
    %p137 = pneg %p24
  $region31: #{transformer_forward.47} parent=0 // pred_check_branch
    %139 = sbr.rel (%p137) target = $region33
  $region32: #{transformer_forward.47} parent=0 // pred_region
    %v140 = vld [vmem:[%s5] sm:$0x7]
    %v141 = vld [vmem:[#allocation2] sm:$0xff]
    %v142 = vld [vmem:[#allocation2 + $0x8] sm:$0x3f]
    %v143 = vperm.slane %v140, 0
    %v144 = vadd.f32 %v141, %v143
    %v145 = vadd.f32 %v142, %v143
    %v146 = vunpack.c.l.bf16 %v32
    %v147 = vunpack.c.l.bf16 %v33
    %v148 = vadd.f32 %v144, %v146
    %v149 = vadd.f32 %v145, %v147
    %v150 = vsel %vm59, %v148, 0.0
    %151 = vadd.xlane.f32.xlu0 %v150
    %v152 = vpop.xlane.xlu0 %151
    %v153 = vsel %vm135, %v149, 0.0
    %154 = vadd.xlane.f32.xlu0 %v153
    %v155 = vpop.xlane.xlu0 %154
    %v156 = vrcp.pop 32.0
    %v157 = vmul.f32 32.0, %v156
    %v158 = vsub.f32 1.0, %v157
    %v159 = vmul.f32 %v156, %v158
    %v160 = vadd.f32 %v156, %v159
    %vm161 = vweird.f32 %v156
    %v162 = vsel %vm161, %v156, %v160
    %v163 = vmul.f32 %v152, %v162
    %v164 = vmul.f32 %v155, %v162
    %v165 = vsub.f32 %v148, %v163
    %v166 = vsub.f32 %v149, %v164
    %v167 = vmul.f32 %v165, %v165
    %v168 = vmul.f32 %v166, %v166
    %v169 = vsel %vm59, %v167, 0.0
    %170 = vadd.xlane.f32.xlu0 %v169
    %v171 = vpop.xlane.xlu0 %170
    %v172 = vsel %vm135, %v168, 0.0
    %173 = vadd.xlane.f32.xlu0 %v172
    %v174 = vpop.xlane.xlu0 %173
    %v175 = vmul.f32 %v171, %v162
    %v176 = vmul.f32 %v174, %v162
    %v177 = vadd.f32 %v175, 1e-05
    %v178 = vadd.f32 %v176, 1e-05
    %v179 = vrsqrt.pop %v177
    %v180 = vmul.f32 %v179, %v177
    %v181 = vmul.f32 %v180, %v179
    %v182 = vmul.f32 0.5, %v181
    %v183 = vsub.f32 1.5, %v182
    %v184 = vmul.f32 %v179, %v183
    %vm185 = vweird.f32 %v177
    %vm186 = vweird.f32 %v179
    %vm187 = vmor %vm185, %vm186
    %v188 = vsel %vm187, %v179, %v184
    %v189 = vrsqrt.pop %v178
    %v190 = vmul.f32 %v189, %v178
    %v191 = vmul.f32 %v190, %v189
    %v192 = vmul.f32 0.5, %v191
    %v193 = vsub.f32 1.5, %v192
    %v194 = vmul.f32 %v189, %v193
    %vm195 = vweird.f32 %v178
    %vm196 = vweird.f32 %v189
    %vm197 = vmor %vm195, %vm196
    %v198 = vsel %vm197, %v189, %v194
    %v199 = vmul.f32 %v165, %v188
    %v200 = vmul.f32 %v166, %v198
    %v201 = vperm.slane %v140, 1
    %v202 = vmul.f32 %v199, %v201
    %v203 = vmul.f32 %v200, %v201
    %v204 = vperm.slane %v140, 2
    %v205 = vadd.f32 %v202, %v204
    %v206 = vadd.f32 %v203, %v204
    %v207 = vld [vmem:[%s1] sm:$0xff]
    %v208 = vld [vmem:[%s1 + $0x8] sm:$0x3f]
    %210 = vset.pattern.permute.xlu0 0
    %211 = vperm.xlu0 %210, %v207
    %v212 = vpop.permute.xlu0 %211
    %215 = vset.pattern.permute.xlu0 0
    %216 = vperm.xlu0 %215, %v208
    %v217 = vpop.permute.xlu0 %216
    %v219 = vmul.f32 %v205, %v212
    %v220 = vmul.f32 %v206, %v217
    %v221 = vpack.c.bf16 %v219, %v219
    %v222 = vpack.c.bf16 %v220, %v220
    %vm223 = vcmask 257024
    %224 = vst.msk [vmem:[%s6] sm:$0xf] %vm223, %v221
    %vm225 = vcmask 256000
    %226 = vst.msk [vmem:[%s6 + $0x4] sm:$0x7] %vm225, %v222
  $region33: #{transformer_forward.47} parent=0 // pred_fallthru
    _
  // Predicated region
  $region34: #{transformer_forward.47} parent=0 // pred_check
    _
  $region35: #{transformer_forward.47} parent=0 // pred_check_branch
    %228 = sbr.rel (0) target = $region37
  $region36: #{transformer_forward.47} parent=0 // pred_region
    _
  $region37: #{transformer_forward.47} parent=0 // pred_fallthru
    _
  // Predicated region
  $region38: #{transformer_forward.47} parent=0 // pred_check
    _
  $region39: #{transformer_forward.47} parent=0 // pred_check_branch
    %230 = sbr.rel (0) target = $region41
  $region40: #{transformer_forward.47} parent=0 // pred_region
    _
  $region41: #{transformer_forward.47} parent=0 // pred_fallthru
    _

// kernel: transformer_forward.45
$region0: #{transformer_forward.45}
  #allocation0 [shape = 'u32[]', space=smem, size = 0x4, offset = 0x4, fixed_abs, tag = 'smem constant byte address 0x4 - core index']
  #allocation1 [shape = 'u32[72,128]{1,0:T(1,128)}', space=vmem, size = 0x9000, scoped, tag = 'internal scratch']
  #allocation2 [shape = 'f32[2,7,1]{2,1,0:T(8,128)}', space=vmem, size = 0x2000, scoped, tag = 'scratch operand']
  #allocation3 [shape = 'f32[2,7,1]{2,1,0:T(8,128)}', space=vmem, size = 0x2000, scoped, tag = 'scratch operand']
  #allocation4 [shape = 'f32[2,7,16]{2,1,0:T(8,128)}', space=vmem, size = 0x2000, scoped, tag = 'scratch operand']
  %s0 = inlined_call_operand.vmem [shape: s32[2,1,8], index: 0, kind: input, shape index: {}]
  %s1 = inlined_call_operand.vmem [shape: bf16[2,7,32], index: 1, kind: input, shape index: {}]
  %s2 = inlined_call_operand.vmem [shape: bf16[2,8,64], index: 2, kind: input, shape index: {}]
  %s3 = inlined_call_operand.vmem [shape: bf16[2,7,32], index: 3, kind: output, shape index: {}]
  %s4 = sld [smem:[#allocation0]]
  $region53: #{transformer_forward.45} parent=0
    _
  %s6 = ssub.s32 1, %s4
  %s7 = scalar_select 0, %s6, %s4
  loop: start=0, step=1, limit=4
  $region2: #{transformer_forward.45} parent=0 // loop_pre_header
    _
  $region3: #{transformer_forward.45} parent=0 // loop_header
    %s9 = sphi 0, %s13
    %p10 = scmp.ge.s32.totalorder %s9, 4
    %s16 = sphi 0, %s35
    %s17 = sphi 0, %s31
    %s18 = sphi 0, %s27
    %s19 = sphi 0, %s16
    %s20 = sphi 0, %s17
    %s21 = sphi 0, %s18
    %s22 = sphi 0, %s19
    %s23 = sphi 0, %s20
    %s24 = sphi 0, %s21
    %s40 = sphi 0, %s42
    %s43 = sphi 0, %s40
    %s44 = sphi 0, %s43
    %s60 = sphi 0, %s44
    %s68 = sphi 0, %s70
    %s71 = sphi 0, %s68
    %s72 = sphi 0, %s71
    %s88 = sphi 0, %s72
    %s96 = sphi 0, %s98
    %s99 = sphi 0, %s96
    %s100 = sphi 0, %s99
    %s116 = sphi 0, %s100
    %s124 = sphi 0, %s126
    %s127 = sphi 0, %s124
    %s128 = sphi 0, %s127
    %s144 = sphi 0, %s128
  $region4: #{transformer_forward.45} parent=0 // loop_header_branch
    %12 = sbr.rel (%p10) target = $region8
  $region5: #{transformer_forward.45} parent=0 // loop_body
    %s14 = ssub.s32 %s9, 1
    %s15 = ssub.s32 %s9, 2
    %s25 = sadd.s32 1, %s18
    %p26 = scmp.ge.s32.totalorder %s25, 1
    %s27 = scalar_select %p26, 0, %s25
    %s28 = sadd.s32 1, %s17
    %s29 = scalar_select %p26, %s28, %s17
    %p30 = scmp.ge.s32.totalorder %s29, 1
    %s31 = scalar_select %p30, 0, %s29
    %s32 = sadd.s32 1, %s16
    %s33 = scalar_select %p30, %s32, %s16
    %p34 = scmp.ge.s32.totalorder %s33, 2
    %s35 = scalar_select %p34, 0, %s33
    %s36 = ssub.s32 %s16, %s35
    %s37 = ssub.s32 %s18, %s27
    %s38 = sor.u32 %s36, %s37
    %p39 = scmp.eq.s32.totalorder %s38, 0
    %s41 = sadd.s32 %s40, 1
    %s42 = scalar_select %p39, %s40, %s41
    %p45 = pneg %p39
    %p46 = scmp.eq.s32.totalorder %s9, 1
    %p47 = por %p45, %p46
    %p48 = scmp.ne.s32.totalorder %s40, %s43
    %p49 = scmp.eq.s32.totalorder %s9, 0
    %p50 = por %p48, %p49
    %p51 = scmp.ne.s32.totalorder %s40, %s43
    %p52 = scmp.eq.s32.totalorder %s14, 1
    %p53 = por %p51, %p52
    %p54 = scmp.ne.s32.totalorder %s43, %s44
    %p55 = scmp.eq.s32.totalorder %s14, 0
    %p56 = por %p54, %p55
    %p57 = scmp.ne.s32.totalorder %s43, %s44
    %p58 = scmp.eq.s32.totalorder %s15, 1
    %p59 = por %p57, %p58
    %p61 = scmp.ne.s32.totalorder %s44, %s60
    %p62 = scmp.eq.s32.totalorder %s15, 0
    %p63 = por %p61, %p62
    %s64 = ssub.s32 %s16, %s35
    %s65 = ssub.s32 %s17, %s31
    %s66 = sor.u32 %s64, %s65
    %p67 = scmp.eq.s32.totalorder %s66, 0
    %s69 = sadd.s32 %s68, 1
    %s70 = scalar_select %p67, %s68, %s69
    %p73 = pneg %p67
    %p74 = scmp.eq.s32.totalorder %s9, 1
    %p75 = por %p73, %p74
    %p76 = scmp.ne.s32.totalorder %s68, %s71
    %p77 = scmp.eq.s32.totalorder %s9, 0
    %p78 = por %p76, %p77
    %p79 = scmp.ne.s32.totalorder %s68, %s71
    %p80 = scmp.eq.s32.totalorder %s14, 1
    %p81 = por %p79, %p80
    %p82 = scmp.ne.s32.totalorder %s71, %s72
    %p83 = scmp.eq.s32.totalorder %s14, 0
    %p84 = por %p82, %p83
    %p85 = scmp.ne.s32.totalorder %s71, %s72
    %p86 = scmp.eq.s32.totalorder %s15, 1
    %p87 = por %p85, %p86
    %p89 = scmp.ne.s32.totalorder %s72, %s88
    %p90 = scmp.eq.s32.totalorder %s15, 0
    %p91 = por %p89, %p90
    %s92 = ssub.s32 %s16, %s35
    %s93 = ssub.s32 %s18, %s27
    %s94 = sor.u32 %s92, %s93
    %p95 = scmp.eq.s32.totalorder %s94, 0
    %s97 = sadd.s32 %s96, 1
    %s98 = scalar_select %p95, %s96, %s97
    %p101 = pneg %p95
    %p102 = scmp.eq.s32.totalorder %s9, 1
    %p103 = por %p101, %p102
    %p104 = scmp.ne.s32.totalorder %s96, %s99
    %p105 = scmp.eq.s32.totalorder %s9, 0
    %p106 = por %p104, %p105
    %p107 = scmp.ne.s32.totalorder %s96, %s99
    %p108 = scmp.eq.s32.totalorder %s14, 1
    %p109 = por %p107, %p108
    %p110 = scmp.ne.s32.totalorder %s99, %s100
    %p111 = scmp.eq.s32.totalorder %s14, 0
    %p112 = por %p110, %p111
    %p113 = scmp.ne.s32.totalorder %s99, %s100
    %p114 = scmp.eq.s32.totalorder %s15, 1
    %p115 = por %p113, %p114
    %p117 = scmp.ne.s32.totalorder %s100, %s116
    %p118 = scmp.eq.s32.totalorder %s15, 0
    %p119 = por %p117, %p118
    %s120 = ssub.s32 %s16, %s35
    %s121 = ssub.s32 %s17, %s31
    %s122 = sor.u32 %s120, %s121
    %p123 = scmp.eq.s32.totalorder %s122, 0
    %s125 = sadd.s32 %s124, 1
    %s126 = scalar_select %p123, %s124, %s125
    %p129 = pneg %p123
    %p130 = scmp.eq.s32.totalorder %s9, 1
    %p131 = por %p129, %p130
    %p132 = scmp.ne.s32.totalorder %s124, %s127
    %p133 = scmp.eq.s32.totalorder %s9, 0
    %p134 = por %p132, %p133
    %p135 = scmp.ne.s32.totalorder %s124, %s127
    %p136 = scmp.eq.s32.totalorder %s14, 1
    %p137 = por %p135, %p136
    %p138 = scmp.ne.s32.totalorder %s127, %s128
    %p139 = scmp.eq.s32.totalorder %s14, 0
    %p140 = por %p138, %p139
    %p141 = scmp.ne.s32.totalorder %s127, %s128
    %p142 = scmp.eq.s32.totalorder %s15, 1
    %p143 = por %p141, %p142
    %p145 = scmp.ne.s32.totalorder %s128, %s144
    %p146 = scmp.eq.s32.totalorder %s15, 0
    %p147 = por %p145, %p146
    %p148 = scmp.le.s32.totalorder 1, %s9
    %p149 = scmp.lt.s32.totalorder %s9, 3
    %p150 = pnand %p148, %p149
    %p151 = pneg %p150
    // Predicated region
    $region9: #{transformer_forward.45} parent=5 // pred_check
      _
    $region10: #{transformer_forward.45} parent=5 // pred_check_branch
      %153 = sbr.rel (%p150) target = $region12
    $region11: #{transformer_forward.45} parent=5 // pred_region
      %s154 = ssub.s32 %s9, 1
    $region12: #{transformer_forward.45} parent=5 // pred_fallthru
      _
    %p155 = scmp.lt.s32.totalorder %s9, 2
    // Predicated region
    $region13: #{transformer_forward.45} parent=5 // pred_check
      %p156 = pneg %p155
    $region14: #{transformer_forward.45} parent=5 // pred_check_branch
      %158 = sbr.rel (%p156) target = $region16
    $region15: #{transformer_forward.45} parent=5 // pred_region
      // Predicated region
      $region17: #{transformer_forward.45} parent=15 // pred_check
        %p159 = pneg %p50
      $region18: #{transformer_forward.45} parent=15 // pred_check_branch
        %161 = sbr.rel (%p159) target = $region20
      $region19: #{transformer_forward.45} parent=15 // pred_region
        %p162 = scmp.lt.s32.totalorder %s16, 1
        %s163 = scalar_select %p162, %s16, 1
        %p164 = scmp.lt.s32.totalorder %s18, 0
        %s165 = scalar_select %p164, %s18, 0
        %s166 = sadd.s32 %s165, %s163
        %s167 = scalar_lea.vmem %s0, %s166
      $region20: #{transformer_forward.45} parent=15 // pred_fallthru
        _
      // Predicated region
      $region21: #{transformer_forward.45} parent=15 // pred_check
        %p168 = pneg %p78
      $region22: #{transformer_forward.45} parent=15 // pred_check_branch
        %170 = sbr.rel (%p168) target = $region24
      $region23: #{transformer_forward.45} parent=15 // pred_region
        %p171 = scmp.lt.s32.totalorder %s16, 1
        %s172 = scalar_select %p171, %s16, 1
        %p173 = scmp.lt.s32.totalorder %s17, 0
        %s174 = scalar_select %p173, %s17, 0
        %s175 = sadd.s32 %s174, %s172
        %s176 = smul.addr %s175, 4
        %s177 = scalar_lea.vmem %s1, %s176
      $region24: #{transformer_forward.45} parent=15 // pred_fallthru
        _
      // Predicated region
      $region25: #{transformer_forward.45} parent=15 // pred_check
        %p178 = pneg %p106
      $region26: #{transformer_forward.45} parent=15 // pred_check_branch
        %180 = sbr.rel (%p178) target = $region28
      $region27: #{transformer_forward.45} parent=15 // pred_region
        %p181 = scmp.lt.s32.totalorder %s16, 1
        %s182 = scalar_select %p181, %s16, 1
        %p183 = scmp.lt.s32.totalorder %s18, 0
        %s184 = scalar_select %p183, %s18, 0
        %s185 = sadd.s32 %s184, %s182
        %s186 = smul.addr %s185, 4
        %s187 = scalar_lea.vmem %s2, %s186
      $region28: #{transformer_forward.45} parent=15 // pred_fallthru
        _
    $region16: #{transformer_forward.45} parent=5 // pred_fallthru
      _
    %p188 = scmp.le.s32.totalorder 1, %s9
    %p189 = scmp.lt.s32.totalorder %s9, 3
    %p190 = pnand %p188, %p189
    %p191 = pneg %p190
    // Predicated region
    $region29: #{transformer_forward.45} parent=5 // pred_check
      _
    $region30: #{transformer_forward.45} parent=5 // pred_check_branch
      %193 = sbr.rel (%p190) target = $region32
    $region31: #{transformer_forward.45} parent=5 // pred_region
      %s194 = ssub.s32 %s9, 1
      %p195 = scmp.lt.s32.totalorder %s19, 1
      %s196 = scalar_select %p195, %s19, 1
      %p197 = scmp.lt.s32.totalorder %s21, 0
      %s198 = scalar_select %p197, %s21, 0
      %s199 = sadd.s32 %s198, %s196
      %s200 = scalar_lea.vmem %s0, %s199
      %p201 = pneg %p56
      %p202 = pneg %p53
      %p203 = scmp.lt.s32.totalorder %s19, 1
      %s204 = scalar_select %p203, %s19, 1
      %p205 = scmp.lt.s32.totalorder %s20, 0
      %s206 = scalar_select %p205, %s20, 0
      %s207 = sadd.s32 %s206, %s204
      %s208 = smul.addr %s207, 4
      %s209 = scalar_lea.vmem %s1, %s208
      %p210 = pneg %p84
      %p211 = pneg %p81
      %p212 = scmp.lt.s32.totalorder %s19, 1
      %s213 = scalar_select %p212, %s19, 1
      %p214 = scmp.lt.s32.totalorder %s21, 0
      %s215 = scalar_select %p214, %s21, 0
      %s216 = sadd.s32 %s215, %s213
      %s217 = smul.addr %s216, 4
      %s218 = scalar_lea.vmem %s2, %s217
      %p219 = pneg %p112
      %p220 = pneg %p109
      %p221 = pneg %p140
      %p222 = pneg %p137
      %p223 = scmp.lt.s32.totalorder %s19, 1
      %s224 = scalar_select %p223, %s19, 1
      %p225 = scmp.lt.s32.totalorder %s20, 0
      %s226 = scalar_select %p225, %s20, 0
      %s227 = sadd.s32 %s226, %s224
      %s228 = smul.addr %s227, 4
      %s229 = scalar_lea.vmem %s3, %s228
      %p230 = scmp.lt.s32.totalorder %s19, 1
      %s231 = scalar_select %p230, %s19, 1
      %p232 = scmp.lt.s32.totalorder %s21, 0
      %s233 = scalar_select %p232, %s21, 0
      %s234 = sadd.s32 %s233, %s231
      %s235 = scalar_lea.vmem %s0, %s234
      %p236 = scmp.lt.s32.totalorder %s19, 1
      %s237 = scalar_select %p236, %s19, 1
      %p238 = scmp.lt.s32.totalorder %s20, 0
      %s239 = scalar_select %p238, %s20, 0
      %s240 = sadd.s32 %s239, %s237
      %s241 = smul.addr %s240, 4
      %s242 = scalar_lea.vmem %s1, %s241
      %p243 = scmp.lt.s32.totalorder %s19, 1
      %s244 = scalar_select %p243, %s19, 1
      %p245 = scmp.lt.s32.totalorder %s21, 0
      %s246 = scalar_select %p245, %s21, 0
      %s247 = sadd.s32 %s246, %s244
      %s248 = smul.addr %s247, 4
      %s249 = scalar_lea.vmem %s2, %s248
      %p250 = scmp.lt.s32.totalorder %s19, 1
      %s251 = scalar_select %p250, %s19, 1
      %p252 = scmp.lt.s32.totalorder %s20, 0
      %s253 = scalar_select %p252, %s20, 0
      %s254 = sadd.s32 %s253, %s251
      %s255 = smul.addr %s254, 4
      %s256 = scalar_lea.vmem %s3, %s255
      %p258 = scmp.eq.s32.totalorder %s21, 0
      // Predicated region
      $region33: #{transformer_forward.45} parent=31 // pred_check
        %p259 = pneg %p258
      $region34: #{transformer_forward.45} parent=31 // pred_check_branch
        %261 = sbr.rel (%p259) target = $region36
      $region35: #{transformer_forward.45} parent=31 // pred_region
        %vm262 = vcmask 6144
        %263 = vst.msk [vmem:[#allocation2] sm:$0x7f] %vm262, -inf
        %264 = vst.msk [vmem:[#allocation2 + $0x8] sm:$0x7f] %vm262, -inf
        %265 = vst.msk [vmem:[#allocation3] sm:$0x7f] %vm262, 0.0
        %266 = vst.msk [vmem:[#allocation3 + $0x8] sm:$0x7f] %vm262, 0.0
        %vm267 = vcmask 129024
        %268 = vst.msk [vmem:[#allocation4] sm:$0x7f] %vm267, 0.0
        %269 = vst.msk [vmem:[#allocation4 + $0x8] sm:$0x7f] %vm267, 0.0
      $region36: #{transformer_forward.45} parent=31 // pred_fallthru
        _
      %v270 = vld [vmem:[%s242] sm:$0xf]
      %v271 = vld [vmem:[%s249] sm:$0xf]
      %s272 = smul.u32 %s21, 8
      %v273 = vlaneseq
      %v274 = vand.u32 %v273, 127
      %v275 = vstv %s272
      %v276 = vadd.s32 %v275, %v274
      %v277 = vld [vmem:[%s235] sm:$0x1]
      %vm278 = vcmp.gt.s32.totalorder %v277, 0
      %vm279 = vcmp.ge.s32.totalorder %v276, 8
      %v280 = vsel %vm278, 1, 0
      %v281 = vperm.slane %v280, 0
      %vm282 = vcmp.eq.s32.totalorder %v281, 1
      %vm283 = vmor %vm282, %vm279
      %vm284 = vcmask 130048
      %v286 = vsel %vm284, %v270, 0
      %v289 = vsel %vm284, %v271, 0
      %291 = vmatpush.bf16.xpose.msra.mxu0 0
      %292 = vmatpush.bf16.xpose.msra.mxu0 0
      %293 = vmatpush.bf16.xpose.msra.mxu0 0
      %294 = vmatpush.bf16.xpose.msra.mxu0 0
      %295 = vmatpush.bf16.xpose.msra.mxu0 0
      %296 = vmatpush.bf16.xpose.msra.mxu0 0
      %297 = vmatpush.bf16.xpose.msra.mxu0 0
      %298 = vmatpush.bf16.xpose.msra.mxu0 %v289
      %299 = vmatmul.bf16.gmra.mxu0 %v286
      %v300 = vpop.f32.mrf.mxu0
      %v301 = vadd.f32 0.0, %v300
      %v302 = vpop.f32.mrf.mxu0
      %303 = vdwg.mxu0
      %v304 = vsel %vm283, -1e+09, %v301
      %v305 = vld [vmem:[#allocation2] sm:$0x7f]
      %vm306 = vcmask 63488
      %v307 = vsel %vm306, %v304, -inf
      %308 = vmax.xlane.f32.xlu0 %v307
      %v309 = vpop.xlane.xlu0 %308
      %v310 = vmax.f32 %v305, %v309
      %v311 = vsub.f32 %v305, %v310
      %v312 = vmul.f32 %v311, 1.442695
      %v313 = vpow.pop %v312
      %315 = vset.pattern.permute.xlu0 0
      %316 = vperm.xlu0 %315, %v310
      %v317 = vpop.permute.xlu0 %316
      %v319 = vsub.f32 %v304, %v317
      %v320 = vmul.f32 %v319, 1.442695
      %v321 = vpow.pop %v320
      %v322 = vld [vmem:[#allocation3] sm:$0x7f]
      %v323 = vmul.f32 %v313, %v322
      %v324 = vsel %vm306, %v321, 0.0
      %325 = vadd.xlane.f32.xlu0 %v324
      %v326 = vpop.xlane.xlu0 %325
      %v327 = vadd.f32 %v323, %v326
      %vm328 = vcmask 6144
      %329 = vst.msk [vmem:[#allocation3] sm:$0x7f] %vm328, %v327
      %v330 = vld [vmem:[#allocation4] sm:$0x7f]
      %332 = vset.pattern.permute.xlu0 0
      %333 = vperm.xlu0 %332, %v313
      %v334 = vpop.permute.xlu0 %333
      %v336 = vmul.f32 %v334, %v330
      %v337 = vpack.c.bf16 %v321, %v321
      %v339 = vunpack.c.l.b16 %v271
      %v340 = vpack.c.b16 %v339, %v339
      %341 = vrot.lane.b32.xlu0 %v340, 96
      %v342 = vpop.permute.xlu0 %341
      %vm343 = vcmask 64512
      %v345 = vsel %vm343, %v337, 0
      %vm347 = vcmask 1043456
      %v349 = vsel %vm347, %v342, 0
      %351 = vmatpush.bf16.msra.mxu0 0
      %352 = vmatpush.bf16.msra.mxu0 0
      %353 = vmatpush.bf16.msra.mxu0 0
      %354 = vmatpush.bf16.msra.mxu0 0
      %355 = vmatpush.bf16.msra.mxu0 0
      %356 = vmatpush.bf16.msra.mxu0 0
      %357 = vmatpush.bf16.msra.mxu0 0
      %358 = vmatpush.bf16.msra.mxu0 %v349
      %359 = vmatmul.bf16.gmra.mxu0 %v345
      %v360 = vpop.f32.mrf.mxu0
      %v361 = vadd.f32 0.0, %v360
      %v362 = vpop.f32.mrf.mxu0
      %363 = vdwg.mxu0
      %v364 = vadd.f32 %v336, %v361
      %vm365 = vcmask 129024
      %366 = vst.msk [vmem:[#allocation4] sm:$0x7f] %vm365, %v364
      %367 = vst.msk [vmem:[#allocation2] sm:$0x7f] %vm328, %v310
      %v369 = vunpack.c.l.b16 %v270
      %v370 = vpack.c.b16 %v369, %v369
      %371 = vrot.lane.b32.xlu0 %v370, 112
      %v372 = vpop.permute.xlu0 %371
      %373 = vrot.lane.b32.xlu0 %v340, 112
      %v374 = vpop.permute.xlu0 %373
      %v376 = vsel %vm284, %v372, 0
      %v379 = vsel %vm284, %v374, 0
      %381 = vmatpush.bf16.xpose.msra.mxu0 0
      %382 = vmatpush.bf16.xpose.msra.mxu0 0
      %383 = vmatpush.bf16.xpose.msra.mxu0 0
      %384 = vmatpush.bf16.xpose.msra.mxu0 0
      %385 = vmatpush.bf16.xpose.msra.mxu0 0
      %386 = vmatpush.bf16.xpose.msra.mxu0 0
      %387 = vmatpush.bf16.xpose.msra.mxu0 0
      %388 = vmatpush.bf16.xpose.msra.mxu0 %v379
      %389 = vmatmul.bf16.gmra.mxu0 %v376
      %v390 = vpop.f32.mrf.mxu0
      %v391 = vadd.f32 0.0, %v390
      %v392 = vpop.f32.mrf.mxu0
      %393 = vdwg.mxu0
      %v394 = vsel %vm283, -1e+09, %v391
      %s395 = scalar_lea.vmem [#allocation2], 8
      %v396 = vld [vmem:[%s395] sm:$0x7f]
      %v397 = vsel %vm306, %v394, -inf
      %398 = vmax.xlane.f32.xlu0 %v397
      %v399 = vpop.xlane.xlu0 %398
      %v400 = vmax.f32 %v396, %v399
      %v401 = vsub.f32 %v396, %v400
      %v402 = vmul.f32 %v401, 1.442695
      %v403 = vpow.pop %v402
      %405 = vset.pattern.permute.xlu0 0
      %406 = vperm.xlu0 %405, %v400
      %v407 = vpop.permute.xlu0 %406
      %v409 = vsub.f32 %v394, %v407
      %v410 = vmul.f32 %v409, 1.442695
      %v411 = vpow.pop %v410
      %s412 = scalar_lea.vmem [#allocation3], 8
      %v413 = vld [vmem:[%s412] sm:$0x7f]
      %v414 = vmul.f32 %v403, %v413
      %v415 = vsel %vm306, %v411, 0.0
      %416 = vadd.xlane.f32.xlu0 %v415
      %v417 = vpop.xlane.xlu0 %416
      %v418 = vadd.f32 %v414, %v417
      %419 = vst.msk [vmem:[%s412] sm:$0x7f] %vm328, %v418
      %s420 = scalar_lea.vmem [#allocation4], 8
      %v421 = vld [vmem:[%s420] sm:$0x7f]
      %423 = vset.pattern.permute.xlu0 0
      %424 = vperm.xlu0 %423, %v403
      %v425 = vpop.permute.xlu0 %424
      %v427 = vmul.f32 %v425, %v421
      %v428 = vpack.c.bf16 %v411, %v411
      %429 = vrot.lane.b32.xlu0 %v340, 80
      %v430 = vpop.permute.xlu0 %429
      %v432 = vsel %vm343, %v428, 0
      %v435 = vsel %vm347, %v430, 0
      %437 = vmatpush.bf16.msra.mxu0 0
      %438 = vmatpush.bf16.msra.mxu0 0
      %439 = vmatpush.bf16.msra.mxu0 0
      %440 = vmatpush.bf16.msra.mxu0 0
      %441 = vmatpush.bf16.msra.mxu0 0
      %442 = vmatpush.bf16.msra.mxu0 0
      %443 = vmatpush.bf16.msra.mxu0 0
      %444 = vmatpush.bf16.msra.mxu0 %v435
      %445 = vmatmul.bf16.gmra.mxu0 %v432
      %v446 = vpop.f32.mrf.mxu0
      %v447 = vadd.f32 0.0, %v446
      %v448 = vpop.f32.mrf.mxu0
      %449 = vdwg.mxu0
      %v450 = vadd.f32 %v427, %v447
      %451 = vst.msk [vmem:[%s420] sm:$0x7f] %vm365, %v450
      %452 = vst.msk [vmem:[%s395] sm:$0x7f] %vm328, %v400
      // Predicated region
      $region37: #{transformer_forward.45} parent=31 // pred_check
        %p453 = pneg %p258
      $region38: #{transformer_forward.45} parent=31 // pred_check_branch
        %455 = sbr.rel (%p453) target = $region40
      $region39: #{transformer_forward.45} parent=31 // pred_region
        %v456 = vld [vmem:[#allocation3] sm:$0x7f]
        %v457 = vrcp.pop %v456
        %v458 = vld [vmem:[#allocation4] sm:$0x7f]
        %460 = vset.pattern.permute.xlu0 0
        %461 = vperm.xlu0 %460, %v457
        %v462 = vpop.permute.xlu0 %461
        %v464 = vmul.f32 %v458, %v462
        %v465 = vpack.c.bf16 %v464, %v464
        %vm466 = vcmask 125952
        %vm467 = vsmask.f32 3328
        %vm468 = vmand %vm466, %vm467
        %v469 = vld [vmem:[%s256] sm:$0xf]
        %v470 = vsel %vm468, %v465, %v469
        %471 = vst [vmem:[%s256] sm:$0xf] %v470
        %v472 = vld [vmem:[%s412] sm:$0x7f]
        %v473 = vrcp.pop %v472
        %v474 = vld [vmem:[%s420] sm:$0x7f]
        %476 = vset.pattern.permute.xlu0 0
        %477 = vperm.xlu0 %476, %v473
        %v478 = vpop.permute.xlu0 %477
        %v480 = vmul.f32 %v474, %v478
        %v481 = vpack.c.bf16 %v480, %v480
        %483 = vrot.lane.b32.xlu0 %v481, 16
        %v484 = vpop.permute.xlu0 %483
        %vm486 = vcmask 257152
        %vm487 = vmand %vm486, %vm467
        %v488 = vld [vmem:[%s256] sm:$0xf]
        %v489 = vsel %vm487, %v484, %v488
        %490 = vst [vmem:[%s256] sm:$0xf] %v489
      $region40: #{transformer_forward.45} parent=31 // pred_fallthru
        _
      %p491 = scmp.lt.s32.totalorder %s19, 1
      %s492 = scalar_select %p491, %s19, 1
      %p493 = scmp.lt.s32.totalorder %s20, 0
      %s494 = scalar_select %p493, %s20, 0
      %s495 = sadd.s32 %s494, %s492
      %s496 = smul.addr %s495, 4
      %s497 = scalar_lea.vmem %s3, %s496
      // Predicated region
      $region41: #{transformer_forward.45} parent=31 // pred_check
        %p498 = pneg %p137
      $region42: #{transformer_forward.45} parent=31 // pred_check_branch
        %500 = sbr.rel (%p498) target = $region44
      $region43: #{transformer_forward.45} parent=31 // pred_region
        _
      $region44: #{transformer_forward.45} parent=31 // pred_fallthru
        _
    $region32: #{transformer_forward.45} parent=5 // pred_fallthru
      _
    %p501 = scmp.le.s32.totalorder 2, %s9
    // Predicated region
    $region45: #{transformer_forward.45} parent=5 // pred_check
      %p502 = pneg %p501
    $region46: #{transformer_forward.45} parent=5 // pred_check_branch
      %504 = sbr.rel (%p502) target = $region48
    $region47: #{transformer_forward.45} parent=5 // pred_region
      %s505 = ssub.s32 %s9, 2
      // Predicated region
      $region49: #{transformer_forward.45} parent=47 // pred_check
        %p506 = pneg %p143
      $region50: #{transformer_forward.45} parent=47 // pred_check_branch
        %508 = sbr.rel (%p506) target = $region52
      $region51: #{transformer_forward.45} parent=47 // pred_region
        %p509 = scmp.lt.s32.totalorder %s22, 1
        %s510 = scalar_select %p509, %s22, 1
        %p511 = scmp.lt.s32.totalorder %s23, 0
        %s512 = scalar_select %p511, %s23, 0
        %s513 = sadd.s32 %s512, %s510
        %s514 = smul.addr %s513, 4
        %s515 = scalar_lea.vmem %s3, %s514
      $region52: #{transformer_forward.45} parent=47 // pred_fallthru
        _
    $region48: #{transformer_forward.45} parent=5 // pred_fallthru
      _
  $region6: #{transformer_forward.45} parent=0 // loop_footer
    %s13 = sadd.s32 1, %s9
  $region7: #{transformer_forward.45} parent=0 // loop_footer_branch
    %8 = sbr.rel target = $region3
  $region8: #{transformer_forward.45} parent=0 // loop_exit
    _

</llo_original>
